<compile_context>
chip_gen: v7x
topology: tpu7x:2x2x1
jax: 0.10.0
libtpu: 0.0.40
codegen_flags: <defaults>
</compile_context>

<pallas_src>
import functools

import jax
import jax.numpy as jnp
from jax.experimental import pallas as pl
from jax.experimental.pallas import tpu as pltpu


def _round_up(x, m):
    return (x + m - 1) // m * m


def _round_down(x, m):
    return x // m * m


def _ce_fused_kernel(tgt_ref, *rest, num_heads, ignore_index, num_classes, group):
    """Accumulate summed NLL (per head) and valid-row count for one row-split of the batch.

    Packed layout: each row of the inputs carries `group` original samples along the lane
    axis (width W = group * num_classes). Grid is (num_splits, row_tiles); the split axis
    is 'parallel' (one half per TensorCore on v7x), the row-tile axis is the serial
    reduction axis.

    Ref order: tgt, logits_0..logits_{H-1}, sum_0..sum_{H-1}, cnt,
               sum_scratch_0..sum_scratch_{H-1}, cnt_scratch.
    """
    C, G = num_classes, group
    W = C * G
    H = num_heads
    logit_refs = rest[:H]
    sum_refs = rest[H:2 * H]
    cnt_ref = rest[2 * H]
    sum_vmems = rest[2 * H + 1:3 * H + 1]
    cnt_vmem = rest[3 * H + 1]

    i = pl.program_id(1)

    @pl.when(i == 0)
    def _():
        cnt_vmem[...] = jnp.zeros_like(cnt_vmem)
        for sv in sum_vmems:
            sv[...] = jnp.zeros_like(sv)

    f32 = jnp.float32
    highest = jax.lax.Precision.HIGHEST

    # ---- shared per-tile work: targets, valid mask, one-hot, block-diagonal maps ----
    t = tgt_ref[...]                                     # (tn, G) int32, mask pre-folded
    valid = t != ignore_index                            # (tn, G)
    lane_f = jax.lax.broadcasted_iota(jnp.int32, (1, W), 1).astype(f32)

    if G > 1:
        # Block-"diagonal" group-membership maps (1 where lane belongs to group), built
        # from iota compares — tiny (W x G) constants, no integer division needed.
        lane_r = jax.lax.broadcasted_iota(jnp.int32, (W, G), 0)
        grp_c = jax.lax.broadcasted_iota(jnp.int32, (W, G), 1)
        b_reduce = jnp.logical_and(lane_r >= grp_c * C,
                                   lane_r < (grp_c + 1) * C).astype(f32)    # (W, G)
        grp_r = jax.lax.broadcasted_iota(jnp.int32, (G, W), 0)
        lane_c = jax.lax.broadcasted_iota(jnp.int32, (G, W), 1)
        b_bcast = jnp.logical_and(lane_c >= grp_r * C,
                                  lane_c < (grp_r + 1) * C).astype(f32)     # (G, W)
        # Broadcast each group's target lane index across its C lanes on the MXU.
        # Exact at any matmul precision (single nonzero term per output lane).
        grp_idx = jax.lax.broadcasted_iota(jnp.int32, t.shape, 1)
        tgt_lane = (t + grp_idx * C).astype(f32)          # (tn, G)
        tl_b = jnp.dot(tgt_lane, b_bcast, precision=highest,
                       preferred_element_type=f32)        # (tn, W)
    else:
        # Unpacked path (C > 64): targets broadcast over lanes directly; MXU reduction
        # with an all-ones column only while the constant stays small.
        b_reduce = jnp.ones((W, 1), f32) if W <= 512 else None
        b_bcast = None
        tl_b = t.astype(f32)                              # (tn, 1) broadcasts over lanes

    onehot = lane_f == tl_b                               # (tn, W)
    cnt_vmem[...] += valid.astype(f32)                    # shared across heads

    # ---- per-head work: dense-lane VPU/EUP elementwise; lane reductions on the MXU ----
    for h in range(H):
        x = logit_refs[h][...].astype(f32)                # (tn, W), upcast in-register
        m = jnp.max(x, axis=-1, keepdims=True)            # packed-row max (>= group maxes)
        e = jnp.exp(x - m)
        xo = jnp.where(onehot, x, 0.0)
        if b_reduce is not None:
            s = jnp.dot(e, b_reduce, precision=highest,
                        preferred_element_type=f32)        # (tn, G) per-group sum(exp)
            x_t = jnp.dot(xo, b_reduce, precision=highest,
                          preferred_element_type=f32)      # (tn, G) target logit (exact)
        else:
            s = jnp.sum(e, axis=-1, keepdims=True)
            x_t = jnp.sum(xo, axis=-1, keepdims=True)
        # log(s) + m == per-sample logsumexp; the floor keeps it finite even if one packed
        # group underflowed completely (loss is meaningless there anyway).
        nll = jnp.log(jnp.maximum(s, 1e-37)) + m - x_t     # (tn, G)
        # hot loop: pure vector adds into VMEM scratch
        sum_vmems[h][...] += jnp.where(valid, nll, 0.0)

    # ---- final cross-lane reduce to this split's scalars, only on the last row tile ----
    @pl.when(i == pl.num_programs(1) - 1)
    def _():
        cnt_ref[...] = jnp.broadcast_to(jnp.sum(cnt_vmem[...]), cnt_ref.shape)
        for h in range(H):
            sum_refs[h][...] = jnp.broadcast_to(jnp.sum(sum_vmems[h][...]),
                                                sum_refs[h].shape)


def _vmem_capacity_bytes():
    try:
        info = pltpu.get_tpu_info()
        cap = int(getattr(info, "vmem_capacity_bytes", 0) or 0)
        if cap > 0:
            return cap
    except Exception:
        pass
    return 64 << 20   # conservative (v7x-sized) fallback


def fused_masked_cross_entropy(logits_list, targets, ignore_mask, *, ignore_index,
                               num_splits=2, max_rows_per_tile=4096):
    """Per-head mean cross-entropy over rows where ignore_mask is True and target != ignore_index.

    Each head h equals torch.nn.CrossEntropyLoss(ignore_index=...)(logits_list[h][mask],
    targets[mask]); all heads share one fused pallas_call. Returns NaN for a head if no
    rows are valid (matching torch mean reduction).
    """
    num_heads = len(logits_list)
    n, c = logits_list[0].shape
    for x in logits_list:
        assert x.shape == (n, c), "all semantic heads must share (N, C)"

    # Lane packing: G original samples per packed row (dense vreg lanes for small C).
    G = max(1, 128 // c)
    W = G * c

    # ---- byte-budget row tile (lane padding, double buffers, in-kernel f32 temps) ----
    lane_pad = lambda w: _round_up(max(w, 1), 128)
    per_row = 2 * lane_pad(G) * 4                        # targets (int32), double-buffered
    per_row += (num_heads + 1) * lane_pad(G) * 4         # sum/cnt VMEM accumulators
    per_row += 4 * lane_pad(W) * 4                       # shared f32 temps (tl_b, onehot, iota)
    for x in logits_list:
        per_row += 2 * lane_pad(W) * jnp.dtype(x.dtype).itemsize  # double-buffered tile
        per_row += 4 * lane_pad(W) * 4                   # upcast / exp / masked / MXU staging

    vmem_cap = _vmem_capacity_bytes()
    # ~40 MiB working set on 64 MiB/TC parts (v7x), ~80 MiB on 128 MiB parts (v5e/v6e).
    budget = (40 << 20) if vmem_cap <= (64 << 20) else (80 << 20)

    packed_rows = pl.cdiv(n, G)
    rows_per_split = pl.cdiv(packed_rows, num_splits)
    tn = max(8, _round_down(budget // per_row, 8))
    tn = min(tn, max_rows_per_tile, _round_up(rows_per_split, 8))
    blocks_per_split = pl.cdiv(rows_per_split, tn)
    padded_rows = num_splits * blocks_per_split * tn
    padded_n = padded_rows * G

    # ---- fold the batch ignore_mask into targets; pad rows only if shapes require it ----
    t32 = targets.reshape(-1).astype(jnp.int32)
    mask = ignore_mask.reshape(-1).astype(jnp.bool_)
    t_eff = jnp.where(mask, t32, jnp.int32(ignore_index))
    if padded_n != n:
        pad = padded_n - n
        t_eff = jnp.pad(t_eff, (0, pad), constant_values=ignore_index)
        logits_list = [jnp.pad(x, ((0, pad), (0, 0))) for x in logits_list]
    t_packed = t_eff.reshape(padded_rows, G)
    logits_packed = [x.reshape(padded_rows, W) for x in logits_list]   # free contiguous reshape

    kernel = functools.partial(_ce_fused_kernel, num_heads=num_heads,
                               ignore_index=int(ignore_index),
                               num_classes=c, group=G)

    bps = blocks_per_split
    row_map = lambda p, i: (p * bps + i, 0)
    out_map = lambda p, i: (p, 0, 0)

    in_specs = [pl.BlockSpec((tn, G), row_map)]
    in_specs += [pl.BlockSpec((tn, W), row_map) for _ in range(num_heads)]
    out_specs = tuple(pl.BlockSpec((1, 8, 128), out_map) for _ in range(num_heads + 1))
    out_shape = tuple(jax.ShapeDtypeStruct((num_splits, 8, 128), jnp.float32)
                      for _ in range(num_heads + 1))
    scratch = [pltpu.VMEM((tn, G), jnp.float32) for _ in range(num_heads + 1)]

    need = per_row * tn + (4 << 20)
    vlimit = int(min(max(need, 32 << 20), int(vmem_cap * 0.85)))

    outs = pl.pallas_call(
        kernel,
        out_shape=out_shape,
        grid_spec=pltpu.PrefetchScalarGridSpec(
            num_scalar_prefetch=0,
            grid=(num_splits, blocks_per_split),
            in_specs=in_specs,
            out_specs=out_specs,
            scratch_shapes=scratch,
        ),
        compiler_params=pltpu.CompilerParams(
            # split axis -> one half per TensorCore on v7x; harmless serial loop on 1-TC parts.
            # TODO(synk): per-generation tuning — num_splits=1 on v5e/v6e, or CORE_PARALLEL on
            #             v7x if xprof shows the 'parallel' axis is not sharded across cores.
            dimension_semantics=("parallel", "arbitrary"),
            vmem_limit_bytes=vlimit,
        ),
    )(t_packed, *logits_packed)

    total_cnt = jnp.sum(outs[num_heads][:, 0, 0])
    return [jnp.sum(outs[h][:, 0, 0]) / total_cnt for h in range(num_heads)]


def semantic_loss(inputs, targets, ignore_mask=None, *, lambda_s, car_index,
                  ignore_car_index=False):
    """JAX/Pallas port of SemanticLoss.forward."""
    ignore_index = car_index if ignore_car_index else -100
    n = targets.shape[0]
    if ignore_mask is None:
        ignore_mask = jnp.ones((n,), dtype=jnp.bool_)

    heads = ["coarse"]
    if "semantic_logits_fine" in inputs:
        heads.append("fine")
    logits_list = [inputs[f"semantic_logits_{h}"] for h in heads]

    ces = fused_masked_cross_entropy(logits_list, targets, ignore_mask,
                                     ignore_index=ignore_index)
    # torch.mean of a scalar is a no-op; keep the lambda_s scaling
    loss_dict = {f"{h}_semantic": lambda_s * ces[idx] for idx, h in enumerate(heads)}
    loss = sum(loss_dict.values())
    return loss, loss_dict


def _reference_semantic_loss(inputs, targets, ignore_mask, *, lambda_s, car_index,
                             ignore_car_index=False):
    """Pure-JAX reference used only for a correctness assertion."""
    ignore_index = car_index if ignore_car_index else -100
    t = targets.reshape(-1).astype(jnp.int32)
    mask = ignore_mask.astype(jnp.bool_)

    def ce(logits):
        x = logits.astype(jnp.float32)
        lse = jax.nn.logsumexp(x, axis=-1)
        x_t = jnp.take_along_axis(x, jnp.clip(t, 0, x.shape[-1] - 1)[:, None],
                                  axis=-1)[:, 0]
        nll = lse - x_t
        valid = jnp.logical_and(mask, t != ignore_index)
        return jnp.sum(jnp.where(valid, nll, 0.0)) / jnp.sum(valid.astype(jnp.float32))

    ld = {"coarse_semantic": lambda_s * ce(inputs["semantic_logits_coarse"])}
    if "semantic_logits_fine" in inputs:
        ld["fine_semantic"] = lambda_s * ce(inputs["semantic_logits_fine"])
    return sum(ld.values()), ld


if __name__ == "__main__":
    key = jax.random.PRNGKey(0)
    k1, k2, k3, k4 = jax.random.split(key, 4)

    N, C = 16, 8          # 16 samples, 8 semantic classes (lane-packed G = 16 per vreg row)
    lambda_s = 0.5
    car_index = 3
    ignore_car_index = True   # exercise the ignore_index path

    logits_coarse = jax.random.normal(k1, (N, C), dtype=jnp.float32)
    logits_fine = jax.random.normal(k2, (N, C), dtype=jnp.float32)
    targets = jax.random.randint(k3, (N, 1), 0, C, dtype=jnp.int32)
    ignore_mask = jax.random.bernoulli(k4, 0.75, (N,))  # bool mask over batch

    inputs = {
        "semantic_logits_coarse": logits_coarse,
        "semantic_logits_fine": logits_fine,
    }

    loss, loss_dict = semantic_loss(
        inputs, targets, ignore_mask,
        lambda_s=lambda_s, car_index=car_index, ignore_car_index=ignore_car_index)
    loss = jax.block_until_ready(loss)

    ref_loss, ref_dict = _reference_semantic_loss(
        inputs, targets, ignore_mask,
        lambda_s=lambda_s, car_index=car_index, ignore_car_index=ignore_car_index)

    assert jnp.allclose(loss, ref_loss, rtol=1e-5, atol=1e-5), (loss, ref_loss)
    for k in loss_dict:
        assert jnp.allclose(loss_dict[k], ref_dict[k], rtol=1e-5, atol=1e-5)

    print("KERNEL_OK")
</pallas_src>

<mosaic_0001>
module attributes {stable_mosaic.version = 11 : i64} {
  func.func @_ce_fused_kernel(%arg0: i32, %arg1: i32, %arg2: memref<8x16xi32, #tpu.memory_space<vmem>>, %arg3: memref<8x128xf32, #tpu.memory_space<vmem>>, %arg4: memref<8x128xf32, #tpu.memory_space<vmem>>, %arg5: memref<1x8x128xf32, #tpu.memory_space<vmem>>, %arg6: memref<1x8x128xf32, #tpu.memory_space<vmem>>, %arg7: memref<1x8x128xf32, #tpu.memory_space<vmem>>, %arg8: memref<8x16xf32, #tpu.memory_space<vmem>>, %arg9: memref<8x16xf32, #tpu.memory_space<vmem>>, %arg10: memref<8x16xf32, #tpu.memory_space<vmem>>) attributes {dimension_semantics = [#tpu.dimension_semantics<parallel>, #tpu.dimension_semantics<arbitrary>], iteration_bounds = array<i64: 2, 1>, scalar_prefetch = 0 : i64, scratch_operands = 3 : i64, tpu.core_type = #tpu.core_type<tc>, window_params = [{transform_indices = @transform_0, window_bounds = array<i64: 8, 16>}, {transform_indices = @transform_1, window_bounds = array<i64: 8, 128>}, {transform_indices = @transform_2, window_bounds = array<i64: 8, 128>}, {transform_indices = @transform_3, window_bounds = array<i64: 1, 8, 128>}, {transform_indices = @transform_4, window_bounds = array<i64: 1, 8, 128>}, {transform_indices = @transform_5, window_bounds = array<i64: 1, 8, 128>}]} {
    %c0_i32 = arith.constant 0 : i32
    %0 = arith.cmpi eq, %arg1, %c0_i32 : i32
    %1 = arith.extui %0 : i1 to i32
    %c0_i32_0 = arith.constant 0 : i32
    %2 = arith.cmpi ne, %1, %c0_i32_0 : i32
    scf.if %2 {
      %cst_37 = arith.constant 0.000000e+00 : f32
      %92 = vector.broadcast %cst_37 : f32 to vector<8x16xf32>
      %c0_38 = arith.constant 0 : index
      %c0_39 = arith.constant 0 : index
      %93 = vector.load %arg10[%c0_38, %c0_39] : memref<8x16xf32, #tpu.memory_space<vmem>>, vector<8x16xf32>
      tpu.vector_store %arg10[%c0_38, %c0_39], %92 {strides = array<i32>} : memref<8x16xf32, #tpu.memory_space<vmem>>, vector<8x16xf32>,
      %cst_40 = arith.constant 0.000000e+00 : f32
      %94 = vector.broadcast %cst_40 : f32 to vector<8x16xf32>
      %c0_41 = arith.constant 0 : index
      %c0_42 = arith.constant 0 : index
      %95 = vector.load %arg8[%c0_41, %c0_42] : memref<8x16xf32, #tpu.memory_space<vmem>>, vector<8x16xf32>
      tpu.vector_store %arg8[%c0_41, %c0_42], %94 {strides = array<i32>} : memref<8x16xf32, #tpu.memory_space<vmem>>, vector<8x16xf32>,
      %cst_43 = arith.constant 0.000000e+00 : f32
      %96 = vector.broadcast %cst_43 : f32 to vector<8x16xf32>
      %c0_44 = arith.constant 0 : index
      %c0_45 = arith.constant 0 : index
      %97 = vector.load %arg9[%c0_44, %c0_45] : memref<8x16xf32, #tpu.memory_space<vmem>>, vector<8x16xf32>
      tpu.vector_store %arg9[%c0_44, %c0_45], %96 {strides = array<i32>} : memref<8x16xf32, #tpu.memory_space<vmem>>, vector<8x16xf32>,
    } else {
    }
    %c0 = arith.constant 0 : index
    %c0_1 = arith.constant 0 : index
    %3 = vector.load %arg2[%c0, %c0_1] : memref<8x16xi32, #tpu.memory_space<vmem>>, vector<8x16xi32>
    %c3_i32 = arith.constant 3 : i32
    %4 = vector.broadcast %c3_i32 : i32 to vector<8x16xi32>
    %5 = arith.cmpi ne, %3, %4 : vector<8x16xi32>
    %6 = tpu.iota {dimensions = array<i32: 1>} : vector<1x128xi32>
    %7 = arith.sitofp %6 : vector<1x128xi32> to vector<1x128xf32>
    %8 = tpu.iota {dimensions = array<i32: 0>} : vector<128x16xi32>
    %9 = tpu.iota {dimensions = array<i32: 1>} : vector<128x16xi32>
    %c8_i32 = arith.constant 8 : i32
    %10 = vector.broadcast %c8_i32 : i32 to vector<128x16xi32>
    %11 = arith.muli %9, %10 : vector<128x16xi32>
    %12 = arith.cmpi sge, %8, %11 : vector<128x16xi32>
    %c1_i32 = arith.constant 1 : i32
    %13 = vector.broadcast %c1_i32 : i32 to vector<128x16xi32>
    %14 = arith.addi %9, %13 : vector<128x16xi32>
    %c8_i32_2 = arith.constant 8 : i32
    %15 = vector.broadcast %c8_i32_2 : i32 to vector<128x16xi32>
    %16 = arith.muli %14, %15 : vector<128x16xi32>
    %17 = arith.cmpi slt, %8, %16 : vector<128x16xi32>
    %18 = arith.andi %12, %17 : vector<128x16xi1>
    %19 = arith.extui %18 : vector<128x16xi1> to vector<128x16xi32>
    %20 = arith.sitofp %19 : vector<128x16xi32> to vector<128x16xf32>
    %21 = tpu.iota {dimensions = array<i32: 0>} : vector<16x128xi32>
    %22 = tpu.iota {dimensions = array<i32: 1>} : vector<16x128xi32>
    %c8_i32_3 = arith.constant 8 : i32
    %23 = vector.broadcast %c8_i32_3 : i32 to vector<16x128xi32>
    %24 = arith.muli %21, %23 : vector<16x128xi32>
    %25 = arith.cmpi sge, %22, %24 : vector<16x128xi32>
    %c1_i32_4 = arith.constant 1 : i32
    %26 = vector.broadcast %c1_i32_4 : i32 to vector<16x128xi32>
    %27 = arith.addi %21, %26 : vector<16x128xi32>
    %c8_i32_5 = arith.constant 8 : i32
    %28 = vector.broadcast %c8_i32_5 : i32 to vector<16x128xi32>
    %29 = arith.muli %27, %28 : vector<16x128xi32>
    %30 = arith.cmpi slt, %22, %29 : vector<16x128xi32>
    %31 = arith.andi %25, %30 : vector<16x128xi1>
    %32 = arith.extui %31 : vector<16x128xi1> to vector<16x128xi32>
    %33 = arith.sitofp %32 : vector<16x128xi32> to vector<16x128xf32>
    %34 = tpu.iota {dimensions = array<i32: 1>} : vector<8x16xi32>
    %c8_i32_6 = arith.constant 8 : i32
    %35 = vector.broadcast %c8_i32_6 : i32 to vector<8x16xi32>
    %36 = arith.muli %34, %35 : vector<8x16xi32>
    %37 = arith.addi %3, %36 : vector<8x16xi32>
    %38 = arith.sitofp %37 : vector<8x16xi32> to vector<8x16xf32>
    %cst = arith.constant dense<0.000000e+00> : vector<8x128xf32>
    %39 = tpu.matmul %38, %33, %cst {dimension_numbers = #tpu.dot_dimension_numbers<[1], [0], [0], [1], [0, 0, 1, 1], [], []>, precision = #tpu.contract_precision<fp32>} : vector<8x16xf32>, vector<16x128xf32>, vector<8x128xf32> -> vector<8x128xf32>
    %40 = vector.broadcast %7 : vector<1x128xf32> to vector<8x128xf32>
    %41 = arith.cmpf oeq, %40, %39 : vector<8x128xf32>
    %c0_7 = arith.constant 0 : index
    %c0_8 = arith.constant 0 : index
    %42 = vector.load %arg10[%c0_7, %c0_8] : memref<8x16xf32, #tpu.memory_space<vmem>>, vector<8x16xf32>
    %43 = arith.extui %5 : vector<8x16xi1> to vector<8x16xi32>
    %44 = arith.sitofp %43 : vector<8x16xi32> to vector<8x16xf32>
    %45 = arith.addf %42, %44 : vector<8x16xf32>
    %c0_9 = arith.constant 0 : index
    %c0_10 = arith.constant 0 : index
    %46 = vector.load %arg10[%c0_9, %c0_10] : memref<8x16xf32, #tpu.memory_space<vmem>>, vector<8x16xf32>
    tpu.vector_store %arg10[%c0_9, %c0_10], %45 {strides = array<i32>} : memref<8x16xf32, #tpu.memory_space<vmem>>, vector<8x16xf32>,
    %c0_11 = arith.constant 0 : index
    %c0_12 = arith.constant 0 : index
    %47 = vector.load %arg3[%c0_11, %c0_12] : memref<8x128xf32, #tpu.memory_space<vmem>>, vector<8x128xf32>
    %cst_13 = arith.constant dense<0xFF800000> : vector<8xf32>
    %48 = vector.multi_reduction <maximumf>, %47, %cst_13 [1] : vector<8x128xf32> to vector<8xf32>
    %49 = vector.shape_cast %48 : vector<8xf32> to vector<8x1xf32>
    %50 = vector.broadcast %49 : vector<8x1xf32> to vector<8x128xf32>
    %51 = arith.subf %47, %50 : vector<8x128xf32>
    %52 = math.exp %51 : vector<8x128xf32>
    %cst_14 = arith.constant 0.000000e+00 : f32
    %53 = vector.broadcast %cst_14 : f32 to vector<8x128xf32>
    %54 = arith.select %41, %47, %53 : vector<8x128xi1>, vector<8x128xf32>
    %cst_15 = arith.constant dense<0.000000e+00> : vector<8x16xf32>
    %55 = tpu.matmul %52, %20, %cst_15 {dimension_numbers = #tpu.dot_dimension_numbers<[1], [0], [0], [1], [0, 0, 1, 1], [], []>, precision = #tpu.contract_precision<fp32>} : vector<8x128xf32>, vector<128x16xf32>, vector<8x16xf32> -> vector<8x16xf32>
    %cst_16 = arith.constant dense<0.000000e+00> : vector<8x16xf32>
    %56 = tpu.matmul %54, %20, %cst_16 {dimension_numbers = #tpu.dot_dimension_numbers<[1], [0], [0], [1], [0, 0, 1, 1], [], []>, precision = #tpu.contract_precision<fp32>} : vector<8x128xf32>, vector<128x16xf32>, vector<8x16xf32> -> vector<8x16xf32>
    %cst_17 = arith.constant 9.99999991E-38 : f32
    %57 = vector.broadcast %cst_17 : f32 to vector<8x16xf32>
    %58 = arith.maximumf %55, %57 : vector<8x16xf32>
    %59 = math.log %58 : vector<8x16xf32>
    %60 = vector.broadcast %49 : vector<8x1xf32> to vector<8x16xf32>
    %61 = arith.addf %59, %60 : vector<8x16xf32>
    %62 = arith.subf %61, %56 : vector<8x16xf32>
    %c0_18 = arith.constant 0 : index
    %c0_19 = arith.constant 0 : index
    %63 = vector.load %arg8[%c0_18, %c0_19] : memref<8x16xf32, #tpu.memory_space<vmem>>, vector<8x16xf32>
    %cst_20 = arith.constant 0.000000e+00 : f32
    %64 = vector.broadcast %cst_20 : f32 to vector<8x16xf32>
    %65 = arith.select %5, %62, %64 : vector<8x16xi1>, vector<8x16xf32>
    %66 = arith.addf %63, %65 : vector<8x16xf32>
    %c0_21 = arith.constant 0 : index
    %c0_22 = arith.constant 0 : index
    %67 = vector.load %arg8[%c0_21, %c0_22] : memref<8x16xf32, #tpu.memory_space<vmem>>, vector<8x16xf32>
    tpu.vector_store %arg8[%c0_21, %c0_22], %66 {strides = array<i32>} : memref<8x16xf32, #tpu.memory_space<vmem>>, vector<8x16xf32>,
    %c0_23 = arith.constant 0 : index
    %c0_24 = arith.constant 0 : index
    %68 = vector.load %arg4[%c0_23, %c0_24] : memref<8x128xf32, #tpu.memory_space<vmem>>, vector<8x128xf32>
    %cst_25 = arith.constant dense<0xFF800000> : vector<8xf32>
    %69 = vector.multi_reduction <maximumf>, %68, %cst_25 [1] : vector<8x128xf32> to vector<8xf32>
    %70 = vector.shape_cast %69 : vector<8xf32> to vector<8x1xf32>
    %71 = vector.broadcast %70 : vector<8x1xf32> to vector<8x128xf32>
    %72 = arith.subf %68, %71 : vector<8x128xf32>
    %73 = math.exp %72 : vector<8x128xf32>
    %cst_26 = arith.constant 0.000000e+00 : f32
    %74 = vector.broadcast %cst_26 : f32 to vector<8x128xf32>
    %75 = arith.select %41, %68, %74 : vector<8x128xi1>, vector<8x128xf32>
    %cst_27 = arith.constant dense<0.000000e+00> : vector<8x16xf32>
    %76 = tpu.matmul %73, %20, %cst_27 {dimension_numbers = #tpu.dot_dimension_numbers<[1], [0], [0], [1], [0, 0, 1, 1], [], []>, precision = #tpu.contract_precision<fp32>} : vector<8x128xf32>, vector<128x16xf32>, vector<8x16xf32> -> vector<8x16xf32>
    %cst_28 = arith.constant dense<0.000000e+00> : vector<8x16xf32>
    %77 = tpu.matmul %75, %20, %cst_28 {dimension_numbers = #tpu.dot_dimension_numbers<[1], [0], [0], [1], [0, 0, 1, 1], [], []>, precision = #tpu.contract_precision<fp32>} : vector<8x128xf32>, vector<128x16xf32>, vector<8x16xf32> -> vector<8x16xf32>
    %cst_29 = arith.constant 9.99999991E-38 : f32
    %78 = vector.broadcast %cst_29 : f32 to vector<8x16xf32>
    %79 = arith.maximumf %76, %78 : vector<8x16xf32>
    %80 = math.log %79 : vector<8x16xf32>
    %81 = vector.broadcast %70 : vector<8x1xf32> to vector<8x16xf32>
    %82 = arith.addf %80, %81 : vector<8x16xf32>
    %83 = arith.subf %82, %77 : vector<8x16xf32>
    %c0_30 = arith.constant 0 : index
    %c0_31 = arith.constant 0 : index
    %84 = vector.load %arg9[%c0_30, %c0_31] : memref<8x16xf32, #tpu.memory_space<vmem>>, vector<8x16xf32>
    %cst_32 = arith.constant 0.000000e+00 : f32
    %85 = vector.broadcast %cst_32 : f32 to vector<8x16xf32>
    %86 = arith.select %5, %83, %85 : vector<8x16xi1>, vector<8x16xf32>
    %87 = arith.addf %84, %86 : vector<8x16xf32>
    %c0_33 = arith.constant 0 : index
    %c0_34 = arith.constant 0 : index
    %88 = vector.load %arg9[%c0_33, %c0_34] : memref<8x16xf32, #tpu.memory_space<vmem>>, vector<8x16xf32>
    tpu.vector_store %arg9[%c0_33, %c0_34], %87 {strides = array<i32>} : memref<8x16xf32, #tpu.memory_space<vmem>>, vector<8x16xf32>,
    %c0_i32_35 = arith.constant 0 : i32
    %89 = arith.cmpi eq, %arg1, %c0_i32_35 : i32
    %90 = arith.extui %89 : i1 to i32
    %c0_i32_36 = arith.constant 0 : i32
    %91 = arith.cmpi ne, %90, %c0_i32_36 : i32
    scf.if %91 {
      %c0_37 = arith.constant 0 : index
      %c0_38 = arith.constant 0 : index
      %92 = vector.load %arg10[%c0_37, %c0_38] : memref<8x16xf32, #tpu.memory_space<vmem>>, vector<8x16xf32>
      %93 = vector.shape_cast %92 : vector<8x16xf32> to vector<1x8x16xf32>
      %cst_39 = arith.constant dense<0.000000e+00> : vector<1xf32>
      %94 = vector.multi_reduction <add>, %93, %cst_39 [1, 2] : vector<1x8x16xf32> to vector<1xf32>
      %95 = vector.shape_cast %94 : vector<1xf32> to vector<1x1x1xf32>
      %96 = vector.extract %95[0, 0, 0] : f32 from vector<1x1x1xf32>
      %97 = vector.broadcast %96 : f32 to vector<1x8x128xf32>
      %c0_40 = arith.constant 0 : index
      %c0_41 = arith.constant 0 : index
      %c0_42 = arith.constant 0 : index
      %98 = vector.load %arg7[%c0_40, %c0_41, %c0_42] : memref<1x8x128xf32, #tpu.memory_space<vmem>>, vector<1x8x128xf32>
      tpu.vector_store %arg7[%c0_40, %c0_41, %c0_42], %97 {strides = array<i32>} : memref<1x8x128xf32, #tpu.memory_space<vmem>>, vector<1x8x128xf32>,
      %c0_43 = arith.constant 0 : index
      %c0_44 = arith.constant 0 : index
      %99 = vector.load %arg8[%c0_43, %c0_44] : memref<8x16xf32, #tpu.memory_space<vmem>>, vector<8x16xf32>
      %100 = vector.shape_cast %99 : vector<8x16xf32> to vector<1x8x16xf32>
      %cst_45 = arith.constant dense<0.000000e+00> : vector<1xf32>
      %101 = vector.multi_reduction <add>, %100, %cst_45 [1, 2] : vector<1x8x16xf32> to vector<1xf32>
      %102 = vector.shape_cast %101 : vector<1xf32> to vector<1x1x1xf32>
      %103 = vector.extract %102[0, 0, 0] : f32 from vector<1x1x1xf32>
      %104 = vector.broadcast %103 : f32 to vector<1x8x128xf32>
      %c0_46 = arith.constant 0 : index
      %c0_47 = arith.constant 0 : index
      %c0_48 = arith.constant 0 : index
      %105 = vector.load %arg5[%c0_46, %c0_47, %c0_48] : memref<1x8x128xf32, #tpu.memory_space<vmem>>, vector<1x8x128xf32>
      tpu.vector_store %arg5[%c0_46, %c0_47, %c0_48], %104 {strides = array<i32>} : memref<1x8x128xf32, #tpu.memory_space<vmem>>, vector<1x8x128xf32>,
      %c0_49 = arith.constant 0 : index
      %c0_50 = arith.constant 0 : index
      %106 = vector.load %arg9[%c0_49, %c0_50] : memref<8x16xf32, #tpu.memory_space<vmem>>, vector<8x16xf32>
      %107 = vector.shape_cast %106 : vector<8x16xf32> to vector<1x8x16xf32>
      %cst_51 = arith.constant dense<0.000000e+00> : vector<1xf32>
      %108 = vector.multi_reduction <add>, %107, %cst_51 [1, 2] : vector<1x8x16xf32> to vector<1xf32>
      %109 = vector.shape_cast %108 : vector<1xf32> to vector<1x1x1xf32>
      %110 = vector.extract %109[0, 0, 0] : f32 from vector<1x1x1xf32>
      %111 = vector.broadcast %110 : f32 to vector<1x8x128xf32>
      %c0_52 = arith.constant 0 : index
      %c0_53 = arith.constant 0 : index
      %c0_54 = arith.constant 0 : index
      %112 = vector.load %arg6[%c0_52, %c0_53, %c0_54] : memref<1x8x128xf32, #tpu.memory_space<vmem>>, vector<1x8x128xf32>
      tpu.vector_store %arg6[%c0_52, %c0_53, %c0_54], %111 {strides = array<i32>} : memref<1x8x128xf32, #tpu.memory_space<vmem>>, vector<1x8x128xf32>,
    } else {
    }
    return
  }
  func.func @transform_0(%arg0: i32, %arg1: i32) -> (i32, i32) {
    %c1_i32 = arith.constant 1 : i32
    %0 = arith.muli %arg0, %c1_i32 : i32
    %1 = arith.addi %0, %arg1 : i32
    %c0_i32 = arith.constant 0 : i32
    %c0_i32_0 = arith.constant 0 : i32
    return %1, %c0_i32 : i32, i32
  }
  func.func @transform_1(%arg0: i32, %arg1: i32) -> (i32, i32) {
    %c1_i32 = arith.constant 1 : i32
    %0 = arith.muli %arg0, %c1_i32 : i32
    %1 = arith.addi %0, %arg1 : i32
    %c0_i32 = arith.constant 0 : i32
    %c0_i32_0 = arith.constant 0 : i32
    return %1, %c0_i32 : i32, i32
  }
  func.func @transform_2(%arg0: i32, %arg1: i32) -> (i32, i32) {
    %c1_i32 = arith.constant 1 : i32
    %0 = arith.muli %arg0, %c1_i32 : i32
    %1 = arith.addi %0, %arg1 : i32
    %c0_i32 = arith.constant 0 : i32
    %c0_i32_0 = arith.constant 0 : i32
    return %1, %c0_i32 : i32, i32
  }
  func.func @transform_3(%arg0: i32, %arg1: i32) -> (i32, i32, i32) {
    %c0_i32 = arith.constant 0 : i32
    %c0_i32_0 = arith.constant 0 : i32
    %c0_i32_1 = arith.constant 0 : i32
    return %arg0, %c0_i32, %c0_i32_0 : i32, i32, i32
  }
  func.func @transform_4(%arg0: i32, %arg1: i32) -> (i32, i32, i32) {
    %c0_i32 = arith.constant 0 : i32
    %c0_i32_0 = arith.constant 0 : i32
    %c0_i32_1 = arith.constant 0 : i32
    return %arg0, %c0_i32, %c0_i32_0 : i32, i32, i32
  }
  func.func @transform_5(%arg0: i32, %arg1: i32) -> (i32, i32, i32) {
    %c0_i32 = arith.constant 0 : i32
    %c0_i32_0 = arith.constant 0 : i32
    %c0_i32_1 = arith.constant 0 : i32
    return %arg0, %c0_i32, %c0_i32_0 : i32, i32, i32
  }
}

</mosaic_0001>

<llo_original>
// kernel: tpu_custom_call.1
$region0: #{tpu_custom_call.1}
  #allocation0 [shape = 'u32[]', space=smem, size = 0x4, offset = 0x4, fixed_abs, tag = 'smem constant byte address 0x4 - core index']
  #allocation1 [shape = 'u32[144,128]{1,0:T(1,128)}', space=vmem, size = 0x12000, scoped, tag = 'internal scratch']
  #allocation2 [shape = 'f32[8,16]{1,0:T(8,128)}', space=vmem, size = 0x1000, scoped, tag = 'scratch operand']
  #allocation3 [shape = 'f32[8,16]{1,0:T(8,128)}', space=vmem, size = 0x1000, scoped, tag = 'scratch operand']
  #allocation4 [shape = 'f32[8,16]{1,0:T(8,128)}', space=vmem, size = 0x1000, scoped, tag = 'scratch operand']
  %s0 = inlined_call_operand.hbm [shape: s32[16,16], index: 0, kind: input, shape index: {}]
  %s1 = inlined_call_operand.hbm [shape: f32[16,128], index: 1, kind: input, shape index: {}]
  %s2 = inlined_call_operand.hbm [shape: f32[16,128], index: 2, kind: input, shape index: {}]
  %s3 = inlined_call_operand.hbm [shape: f32[2,8,128], index: 3, kind: output, shape index: {0}]
  %s4 = inlined_call_operand.hbm [shape: f32[2,8,128], index: 4, kind: output, shape index: {1}]
  %s5 = inlined_call_operand.hbm [shape: f32[2,8,128], index: 5, kind: output, shape index: {2}]
  %6 = xla_tuple %s3, %s4, %s5
  %s7 = sld [smem:[#allocation0]]
  $region81: #{tpu_custom_call.1} parent=0
    _
  %s9 = ssub.s32 1, %s7
  %s10 = scalar_select 0, %s9, %s7
  $region1: #{tpu_custom_call.1} parent=0
    #allocation5 [shape = 'u8[8192]{0}', space=vmem, size = 0x2000, scoped, tag = 'input window, operand 0']
    #allocation6 [shape = 's32[2]{0}', space=sflag, size = 0x8, scoped, tag = 'scoped memory for tpu_custom_call.1']
    #allocation7 [shape = 's32[2]{0}', space=sflag, size = 0x8, scoped, tag = 'scoped memory for tpu_custom_call.1']
    #allocation8 [shape = 'u8[8192]{0}', space=vmem, size = 0x2000, scoped, tag = 'input window, operand 1']
    #allocation9 [shape = 's32[2]{0}', space=sflag, size = 0x8, scoped, tag = 'scoped memory for tpu_custom_call.1']
    #allocation10 [shape = 'u8[8192]{0}', space=vmem, size = 0x2000, scoped, tag = 'input window, operand 2']
    #allocation11 [shape = 'u8[8192]{0}', space=vmem, size = 0x2000, scoped, tag = 'output window, operand 0']
    #allocation12 [shape = 'u8[8192]{0}', space=vmem, size = 0x2000, scoped, tag = 'output window, operand 1']
    #allocation13 [shape = 's32[2]{0}', space=sflag, size = 0x8, scoped, tag = 'scoped memory for tpu_custom_call.1']
    #allocation14 [shape = 'u8[8192]{0}', space=vmem, size = 0x2000, scoped, tag = 'output window, operand 2']
    %11 = vsyncpa [#allocation6], 0
    %s12 = scalar_lea.sflag [#allocation6], 1
    %13 = vsyncpa %s12, 0
    %14 = vsyncpa [#allocation9], 0
    %s15 = scalar_lea.sflag [#allocation9], 1
    %16 = vsyncpa %s15, 0
    %17 = vsyncpa [#allocation7], 0
    %s18 = scalar_lea.sflag [#allocation7], 1
    %19 = vsyncpa %s18, 0
    %20 = vsyncpa [#allocation13], 0
    %s21 = scalar_lea.sflag [#allocation13], 1
    %22 = vsyncpa %s21, 0
    loop: start=0, step=1, limit=4
    $region2: #{tpu_custom_call.1} parent=1 // loop_pre_header
      _
    $region3: #{tpu_custom_call.1} parent=1 // loop_header
      %s24 = sphi 0, %s28
      %p25 = scmp.ge.s32.totalorder %s24, 4
      %s31 = sphi 0, %s43
      %s32 = sphi 0, %s39
      %s33 = sphi 0, %s31
      %s34 = sphi 0, %s32
      %s35 = sphi 0, %s33
      %s36 = sphi 0, %s34
      %s48 = sphi 0, %s50
      %s51 = sphi 0, %s48
      %s52 = sphi 0, %s51
      %s68 = sphi 0, %s52
      %s76 = sphi 0, %s78
      %s79 = sphi 0, %s76
      %s80 = sphi 0, %s79
      %s96 = sphi 0, %s80
      %s104 = sphi 0, %s106
      %s107 = sphi 0, %s104
      %s108 = sphi 0, %s107
      %s124 = sphi 0, %s108
      %s130 = sphi 0, %s132
      %s133 = sphi 0, %s130
      %s134 = sphi 0, %s133
      %s150 = sphi 0, %s134
      %s156 = sphi 0, %s158
      %s159 = sphi 0, %s156
      %s160 = sphi 0, %s159
      %s176 = sphi 0, %s160
      %s182 = sphi 0, %s184
      %s185 = sphi 0, %s182
      %s186 = sphi 0, %s185
      %s202 = sphi 0, %s186
    $region4: #{tpu_custom_call.1} parent=1 // loop_header_branch
      %27 = sbr.rel (%p25) target = $region8
    $region5: #{tpu_custom_call.1} parent=1 // loop_body
      %s29 = ssub.s32 %s24, 1
      %s30 = ssub.s32 %s24, 2
      %s37 = sadd.s32 1, %s32
      %p38 = scmp.ge.s32.totalorder %s37, 1
      %s39 = scalar_select %p38, 0, %s37
      %s40 = sadd.s32 1, %s31
      %s41 = scalar_select %p38, %s40, %s31
      %p42 = scmp.ge.s32.totalorder %s41, 2
      %s43 = scalar_select %p42, 0, %s41
      %s44 = sadd.s32 %s31, %s32
      %s45 = sadd.s32 %s43, %s39
      %s46 = ssub.s32 %s44, %s45
      %p47 = scmp.eq.s32.totalorder %s46, 0
      %s49 = sadd.s32 %s48, 1
      %s50 = scalar_select %p47, %s48, %s49
      %p53 = pneg %p47
      %p54 = scmp.eq.s32.totalorder %s24, 1
      %p55 = por %p53, %p54
      %p56 = scmp.ne.s32.totalorder %s48, %s51
      %p57 = scmp.eq.s32.totalorder %s24, 0
      %p58 = por %p56, %p57
      %p59 = scmp.ne.s32.totalorder %s48, %s51
      %p60 = scmp.eq.s32.totalorder %s29, 1
      %p61 = por %p59, %p60
      %p62 = scmp.ne.s32.totalorder %s51, %s52
      %p63 = scmp.eq.s32.totalorder %s29, 0
      %p64 = por %p62, %p63
      %p65 = scmp.ne.s32.totalorder %s51, %s52
      %p66 = scmp.eq.s32.totalorder %s30, 1
      %p67 = por %p65, %p66
      %p69 = scmp.ne.s32.totalorder %s52, %s68
      %p70 = scmp.eq.s32.totalorder %s30, 0
      %p71 = por %p69, %p70
      %s72 = sadd.s32 %s31, %s32
      %s73 = sadd.s32 %s43, %s39
      %s74 = ssub.s32 %s72, %s73
      %p75 = scmp.eq.s32.totalorder %s74, 0
      %s77 = sadd.s32 %s76, 1
      %s78 = scalar_select %p75, %s76, %s77
      %p81 = pneg %p75
      %p82 = scmp.eq.s32.totalorder %s24, 1
      %p83 = por %p81, %p82
      %p84 = scmp.ne.s32.totalorder %s76, %s79
      %p85 = scmp.eq.s32.totalorder %s24, 0
      %p86 = por %p84, %p85
      %p87 = scmp.ne.s32.totalorder %s76, %s79
      %p88 = scmp.eq.s32.totalorder %s29, 1
      %p89 = por %p87, %p88
      %p90 = scmp.ne.s32.totalorder %s79, %s80
      %p91 = scmp.eq.s32.totalorder %s29, 0
      %p92 = por %p90, %p91
      %p93 = scmp.ne.s32.totalorder %s79, %s80
      %p94 = scmp.eq.s32.totalorder %s30, 1
      %p95 = por %p93, %p94
      %p97 = scmp.ne.s32.totalorder %s80, %s96
      %p98 = scmp.eq.s32.totalorder %s30, 0
      %p99 = por %p97, %p98
      %s100 = sadd.s32 %s31, %s32
      %s101 = sadd.s32 %s43, %s39
      %s102 = ssub.s32 %s100, %s101
      %p103 = scmp.eq.s32.totalorder %s102, 0
      %s105 = sadd.s32 %s104, 1
      %s106 = scalar_select %p103, %s104, %s105
      %p109 = pneg %p103
      %p110 = scmp.eq.s32.totalorder %s24, 1
      %p111 = por %p109, %p110
      %p112 = scmp.ne.s32.totalorder %s104, %s107
      %p113 = scmp.eq.s32.totalorder %s24, 0
      %p114 = por %p112, %p113
      %p115 = scmp.ne.s32.totalorder %s104, %s107
      %p116 = scmp.eq.s32.totalorder %s29, 1
      %p117 = por %p115, %p116
      %p118 = scmp.ne.s32.totalorder %s107, %s108
      %p119 = scmp.eq.s32.totalorder %s29, 0
      %p120 = por %p118, %p119
      %p121 = scmp.ne.s32.totalorder %s107, %s108
      %p122 = scmp.eq.s32.totalorder %s30, 1
      %p123 = por %p121, %p122
      %p125 = scmp.ne.s32.totalorder %s108, %s124
      %p126 = scmp.eq.s32.totalorder %s30, 0
      %p127 = por %p125, %p126
      %s128 = ssub.s32 %s31, %s43
      %p129 = scmp.eq.s32.totalorder %s128, 0
      %s131 = sadd.s32 %s130, 1
      %s132 = scalar_select %p129, %s130, %s131
      %p135 = pneg %p129
      %p136 = scmp.eq.s32.totalorder %s24, 1
      %p137 = por %p135, %p136
      %p138 = scmp.ne.s32.totalorder %s130, %s133
      %p139 = scmp.eq.s32.totalorder %s24, 0
      %p140 = por %p138, %p139
      %p141 = scmp.ne.s32.totalorder %s130, %s133
      %p142 = scmp.eq.s32.totalorder %s29, 1
      %p143 = por %p141, %p142
      %p144 = scmp.ne.s32.totalorder %s133, %s134
      %p145 = scmp.eq.s32.totalorder %s29, 0
      %p146 = por %p144, %p145
      %p147 = scmp.ne.s32.totalorder %s133, %s134
      %p148 = scmp.eq.s32.totalorder %s30, 1
      %p149 = por %p147, %p148
      %p151 = scmp.ne.s32.totalorder %s134, %s150
      %p152 = scmp.eq.s32.totalorder %s30, 0
      %p153 = por %p151, %p152
      %s154 = ssub.s32 %s31, %s43
      %p155 = scmp.eq.s32.totalorder %s154, 0
      %s157 = sadd.s32 %s156, 1
      %s158 = scalar_select %p155, %s156, %s157
      %p161 = pneg %p155
      %p162 = scmp.eq.s32.totalorder %s24, 1
      %p163 = por %p161, %p162
      %p164 = scmp.ne.s32.totalorder %s156, %s159
      %p165 = scmp.eq.s32.totalorder %s24, 0
      %p166 = por %p164, %p165
      %p167 = scmp.ne.s32.totalorder %s156, %s159
      %p168 = scmp.eq.s32.totalorder %s29, 1
      %p169 = por %p167, %p168
      %p170 = scmp.ne.s32.totalorder %s159, %s160
      %p171 = scmp.eq.s32.totalorder %s29, 0
      %p172 = por %p170, %p171
      %p173 = scmp.ne.s32.totalorder %s159, %s160
      %p174 = scmp.eq.s32.totalorder %s30, 1
      %p175 = por %p173, %p174
      %p177 = scmp.ne.s32.totalorder %s160, %s176
      %p178 = scmp.eq.s32.totalorder %s30, 0
      %p179 = por %p177, %p178
      %s180 = ssub.s32 %s31, %s43
      %p181 = scmp.eq.s32.totalorder %s180, 0
      %s183 = sadd.s32 %s182, 1
      %s184 = scalar_select %p181, %s182, %s183
      %p187 = pneg %p181
      %p188 = scmp.eq.s32.totalorder %s24, 1
      %p189 = por %p187, %p188
      %p190 = scmp.ne.s32.totalorder %s182, %s185
      %p191 = scmp.eq.s32.totalorder %s24, 0
      %p192 = por %p190, %p191
      %p193 = scmp.ne.s32.totalorder %s182, %s185
      %p194 = scmp.eq.s32.totalorder %s29, 1
      %p195 = por %p193, %p194
      %p196 = scmp.ne.s32.totalorder %s185, %s186
      %p197 = scmp.eq.s32.totalorder %s29, 0
      %p198 = por %p196, %p197
      %p199 = scmp.ne.s32.totalorder %s185, %s186
      %p200 = scmp.eq.s32.totalorder %s30, 1
      %p201 = por %p199, %p200
      %p203 = scmp.ne.s32.totalorder %s186, %s202
      %p204 = scmp.eq.s32.totalorder %s30, 0
      %p205 = por %p203, %p204
      %p206 = scmp.le.s32.totalorder 1, %s24
      %p207 = scmp.lt.s32.totalorder %s24, 3
      %p208 = pnand %p206, %p207
      %p209 = pneg %p208
      // Predicated region
      $region9: #{tpu_custom_call.1} parent=5 // pred_check
        _
      $region10: #{tpu_custom_call.1} parent=5 // pred_check_branch
        %211 = sbr.rel (%p208) target = $region12
      $region11: #{tpu_custom_call.1} parent=5 // pred_region
        %s212 = ssub.s32 %s24, 1
      $region12: #{tpu_custom_call.1} parent=5 // pred_fallthru
        _
      %p213 = scmp.lt.s32.totalorder %s24, 2
      // Predicated region
      $region13: #{tpu_custom_call.1} parent=5 // pred_check
        %p214 = pneg %p213
      $region14: #{tpu_custom_call.1} parent=5 // pred_check_branch
        %216 = sbr.rel (%p214) target = $region16
      $region15: #{tpu_custom_call.1} parent=5 // pred_region
        // Predicated region
        $region17: #{tpu_custom_call.1} parent=15 // pred_check
          %p217 = pneg %p58
        $region18: #{tpu_custom_call.1} parent=15 // pred_check_branch
          %219 = sbr.rel (%p217) target = $region20
        $region19: #{tpu_custom_call.1} parent=15 // pred_region
          %s220 = sand.u32 %s48, 1
          %s221 = scalar_lea.sflag [#allocation6], %s220
          %s222 = sand.u32 %s48, 1
          %s223 = smul.addr %s222, 8
          %s224 = scalar_lea.vmem [#allocation5], %s223
          %s225 = sadd.s32 %s31, %s32
          %s227 = ssub.s32 128, 128
          %228 = vsyncadd %s221, %s227
          %s229 = smul.addr %s225, 128
          %s230 = scalar_lea.hbm %s0, %s229
          %s232 = sshll.u32 %s224, 4
          %s233 = int_to_ptr.vmem [resolvable:$true] %s232
          %235 = dma.hbm_to_vmem [thread:$0]  %s230, 128, %s233, %s221
        $region20: #{tpu_custom_call.1} parent=15 // pred_fallthru
          _
        // Predicated region
        $region21: #{tpu_custom_call.1} parent=15 // pred_check
          %p236 = pneg %p86
        $region22: #{tpu_custom_call.1} parent=15 // pred_check_branch
          %238 = sbr.rel (%p236) target = $region24
        $region23: #{tpu_custom_call.1} parent=15 // pred_region
          %s239 = sand.u32 %s24, 1
          %s240 = scalar_lea.sflag [#allocation9], %s239
          %s241 = sand.u32 %s76, 1
          %s242 = smul.addr %s241, 8
          %s243 = scalar_lea.vmem [#allocation8], %s242
          %s244 = sadd.s32 %s31, %s32
          %s246 = ssub.s32 128, 128
          %247 = vsyncadd %s240, %s246
          %s248 = smul.addr %s244, 128
          %s249 = scalar_lea.hbm %s1, %s248
          %s251 = sshll.u32 %s243, 4
          %s252 = int_to_ptr.vmem [resolvable:$true] %s251
          %254 = dma.hbm_to_vmem [thread:$0]  %s249, 128, %s252, %s240
        $region24: #{tpu_custom_call.1} parent=15 // pred_fallthru
          _
        // Predicated region
        $region25: #{tpu_custom_call.1} parent=15 // pred_check
          %p255 = pneg %p114
        $region26: #{tpu_custom_call.1} parent=15 // pred_check_branch
          %257 = sbr.rel (%p255) target = $region28
        $region27: #{tpu_custom_call.1} parent=15 // pred_region
          %s258 = sand.u32 %s24, 1
          %s259 = scalar_lea.sflag [#allocation9], %s258
          %s260 = sand.u32 %s104, 1
          %s261 = smul.addr %s260, 8
          %s262 = scalar_lea.vmem [#allocation10], %s261
          %s263 = sadd.s32 %s31, %s32
          %s265 = ssub.s32 128, 128
          %266 = vsyncadd %s259, %s265
          %s267 = smul.addr %s263, 128
          %s268 = scalar_lea.hbm %s2, %s267
          %s270 = sshll.u32 %s262, 4
          %s271 = int_to_ptr.vmem [resolvable:$true] %s270
          %273 = dma.hbm_to_vmem [thread:$0]  %s268, 128, %s271, %s259
        $region28: #{tpu_custom_call.1} parent=15 // pred_fallthru
          _
      $region16: #{tpu_custom_call.1} parent=5 // pred_fallthru
        _
      %p274 = scmp.le.s32.totalorder 1, %s24
      %p275 = scmp.lt.s32.totalorder %s24, 3
      %p276 = pnand %p274, %p275
      %p277 = pneg %p276
      // Predicated region
      $region29: #{tpu_custom_call.1} parent=5 // pred_check
        _
      $region30: #{tpu_custom_call.1} parent=5 // pred_check_branch
        %279 = sbr.rel (%p276) target = $region32
      $region31: #{tpu_custom_call.1} parent=5 // pred_region
        %s280 = ssub.s32 %s24, 1
        %s281 = sand.u32 %s51, 1
        %s282 = scalar_lea.sflag [#allocation6], %s281
        %s283 = sand.u32 %s51, 1
        %s284 = smul.addr %s283, 8
        %s285 = scalar_lea.vmem [#allocation5], %s284
        // Predicated region
        $region33: #{tpu_custom_call.1} parent=31 // pred_check
          %p286 = pneg %p64
        $region34: #{tpu_custom_call.1} parent=31 // pred_check_branch
          %288 = sbr.rel (%p286) target = $region36
        $region35: #{tpu_custom_call.1} parent=31 // pred_region
          %289 = dma.done %s282, 128
        $region36: #{tpu_custom_call.1} parent=31 // pred_fallthru
          _
        %s290 = sand.u32 %s29, 1
        %s291 = scalar_lea.sflag [#allocation9], %s290
        %s292 = sand.u32 %s79, 1
        %s293 = smul.addr %s292, 8
        %s294 = scalar_lea.vmem [#allocation8], %s293
        // Predicated region
        $region37: #{tpu_custom_call.1} parent=31 // pred_check
          %p295 = pneg %p92
        $region38: #{tpu_custom_call.1} parent=31 // pred_check_branch
          %297 = sbr.rel (%p295) target = $region40
        $region39: #{tpu_custom_call.1} parent=31 // pred_region
          %298 = dma.done %s291, 128
        $region40: #{tpu_custom_call.1} parent=31 // pred_fallthru
          _
        %s299 = sand.u32 %s29, 1
        %s300 = scalar_lea.sflag [#allocation9], %s299
        %s301 = sand.u32 %s107, 1
        %s302 = smul.addr %s301, 8
        %s303 = scalar_lea.vmem [#allocation10], %s302
        // Predicated region
        $region41: #{tpu_custom_call.1} parent=31 // pred_check
          %p304 = pneg %p120
        $region42: #{tpu_custom_call.1} parent=31 // pred_check_branch
          %306 = sbr.rel (%p304) target = $region44
        $region43: #{tpu_custom_call.1} parent=31 // pred_region
          %307 = dma.done %s300, 128
        $region44: #{tpu_custom_call.1} parent=31 // pred_fallthru
          _
        %s308 = sand.u32 %s51, 1
        %s309 = scalar_lea.sflag [#allocation6], %s308
        %s310 = sand.u32 %s51, 1
        %s311 = smul.addr %s310, 8
        %s312 = scalar_lea.vmem [#allocation5], %s311
        %p313 = pneg %p64
        %p314 = pneg %p61
        %s315 = sand.u32 %s29, 1
        %s316 = scalar_lea.sflag [#allocation9], %s315
        %s317 = sand.u32 %s79, 1
        %s318 = smul.addr %s317, 8
        %s319 = scalar_lea.vmem [#allocation8], %s318
        %p320 = pneg %p92
        %p321 = pneg %p89
        %s322 = sand.u32 %s29, 1
        %s323 = scalar_lea.sflag [#allocation9], %s322
        %s324 = sand.u32 %s107, 1
        %s325 = smul.addr %s324, 8
        %s326 = scalar_lea.vmem [#allocation10], %s325
        %p327 = pneg %p120
        %p328 = pneg %p117
        %p329 = pneg %p146
        %p330 = pneg %p143
        %s331 = sand.u32 %s133, 1
        %s332 = scalar_lea.sflag [#allocation7], %s331
        %s333 = sand.u32 %s133, 1
        %s334 = smul.addr %s333, 8
        %s335 = scalar_lea.vmem [#allocation11], %s334
        %p336 = pneg %p172
        %p337 = pneg %p169
        %s338 = sand.u32 %s29, 1
        %s339 = scalar_lea.sflag [#allocation13], %s338
        %s340 = sand.u32 %s159, 1
        %s341 = smul.addr %s340, 8
        %s342 = scalar_lea.vmem [#allocation12], %s341
        %p343 = pneg %p198
        %p344 = pneg %p195
        %s345 = sand.u32 %s29, 1
        %s346 = scalar_lea.sflag [#allocation13], %s345
        %s347 = sand.u32 %s185, 1
        %s348 = smul.addr %s347, 8
        %s349 = scalar_lea.vmem [#allocation14], %s348
        %s350 = sadd.s32 %s33, %s34
        %s351 = sadd.s32 %s33, %s34
        %s352 = sadd.s32 %s33, %s34
        %p353 = scmp.eq.s32.totalorder %s34, 0
        // Predicated region
        $region45: #{tpu_custom_call.1} parent=31 // pred_check
          %p354 = pneg %p353
        $region46: #{tpu_custom_call.1} parent=31 // pred_check_branch
          %356 = sbr.rel (%p354) target = $region48
        $region47: #{tpu_custom_call.1} parent=31 // pred_region
          %vm357 = vcmask 130048
          %358 = vst.msk [vmem:[#allocation4] sm:$0xff] %vm357, 0.0
          %359 = vst.msk [vmem:[#allocation2] sm:$0xff] %vm357, 0.0
          %360 = vst.msk [vmem:[#allocation3] sm:$0xff] %vm357, 0.0
        $region48: #{tpu_custom_call.1} parent=31 // pred_fallthru
          _
        %v361 = vld [vmem:[%s285] sm:$0xff]
        %vm362 = vcmp.ne.s32.totalorder %v361, 3
        %v363 = vlaneseq
        %v364 = vand.u32 %v363, 127
        %v365 = vcvt.s32.f32 %v364
        %v366 = vlaneseq
        %v367 = vshrl.u32 %v366, 7
        %v368 = vadd.s32 %v367, 8
        %v369 = vadd.s32 %v367, 16
        %v370 = vadd.s32 %v367, 24
        %v371 = vadd.s32 %v367, 32
        %v372 = vadd.s32 %v367, 40
        %v373 = vadd.s32 %v367, 48
        %v374 = vadd.s32 %v367, 56
        %v375 = vadd.s32 %v367, 64
        %v376 = vadd.s32 %v367, 72
        %v377 = vadd.s32 %v367, 80
        %v378 = vadd.s32 %v367, 88
        %v379 = vadd.s32 %v367, 96
        %v380 = vadd.s32 %v367, 104
        %v381 = vadd.s32 %v367, 112
        %v382 = vadd.s32 %v367, 120
        %v383 = vmul.u32 %v364, 8
        %vm384 = vcmp.ge.s32.totalorder %v367, %v383
        %vm385 = vcmp.ge.s32.totalorder %v368, %v383
        %vm386 = vcmp.ge.s32.totalorder %v369, %v383
        %vm387 = vcmp.ge.s32.totalorder %v370, %v383
        %vm388 = vcmp.ge.s32.totalorder %v371, %v383
        %vm389 = vcmp.ge.s32.totalorder %v372, %v383
        %vm390 = vcmp.ge.s32.totalorder %v373, %v383
        %vm391 = vcmp.ge.s32.totalorder %v374, %v383
        %vm392 = vcmp.ge.s32.totalorder %v375, %v383
        %vm393 = vcmp.ge.s32.totalorder %v376, %v383
        %vm394 = vcmp.ge.s32.totalorder %v377, %v383
        %vm395 = vcmp.ge.s32.totalorder %v378, %v383
        %vm396 = vcmp.ge.s32.totalorder %v379, %v383
        %vm397 = vcmp.ge.s32.totalorder %v380, %v383
        %vm398 = vcmp.ge.s32.totalorder %v381, %v383
        %vm399 = vcmp.ge.s32.totalorder %v382, %v383
        %v400 = vadd.s32 %v364, 1
        %v401 = vmul.u32 %v400, 8
        %vm402 = vcmp.lt.s32.totalorder %v367, %v401
        %vm403 = vcmp.lt.s32.totalorder %v368, %v401
        %vm404 = vcmp.lt.s32.totalorder %v369, %v401
        %vm405 = vcmp.lt.s32.totalorder %v370, %v401
        %vm406 = vcmp.lt.s32.totalorder %v371, %v401
        %vm407 = vcmp.lt.s32.totalorder %v372, %v401
        %vm408 = vcmp.lt.s32.totalorder %v373, %v401
        %vm409 = vcmp.lt.s32.totalorder %v374, %v401
        %vm410 = vcmp.lt.s32.totalorder %v375, %v401
        %vm411 = vcmp.lt.s32.totalorder %v376, %v401
        %vm412 = vcmp.lt.s32.totalorder %v377, %v401
        %vm413 = vcmp.lt.s32.totalorder %v378, %v401
        %vm414 = vcmp.lt.s32.totalorder %v379, %v401
        %vm415 = vcmp.lt.s32.totalorder %v380, %v401
        %vm416 = vcmp.lt.s32.totalorder %v381, %v401
        %vm417 = vcmp.lt.s32.totalorder %v382, %v401
        %vm418 = vmand %vm384, %vm402
        %vm419 = vmand %vm385, %vm403
        %vm420 = vmand %vm386, %vm404
        %vm421 = vmand %vm387, %vm405
        %vm422 = vmand %vm388, %vm406
        %vm423 = vmand %vm389, %vm407
        %vm424 = vmand %vm390, %vm408
        %vm425 = vmand %vm391, %vm409
        %vm426 = vmand %vm392, %vm410
        %vm427 = vmand %vm393, %vm411
        %vm428 = vmand %vm394, %vm412
        %vm429 = vmand %vm395, %vm413
        %vm430 = vmand %vm396, %vm414
        %vm431 = vmand %vm397, %vm415
        %vm432 = vmand %vm398, %vm416
        %vm433 = vmand %vm399, %vm417
        %v434 = vsel %vm418, 1, 0
        %v435 = vsel %vm419, 1, 0
        %v436 = vsel %vm420, 1, 0
        %v437 = vsel %vm421, 1, 0
        %v438 = vsel %vm422, 1, 0
        %v439 = vsel %vm423, 1, 0
        %v440 = vsel %vm424, 1, 0
        %v441 = vsel %vm425, 1, 0
        %v442 = vsel %vm426, 1, 0
        %v443 = vsel %vm427, 1, 0
        %v444 = vsel %vm428, 1, 0
        %v445 = vsel %vm429, 1, 0
        %v446 = vsel %vm430, 1, 0
        %v447 = vsel %vm431, 1, 0
        %v448 = vsel %vm432, 1, 0
        %v449 = vsel %vm433, 1, 0
        %v450 = vcvt.s32.f32 %v434
        %v451 = vcvt.s32.f32 %v435
        %v452 = vcvt.s32.f32 %v436
        %v453 = vcvt.s32.f32 %v437
        %v454 = vcvt.s32.f32 %v438
        %v455 = vcvt.s32.f32 %v439
        %v456 = vcvt.s32.f32 %v440
        %v457 = vcvt.s32.f32 %v441
        %v458 = vcvt.s32.f32 %v442
        %v459 = vcvt.s32.f32 %v443
        %v460 = vcvt.s32.f32 %v444
        %v461 = vcvt.s32.f32 %v445
        %v462 = vcvt.s32.f32 %v446
        %v463 = vcvt.s32.f32 %v447
        %v464 = vcvt.s32.f32 %v448
        %v465 = vcvt.s32.f32 %v449
        %v466 = vmul.u32 %v367, 8
        %v467 = vmul.u32 %v368, 8
        %vm468 = vcmp.ge.s32.totalorder %v364, %v466
        %vm469 = vcmp.ge.s32.totalorder %v364, %v467
        %v470 = vadd.s32 %v367, 1
        %v471 = vadd.s32 %v368, 1
        %v472 = vmul.u32 %v470, 8
        %v473 = vmul.u32 %v471, 8
        %vm474 = vcmp.lt.s32.totalorder %v364, %v472
        %vm475 = vcmp.lt.s32.totalorder %v364, %v473
        %vm476 = vmand %vm468, %vm474
        %vm477 = vmand %vm469, %vm475
        %v478 = vsel %vm476, 1, 0
        %v479 = vsel %vm477, 1, 0
        %v480 = vcvt.s32.f32 %v478
        %v481 = vcvt.s32.f32 %v479
        %v482 = vadd.s32 %v361, %v383
        %v483 = vcvt.s32.f32 %v482
        %vm484 = vcmask 130048
        %v486 = vsel %vm484, %v483, 0
        %488 = vmatprep.subr.mxu0 0.0
        %v489 = vand.u32 %v480, 4294901760
        %490 = vmatpush1.msra.mxu0 %v489
        %491 = vmatprep.subr.mxu0 0.0
        %v492 = vand.u32 %v481, 4294901760
        %493 = vmatpush1.msra.mxu0 %v492
        %494 = vmatprep.subr.mxu0 0.0
        %495 = vmatpush1.msra.mxu0 0.0
        %496 = vmatprep.subr.mxu0 0.0
        %497 = vmatpush1.msra.mxu0 0.0
        %498 = vmatprep.subr.mxu0 0.0
        %499 = vmatpush1.msra.mxu0 0.0
        %500 = vmatprep.subr.mxu0 0.0
        %501 = vmatpush1.msra.mxu0 0.0
        %502 = vmatprep.subr.mxu0 0.0
        %503 = vmatpush1.msra.mxu0 0.0
        %504 = vmatprep.subr.mxu0 0.0
        %505 = vmatpush1.msra.mxu0 0.0
        %506 = vmatprep.subr.mxu0 0.0
        %507 = vmatpush1.msra.mxu0 0.0
        %508 = vmatprep.subr.mxu0 0.0
        %509 = vmatpush1.msra.mxu0 0.0
        %510 = vmatprep.subr.mxu0 0.0
        %511 = vmatpush1.msra.mxu0 0.0
        %512 = vmatprep.subr.mxu0 0.0
        %513 = vmatpush1.msra.mxu0 0.0
        %514 = vmatprep.subr.mxu0 0.0
        %515 = vmatpush1.msra.mxu0 0.0
        %516 = vmatprep.subr.mxu0 0.0
        %517 = vmatpush1.msra.mxu0 0.0
        %518 = vmatprep.subr.mxu0 0.0
        %519 = vmatpush1.msra.mxu0 0.0
        %520 = vmatprep.subr.mxu0 0.0
        %521 = vmatpush1.msra.mxu0 0.0
        %522 = vmatprep.subr.mxu0 0.0
        %523 = vmatpush1.msra.mxu0 0.0
        %524 = vmatprep.subr.mxu0 0.0
        %525 = vmatpush1.msra.mxu0 0.0
        %526 = vmatprep.subr.mxu0 0.0
        %527 = vmatpush1.msra.mxu0 0.0
        %528 = vmatprep.subr.mxu0 0.0
        %529 = vmatpush1.msra.mxu0 0.0
        %530 = vmatprep.subr.mxu0 0.0
        %531 = vmatpush1.msra.mxu0 0.0
        %532 = vmatprep.subr.mxu0 0.0
        %533 = vmatpush1.msra.mxu0 0.0
        %534 = vmatprep.subr.mxu0 0.0
        %535 = vmatpush1.msra.mxu0 0.0
        %536 = vmatprep.subr.mxu0 0.0
        %537 = vmatpush1.msra.mxu0 0.0
        %538 = vmatprep.subr.mxu0 0.0
        %539 = vmatpush1.msra.mxu0 0.0
        %540 = vmatprep.subr.mxu0 0.0
        %541 = vmatpush1.msra.mxu0 0.0
        %542 = vmatprep.subr.mxu0 0.0
        %543 = vmatpush1.msra.mxu0 0.0
        %544 = vmatprep.subr.mxu0 0.0
        %545 = vmatpush1.msra.mxu0 0.0
        %546 = vmatprep.subr.mxu0 0.0
        %547 = vmatpush1.msra.mxu0 0.0
        %548 = vmatprep.subr.mxu0 0.0
        %549 = vmatpush1.msra.mxu0 0.0
        %550 = vmatprep.subr.mxu0 0.0
        %551 = vmatpush1.msra.mxu0 0.0
        %552 = vmatprep.subr.mxu0 0.0
        %553 = vmatpush1.msra.mxu0 0.0
        %554 = vmatprep.mubr.f32.mxu0 0.0
        %v555 = vand.u32 %v486, 4294901760
        %v556 = vsub.f32 %v486, %v555
        %v557 = vand.u32 %v556, 4294901760
        %v558 = vsub.f32 %v556, %v557
        %v559 = vand.u32 %v558, 4294901760
        %560 = vmatmul.mubr.f32.gmra.mrb[0].mxu0 %v559
        %v561 = vpop.f32.mrb[0].mxu0
        %v562 = vadd.f32 0.0, %v561
        %v563 = vpop.f32.mrb[0].mxu0
        %564 = vdwg.mxu0
        %565 = vmatprep.subr.mxu0 0.0
        %v566 = vand.u32 %v480, 4294901760
        %v567 = vsub.f32 %v480, %v566
        %v568 = vand.u32 %v567, 4294901760
        %v569 = vsub.f32 %v567, %v568
        %v570 = vand.u32 %v569, 4294901760
        %571 = vmatpush1.msra.mxu0 %v570
        %572 = vmatprep.subr.mxu0 0.0
        %v573 = vand.u32 %v481, 4294901760
        %v574 = vsub.f32 %v481, %v573
        %v575 = vand.u32 %v574, 4294901760
        %v576 = vsub.f32 %v574, %v575
        %v577 = vand.u32 %v576, 4294901760
        %578 = vmatpush1.msra.mxu0 %v577
        %579 = vmatprep.subr.mxu0 0.0
        %580 = vmatpush1.msra.mxu0 0.0
        %581 = vmatprep.subr.mxu0 0.0
        %582 = vmatpush1.msra.mxu0 0.0
        %583 = vmatprep.subr.mxu0 0.0
        %584 = vmatpush1.msra.mxu0 0.0
        %585 = vmatprep.subr.mxu0 0.0
        %586 = vmatpush1.msra.mxu0 0.0
        %587 = vmatprep.subr.mxu0 0.0
        %588 = vmatpush1.msra.mxu0 0.0
        %589 = vmatprep.subr.mxu0 0.0
        %590 = vmatpush1.msra.mxu0 0.0
        %591 = vmatprep.subr.mxu0 0.0
        %592 = vmatpush1.msra.mxu0 0.0
        %593 = vmatprep.subr.mxu0 0.0
        %594 = vmatpush1.msra.mxu0 0.0
        %595 = vmatprep.subr.mxu0 0.0
        %596 = vmatpush1.msra.mxu0 0.0
        %597 = vmatprep.subr.mxu0 0.0
        %598 = vmatpush1.msra.mxu0 0.0
        %599 = vmatprep.subr.mxu0 0.0
        %600 = vmatpush1.msra.mxu0 0.0
        %601 = vmatprep.subr.mxu0 0.0
        %602 = vmatpush1.msra.mxu0 0.0
        %603 = vmatprep.subr.mxu0 0.0
        %604 = vmatpush1.msra.mxu0 0.0
        %605 = vmatprep.subr.mxu0 0.0
        %606 = vmatpush1.msra.mxu0 0.0
        %607 = vmatprep.subr.mxu0 0.0
        %608 = vmatpush1.msra.mxu0 0.0
        %609 = vmatprep.subr.mxu0 0.0
        %610 = vmatpush1.msra.mxu0 0.0
        %611 = vmatprep.subr.mxu0 0.0
        %612 = vmatpush1.msra.mxu0 0.0
        %613 = vmatprep.subr.mxu0 0.0
        %614 = vmatpush1.msra.mxu0 0.0
        %615 = vmatprep.subr.mxu0 0.0
        %616 = vmatpush1.msra.mxu0 0.0
        %617 = vmatprep.subr.mxu0 0.0
        %618 = vmatpush1.msra.mxu0 0.0
        %619 = vmatprep.subr.mxu0 0.0
        %620 = vmatpush1.msra.mxu0 0.0
        %621 = vmatprep.subr.mxu0 0.0
        %622 = vmatpush1.msra.mxu0 0.0
        %623 = vmatprep.subr.mxu0 0.0
        %624 = vmatpush1.msra.mxu0 0.0
        %625 = vmatprep.subr.mxu0 0.0
        %626 = vmatpush1.msra.mxu0 0.0
        %627 = vmatprep.subr.mxu0 0.0
        %628 = vmatpush1.msra.mxu0 0.0
        %629 = vmatprep.subr.mxu0 0.0
        %630 = vmatpush1.msra.mxu0 0.0
        %631 = vmatprep.subr.mxu0 0.0
        %632 = vmatpush1.msra.mxu0 0.0
        %633 = vmatprep.subr.mxu0 0.0
        %634 = vmatpush1.msra.mxu0 0.0
        %635 = vmatprep.subr.mxu0 0.0
        %636 = vmatpush1.msra.mxu0 0.0
        %637 = vmatprep.subr.mxu0 0.0
        %638 = vmatpush1.msra.mxu0 0.0
        %639 = vmatprep.mubr.f32.mxu0 0.0
        %v640 = vand.u32 %v486, 4294901760
        %641 = vmatmul.mubr.f32.gmra.mrb[0].mxu0 %v640
        %v642 = vpop.f32.mrb[0].mxu0
        %v643 = vadd.f32 %v562, %v642
        %v644 = vpop.f32.mrb[0].mxu0
        %645 = vdwg.mxu0
        %646 = vmatprep.subr.mxu0 0.0
        %v647 = vand.u32 %v480, 4294901760
        %v648 = vsub.f32 %v480, %v647
        %649 = vmatpush1.msra.mxu0 %v648
        %650 = vmatprep.subr.mxu0 0.0
        %v651 = vand.u32 %v481, 4294901760
        %v652 = vsub.f32 %v481, %v651
        %653 = vmatpush1.msra.mxu0 %v652
        %654 = vmatprep.subr.mxu0 0.0
        %655 = vmatpush1.msra.mxu0 0.0
        %656 = vmatprep.subr.mxu0 0.0
        %657 = vmatpush1.msra.mxu0 0.0
        %658 = vmatprep.subr.mxu0 0.0
        %659 = vmatpush1.msra.mxu0 0.0
        %660 = vmatprep.subr.mxu0 0.0
        %661 = vmatpush1.msra.mxu0 0.0
        %662 = vmatprep.subr.mxu0 0.0
        %663 = vmatpush1.msra.mxu0 0.0
        %664 = vmatprep.subr.mxu0 0.0
        %665 = vmatpush1.msra.mxu0 0.0
        %666 = vmatprep.subr.mxu0 0.0
        %667 = vmatpush1.msra.mxu0 0.0
        %668 = vmatprep.subr.mxu0 0.0
        %669 = vmatpush1.msra.mxu0 0.0
        %670 = vmatprep.subr.mxu0 0.0
        %671 = vmatpush1.msra.mxu0 0.0
        %672 = vmatprep.subr.mxu0 0.0
        %673 = vmatpush1.msra.mxu0 0.0
        %674 = vmatprep.subr.mxu0 0.0
        %675 = vmatpush1.msra.mxu0 0.0
        %676 = vmatprep.subr.mxu0 0.0
        %677 = vmatpush1.msra.mxu0 0.0
        %678 = vmatprep.subr.mxu0 0.0
        %679 = vmatpush1.msra.mxu0 0.0
        %680 = vmatprep.subr.mxu0 0.0
        %681 = vmatpush1.msra.mxu0 0.0
        %682 = vmatprep.subr.mxu0 0.0
        %683 = vmatpush1.msra.mxu0 0.0
        %684 = vmatprep.subr.mxu0 0.0
        %685 = vmatpush1.msra.mxu0 0.0
        %686 = vmatprep.subr.mxu0 0.0
        %687 = vmatpush1.msra.mxu0 0.0
        %688 = vmatprep.subr.mxu0 0.0
        %689 = vmatpush1.msra.mxu0 0.0
        %690 = vmatprep.subr.mxu0 0.0
        %691 = vmatpush1.msra.mxu0 0.0
        %692 = vmatprep.subr.mxu0 0.0
        %693 = vmatpush1.msra.mxu0 0.0
        %694 = vmatprep.subr.mxu0 0.0
        %695 = vmatpush1.msra.mxu0 0.0
        %696 = vmatprep.subr.mxu0 0.0
        %697 = vmatpush1.msra.mxu0 0.0
        %698 = vmatprep.subr.mxu0 0.0
        %699 = vmatpush1.msra.mxu0 0.0
        %700 = vmatprep.subr.mxu0 0.0
        %701 = vmatpush1.msra.mxu0 0.0
        %702 = vmatprep.subr.mxu0 0.0
        %703 = vmatpush1.msra.mxu0 0.0
        %704 = vmatprep.subr.mxu0 0.0
        %705 = vmatpush1.msra.mxu0 0.0
        %706 = vmatprep.subr.mxu0 0.0
        %707 = vmatpush1.msra.mxu0 0.0
        %708 = vmatprep.subr.mxu0 0.0
        %709 = vmatpush1.msra.mxu0 0.0
        %710 = vmatprep.subr.mxu0 0.0
        %711 = vmatpush1.msra.mxu0 0.0
        %712 = vmatprep.subr.mxu0 0.0
        %713 = vmatpush1.msra.mxu0 0.0
        %714 = vmatprep.mubr.f32.mxu0 0.0
        %v715 = vand.u32 %v486, 4294901760
        %v716 = vsub.f32 %v486, %v715
        %717 = vmatmul.mubr.f32.gmra.mrb[0].mxu0 %v716
        %v718 = vpop.f32.mrb[0].mxu0
        %v719 = vadd.f32 %v643, %v718
        %v720 = vpop.f32.mrb[0].mxu0
        %721 = vdwg.mxu0
        %722 = vmatprep.subr.mxu0 0.0
        %v723 = vand.u32 %v480, 4294901760
        %724 = vmatpush1.msra.mxu0 %v723
        %725 = vmatprep.subr.mxu0 0.0
        %v726 = vand.u32 %v481, 4294901760
        %727 = vmatpush1.msra.mxu0 %v726
        %728 = vmatprep.subr.mxu0 0.0
        %729 = vmatpush1.msra.mxu0 0.0
        %730 = vmatprep.subr.mxu0 0.0
        %731 = vmatpush1.msra.mxu0 0.0
        %732 = vmatprep.subr.mxu0 0.0
        %733 = vmatpush1.msra.mxu0 0.0
        %734 = vmatprep.subr.mxu0 0.0
        %735 = vmatpush1.msra.mxu0 0.0
        %736 = vmatprep.subr.mxu0 0.0
        %737 = vmatpush1.msra.mxu0 0.0
        %738 = vmatprep.subr.mxu0 0.0
        %739 = vmatpush1.msra.mxu0 0.0
        %740 = vmatprep.subr.mxu0 0.0
        %741 = vmatpush1.msra.mxu0 0.0
        %742 = vmatprep.subr.mxu0 0.0
        %743 = vmatpush1.msra.mxu0 0.0
        %744 = vmatprep.subr.mxu0 0.0
        %745 = vmatpush1.msra.mxu0 0.0
        %746 = vmatprep.subr.mxu0 0.0
        %747 = vmatpush1.msra.mxu0 0.0
        %748 = vmatprep.subr.mxu0 0.0
        %749 = vmatpush1.msra.mxu0 0.0
        %750 = vmatprep.subr.mxu0 0.0
        %751 = vmatpush1.msra.mxu0 0.0
        %752 = vmatprep.subr.mxu0 0.0
        %753 = vmatpush1.msra.mxu0 0.0
        %754 = vmatprep.subr.mxu0 0.0
        %755 = vmatpush1.msra.mxu0 0.0
        %756 = vmatprep.subr.mxu0 0.0
        %757 = vmatpush1.msra.mxu0 0.0
        %758 = vmatprep.subr.mxu0 0.0
        %759 = vmatpush1.msra.mxu0 0.0
        %760 = vmatprep.subr.mxu0 0.0
        %761 = vmatpush1.msra.mxu0 0.0
        %762 = vmatprep.subr.mxu0 0.0
        %763 = vmatpush1.msra.mxu0 0.0
        %764 = vmatprep.subr.mxu0 0.0
        %765 = vmatpush1.msra.mxu0 0.0
        %766 = vmatprep.subr.mxu0 0.0
        %767 = vmatpush1.msra.mxu0 0.0
        %768 = vmatprep.subr.mxu0 0.0
        %769 = vmatpush1.msra.mxu0 0.0
        %770 = vmatprep.subr.mxu0 0.0
        %771 = vmatpush1.msra.mxu0 0.0
        %772 = vmatprep.subr.mxu0 0.0
        %773 = vmatpush1.msra.mxu0 0.0
        %774 = vmatprep.subr.mxu0 0.0
        %775 = vmatpush1.msra.mxu0 0.0
        %776 = vmatprep.subr.mxu0 0.0
        %777 = vmatpush1.msra.mxu0 0.0
        %778 = vmatprep.subr.mxu0 0.0
        %779 = vmatpush1.msra.mxu0 0.0
        %780 = vmatprep.subr.mxu0 0.0
        %781 = vmatpush1.msra.mxu0 0.0
        %782 = vmatprep.subr.mxu0 0.0
        %783 = vmatpush1.msra.mxu0 0.0
        %784 = vmatprep.subr.mxu0 0.0
        %785 = vmatpush1.msra.mxu0 0.0
        %786 = vmatprep.subr.mxu0 0.0
        %787 = vmatpush1.msra.mxu0 0.0
        %788 = vmatprep.mubr.f32.mxu0 0.0
        %v789 = vand.u32 %v486, 4294901760
        %v790 = vsub.f32 %v486, %v789
        %v791 = vand.u32 %v790, 4294901760
        %792 = vmatmul.mubr.f32.gmra.mrb[0].mxu0 %v791
        %v793 = vpop.f32.mrb[0].mxu0
        %v794 = vadd.f32 %v719, %v793
        %v795 = vpop.f32.mrb[0].mxu0
        %796 = vdwg.mxu0
        %797 = vmatprep.subr.mxu0 0.0
        %v798 = vand.u32 %v480, 4294901760
        %v799 = vsub.f32 %v480, %v798
        %v800 = vand.u32 %v799, 4294901760
        %801 = vmatpush1.msra.mxu0 %v800
        %802 = vmatprep.subr.mxu0 0.0
        %v803 = vand.u32 %v481, 4294901760
        %v804 = vsub.f32 %v481, %v803
        %v805 = vand.u32 %v804, 4294901760
        %806 = vmatpush1.msra.mxu0 %v805
        %807 = vmatprep.subr.mxu0 0.0
        %808 = vmatpush1.msra.mxu0 0.0
        %809 = vmatprep.subr.mxu0 0.0
        %810 = vmatpush1.msra.mxu0 0.0
        %811 = vmatprep.subr.mxu0 0.0
        %812 = vmatpush1.msra.mxu0 0.0
        %813 = vmatprep.subr.mxu0 0.0
        %814 = vmatpush1.msra.mxu0 0.0
        %815 = vmatprep.subr.mxu0 0.0
        %816 = vmatpush1.msra.mxu0 0.0
        %817 = vmatprep.subr.mxu0 0.0
        %818 = vmatpush1.msra.mxu0 0.0
        %819 = vmatprep.subr.mxu0 0.0
        %820 = vmatpush1.msra.mxu0 0.0
        %821 = vmatprep.subr.mxu0 0.0
        %822 = vmatpush1.msra.mxu0 0.0
        %823 = vmatprep.subr.mxu0 0.0
        %824 = vmatpush1.msra.mxu0 0.0
        %825 = vmatprep.subr.mxu0 0.0
        %826 = vmatpush1.msra.mxu0 0.0
        %827 = vmatprep.subr.mxu0 0.0
        %828 = vmatpush1.msra.mxu0 0.0
        %829 = vmatprep.subr.mxu0 0.0
        %830 = vmatpush1.msra.mxu0 0.0
        %831 = vmatprep.subr.mxu0 0.0
        %832 = vmatpush1.msra.mxu0 0.0
        %833 = vmatprep.subr.mxu0 0.0
        %834 = vmatpush1.msra.mxu0 0.0
        %835 = vmatprep.subr.mxu0 0.0
        %836 = vmatpush1.msra.mxu0 0.0
        %837 = vmatprep.subr.mxu0 0.0
        %838 = vmatpush1.msra.mxu0 0.0
        %839 = vmatprep.subr.mxu0 0.0
        %840 = vmatpush1.msra.mxu0 0.0
        %841 = vmatprep.subr.mxu0 0.0
        %842 = vmatpush1.msra.mxu0 0.0
        %843 = vmatprep.subr.mxu0 0.0
        %844 = vmatpush1.msra.mxu0 0.0
        %845 = vmatprep.subr.mxu0 0.0
        %846 = vmatpush1.msra.mxu0 0.0
        %847 = vmatprep.subr.mxu0 0.0
        %848 = vmatpush1.msra.mxu0 0.0
        %849 = vmatprep.subr.mxu0 0.0
        %850 = vmatpush1.msra.mxu0 0.0
        %851 = vmatprep.subr.mxu0 0.0
        %852 = vmatpush1.msra.mxu0 0.0
        %853 = vmatprep.subr.mxu0 0.0
        %854 = vmatpush1.msra.mxu0 0.0
        %855 = vmatprep.subr.mxu0 0.0
        %856 = vmatpush1.msra.mxu0 0.0
        %857 = vmatprep.subr.mxu0 0.0
        %858 = vmatpush1.msra.mxu0 0.0
        %859 = vmatprep.subr.mxu0 0.0
        %860 = vmatpush1.msra.mxu0 0.0
        %861 = vmatprep.subr.mxu0 0.0
        %862 = vmatpush1.msra.mxu0 0.0
        %863 = vmatprep.subr.mxu0 0.0
        %864 = vmatpush1.msra.mxu0 0.0
        %865 = vmatprep.subr.mxu0 0.0
        %866 = vmatpush1.msra.mxu0 0.0
        %867 = vmatprep.mubr.f32.mxu0 0.0
        %v868 = vand.u32 %v486, 4294901760
        %869 = vmatmul.mubr.f32.gmra.mrb[0].mxu0 %v868
        %v870 = vpop.f32.mrb[0].mxu0
        %v871 = vadd.f32 %v794, %v870
        %v872 = vpop.f32.mrb[0].mxu0
        %873 = vdwg.mxu0
        %874 = vmatprep.subr.mxu0 0.0
        %v875 = vand.u32 %v480, 4294901760
        %876 = vmatpush1.msra.mxu0 %v875
        %877 = vmatprep.subr.mxu0 0.0
        %v878 = vand.u32 %v481, 4294901760
        %879 = vmatpush1.msra.mxu0 %v878
        %880 = vmatprep.subr.mxu0 0.0
        %881 = vmatpush1.msra.mxu0 0.0
        %882 = vmatprep.subr.mxu0 0.0
        %883 = vmatpush1.msra.mxu0 0.0
        %884 = vmatprep.subr.mxu0 0.0
        %885 = vmatpush1.msra.mxu0 0.0
        %886 = vmatprep.subr.mxu0 0.0
        %887 = vmatpush1.msra.mxu0 0.0
        %888 = vmatprep.subr.mxu0 0.0
        %889 = vmatpush1.msra.mxu0 0.0
        %890 = vmatprep.subr.mxu0 0.0
        %891 = vmatpush1.msra.mxu0 0.0
        %892 = vmatprep.subr.mxu0 0.0
        %893 = vmatpush1.msra.mxu0 0.0
        %894 = vmatprep.subr.mxu0 0.0
        %895 = vmatpush1.msra.mxu0 0.0
        %896 = vmatprep.subr.mxu0 0.0
        %897 = vmatpush1.msra.mxu0 0.0
        %898 = vmatprep.subr.mxu0 0.0
        %899 = vmatpush1.msra.mxu0 0.0
        %900 = vmatprep.subr.mxu0 0.0
        %901 = vmatpush1.msra.mxu0 0.0
        %902 = vmatprep.subr.mxu0 0.0
        %903 = vmatpush1.msra.mxu0 0.0
        %904 = vmatprep.subr.mxu0 0.0
        %905 = vmatpush1.msra.mxu0 0.0
        %906 = vmatprep.subr.mxu0 0.0
        %907 = vmatpush1.msra.mxu0 0.0
        %908 = vmatprep.subr.mxu0 0.0
        %909 = vmatpush1.msra.mxu0 0.0
        %910 = vmatprep.subr.mxu0 0.0
        %911 = vmatpush1.msra.mxu0 0.0
        %912 = vmatprep.subr.mxu0 0.0
        %913 = vmatpush1.msra.mxu0 0.0
        %914 = vmatprep.subr.mxu0 0.0
        %915 = vmatpush1.msra.mxu0 0.0
        %916 = vmatprep.subr.mxu0 0.0
        %917 = vmatpush1.msra.mxu0 0.0
        %918 = vmatprep.subr.mxu0 0.0
        %919 = vmatpush1.msra.mxu0 0.0
        %920 = vmatprep.subr.mxu0 0.0
        %921 = vmatpush1.msra.mxu0 0.0
        %922 = vmatprep.subr.mxu0 0.0
        %923 = vmatpush1.msra.mxu0 0.0
        %924 = vmatprep.subr.mxu0 0.0
        %925 = vmatpush1.msra.mxu0 0.0
        %926 = vmatprep.subr.mxu0 0.0
        %927 = vmatpush1.msra.mxu0 0.0
        %928 = vmatprep.subr.mxu0 0.0
        %929 = vmatpush1.msra.mxu0 0.0
        %930 = vmatprep.subr.mxu0 0.0
        %931 = vmatpush1.msra.mxu0 0.0
        %932 = vmatprep.subr.mxu0 0.0
        %933 = vmatpush1.msra.mxu0 0.0
        %934 = vmatprep.subr.mxu0 0.0
        %935 = vmatpush1.msra.mxu0 0.0
        %936 = vmatprep.subr.mxu0 0.0
        %937 = vmatpush1.msra.mxu0 0.0
        %938 = vmatprep.subr.mxu0 0.0
        %939 = vmatpush1.msra.mxu0 0.0
        %940 = vmatprep.mubr.f32.mxu0 0.0
        %v941 = vand.u32 %v486, 4294901760
        %942 = vmatmul.mubr.f32.gmra.mrb[0].mxu0 %v941
        %v943 = vpop.f32.mrb[0].mxu0
        %v944 = vadd.f32 %v871, %v943
        %v945 = vpop.f32.mrb[0].mxu0
        %946 = vdwg.mxu0
        %vm947 = vcmp.eq.f32.partialorder %v365, %v944
        %v948 = vld [vmem:[#allocation4] sm:$0xff]
        %v949 = vsel %vm362, 1, 0
        %v950 = vcvt.s32.f32 %v949
        %v951 = vadd.f32 %v948, %v950
        %952 = vst.msk [vmem:[#allocation4] sm:$0xff] %vm484, %v951
        %v953 = vld [vmem:[%s294] sm:$0xff]
        %954 = vmax.xlane.f32.xlu0 %v953
        %v955 = vpop.xlane.xlu0 %954
        %v956 = vsub.f32 %v953, %v955
        %v957 = vmul.f32 %v956, 1.442695
        %v958 = vpow.pop %v957
        %v959 = vsel %vm947, %v953, 0.0
        %960 = vmatprep.subr.mxu0 0.0
        %v961 = vand.u32 %v450, 4294901760
        %962 = vmatpush1.msra.mxu0 %v961
        %963 = vmatprep.subr.mxu0 0.0
        %v964 = vand.u32 %v451, 4294901760
        %965 = vmatpush1.msra.mxu0 %v964
        %966 = vmatprep.subr.mxu0 0.0
        %v967 = vand.u32 %v452, 4294901760
        %968 = vmatpush1.msra.mxu0 %v967
        %969 = vmatprep.subr.mxu0 0.0
        %v970 = vand.u32 %v453, 4294901760
        %971 = vmatpush1.msra.mxu0 %v970
        %972 = vmatprep.subr.mxu0 0.0
        %v973 = vand.u32 %v454, 4294901760
        %974 = vmatpush1.msra.mxu0 %v973
        %975 = vmatprep.subr.mxu0 0.0
        %v976 = vand.u32 %v455, 4294901760
        %977 = vmatpush1.msra.mxu0 %v976
        %978 = vmatprep.subr.mxu0 0.0
        %v979 = vand.u32 %v456, 4294901760
        %980 = vmatpush1.msra.mxu0 %v979
        %981 = vmatprep.subr.mxu0 0.0
        %v982 = vand.u32 %v457, 4294901760
        %983 = vmatpush1.msra.mxu0 %v982
        %984 = vmatprep.subr.mxu0 0.0
        %v985 = vand.u32 %v458, 4294901760
        %986 = vmatpush1.msra.mxu0 %v985
        %987 = vmatprep.subr.mxu0 0.0
        %v988 = vand.u32 %v459, 4294901760
        %989 = vmatpush1.msra.mxu0 %v988
        %990 = vmatprep.subr.mxu0 0.0
        %v991 = vand.u32 %v460, 4294901760
        %992 = vmatpush1.msra.mxu0 %v991
        %993 = vmatprep.subr.mxu0 0.0
        %v994 = vand.u32 %v461, 4294901760
        %995 = vmatpush1.msra.mxu0 %v994
        %996 = vmatprep.subr.mxu0 0.0
        %v997 = vand.u32 %v462, 4294901760
        %998 = vmatpush1.msra.mxu0 %v997
        %999 = vmatprep.subr.mxu0 0.0
        %v1000 = vand.u32 %v463, 4294901760
        %1001 = vmatpush1.msra.mxu0 %v1000
        %1002 = vmatprep.subr.mxu0 0.0
        %v1003 = vand.u32 %v464, 4294901760
        %1004 = vmatpush1.msra.mxu0 %v1003
        %1005 = vmatprep.subr.mxu0 0.0
        %v1006 = vand.u32 %v465, 4294901760
        %1007 = vmatpush1.msra.mxu0 %v1006
        %1008 = vmatprep.subr.mxu0 0.0
        %1009 = vmatpush1.msra.mxu0 0.0
        %1010 = vmatprep.subr.mxu0 0.0
        %1011 = vmatpush1.msra.mxu0 0.0
        %1012 = vmatprep.subr.mxu0 0.0
        %1013 = vmatpush1.msra.mxu0 0.0
        %1014 = vmatprep.subr.mxu0 0.0
        %1015 = vmatpush1.msra.mxu0 0.0
        %1016 = vmatprep.subr.mxu0 0.0
        %1017 = vmatpush1.msra.mxu0 0.0
        %1018 = vmatprep.subr.mxu0 0.0
        %1019 = vmatpush1.msra.mxu0 0.0
        %1020 = vmatprep.subr.mxu0 0.0
        %1021 = vmatpush1.msra.mxu0 0.0
        %1022 = vmatprep.subr.mxu0 0.0
        %1023 = vmatpush1.msra.mxu0 0.0
        %1024 = vmatprep.subr.mxu0 0.0
        %1025 = vmatpush1.msra.mxu0 0.0
        %1026 = vmatprep.subr.mxu0 0.0
        %1027 = vmatpush1.msra.mxu0 0.0
        %1028 = vmatprep.subr.mxu0 0.0
        %1029 = vmatpush1.msra.mxu0 0.0
        %1030 = vmatprep.subr.mxu0 0.0
        %1031 = vmatpush1.msra.mxu0 0.0
        %1032 = vmatprep.subr.mxu0 0.0
        %1033 = vmatpush1.msra.mxu0 0.0
        %1034 = vmatprep.subr.mxu0 0.0
        %1035 = vmatpush1.msra.mxu0 0.0
        %1036 = vmatprep.subr.mxu0 0.0
        %1037 = vmatpush1.msra.mxu0 0.0
        %1038 = vmatprep.subr.mxu0 0.0
        %1039 = vmatpush1.msra.mxu0 0.0
        %1040 = vmatprep.mubr.f32.mxu0 0.0
        %v1041 = vand.u32 %v958, 4294901760
        %v1042 = vsub.f32 %v958, %v1041
        %v1043 = vand.u32 %v1042, 4294901760
        %v1044 = vsub.f32 %v1042, %v1043
        %v1045 = vand.u32 %v1044, 4294901760
        %1046 = vmatmul.mubr.f32.gmra.mrb[0].mxu0 %v1045
        %v1047 = vpop.f32.mrb[0].mxu0
        %v1048 = vadd.f32 0.0, %v1047
        %v1049 = vpop.f32.mrb[0].mxu0
        %1050 = vdwg.mxu0
        %1051 = vmatprep.subr.mxu0 0.0
        %v1052 = vand.u32 %v450, 4294901760
        %v1053 = vsub.f32 %v450, %v1052
        %v1054 = vand.u32 %v1053, 4294901760
        %v1055 = vsub.f32 %v1053, %v1054
        %v1056 = vand.u32 %v1055, 4294901760
        %1057 = vmatpush1.msra.mxu0 %v1056
        %1058 = vmatprep.subr.mxu0 0.0
        %v1059 = vand.u32 %v451, 4294901760
        %v1060 = vsub.f32 %v451, %v1059
        %v1061 = vand.u32 %v1060, 4294901760
        %v1062 = vsub.f32 %v1060, %v1061
        %v1063 = vand.u32 %v1062, 4294901760
        %1064 = vmatpush1.msra.mxu0 %v1063
        %1065 = vmatprep.subr.mxu0 0.0
        %v1066 = vand.u32 %v452, 4294901760
        %v1067 = vsub.f32 %v452, %v1066
        %v1068 = vand.u32 %v1067, 4294901760
        %v1069 = vsub.f32 %v1067, %v1068
        %v1070 = vand.u32 %v1069, 4294901760
        %1071 = vmatpush1.msra.mxu0 %v1070
        %1072 = vmatprep.subr.mxu0 0.0
        %v1073 = vand.u32 %v453, 4294901760
        %v1074 = vsub.f32 %v453, %v1073
        %v1075 = vand.u32 %v1074, 4294901760
        %v1076 = vsub.f32 %v1074, %v1075
        %v1077 = vand.u32 %v1076, 4294901760
        %1078 = vmatpush1.msra.mxu0 %v1077
        %1079 = vmatprep.subr.mxu0 0.0
        %v1080 = vand.u32 %v454, 4294901760
        %v1081 = vsub.f32 %v454, %v1080
        %v1082 = vand.u32 %v1081, 4294901760
        %v1083 = vsub.f32 %v1081, %v1082
        %v1084 = vand.u32 %v1083, 4294901760
        %1085 = vmatpush1.msra.mxu0 %v1084
        %1086 = vmatprep.subr.mxu0 0.0
        %v1087 = vand.u32 %v455, 4294901760
        %v1088 = vsub.f32 %v455, %v1087
        %v1089 = vand.u32 %v1088, 4294901760
        %v1090 = vsub.f32 %v1088, %v1089
        %v1091 = vand.u32 %v1090, 4294901760
        %1092 = vmatpush1.msra.mxu0 %v1091
        %1093 = vmatprep.subr.mxu0 0.0
        %v1094 = vand.u32 %v456, 4294901760
        %v1095 = vsub.f32 %v456, %v1094
        %v1096 = vand.u32 %v1095, 4294901760
        %v1097 = vsub.f32 %v1095, %v1096
        %v1098 = vand.u32 %v1097, 4294901760
        %1099 = vmatpush1.msra.mxu0 %v1098
        %1100 = vmatprep.subr.mxu0 0.0
        %v1101 = vand.u32 %v457, 4294901760
        %v1102 = vsub.f32 %v457, %v1101
        %v1103 = vand.u32 %v1102, 4294901760
        %v1104 = vsub.f32 %v1102, %v1103
        %v1105 = vand.u32 %v1104, 4294901760
        %1106 = vmatpush1.msra.mxu0 %v1105
        %1107 = vmatprep.subr.mxu0 0.0
        %v1108 = vand.u32 %v458, 4294901760
        %v1109 = vsub.f32 %v458, %v1108
        %v1110 = vand.u32 %v1109, 4294901760
        %v1111 = vsub.f32 %v1109, %v1110
        %v1112 = vand.u32 %v1111, 4294901760
        %1113 = vmatpush1.msra.mxu0 %v1112
        %1114 = vmatprep.subr.mxu0 0.0
        %v1115 = vand.u32 %v459, 4294901760
        %v1116 = vsub.f32 %v459, %v1115
        %v1117 = vand.u32 %v1116, 4294901760
        %v1118 = vsub.f32 %v1116, %v1117
        %v1119 = vand.u32 %v1118, 4294901760
        %1120 = vmatpush1.msra.mxu0 %v1119
        %1121 = vmatprep.subr.mxu0 0.0
        %v1122 = vand.u32 %v460, 4294901760
        %v1123 = vsub.f32 %v460, %v1122
        %v1124 = vand.u32 %v1123, 4294901760
        %v1125 = vsub.f32 %v1123, %v1124
        %v1126 = vand.u32 %v1125, 4294901760
        %1127 = vmatpush1.msra.mxu0 %v1126
        %1128 = vmatprep.subr.mxu0 0.0
        %v1129 = vand.u32 %v461, 4294901760
        %v1130 = vsub.f32 %v461, %v1129
        %v1131 = vand.u32 %v1130, 4294901760
        %v1132 = vsub.f32 %v1130, %v1131
        %v1133 = vand.u32 %v1132, 4294901760
        %1134 = vmatpush1.msra.mxu0 %v1133
        %1135 = vmatprep.subr.mxu0 0.0
        %v1136 = vand.u32 %v462, 4294901760
        %v1137 = vsub.f32 %v462, %v1136
        %v1138 = vand.u32 %v1137, 4294901760
        %v1139 = vsub.f32 %v1137, %v1138
        %v1140 = vand.u32 %v1139, 4294901760
        %1141 = vmatpush1.msra.mxu0 %v1140
        %1142 = vmatprep.subr.mxu0 0.0
        %v1143 = vand.u32 %v463, 4294901760
        %v1144 = vsub.f32 %v463, %v1143
        %v1145 = vand.u32 %v1144, 4294901760
        %v1146 = vsub.f32 %v1144, %v1145
        %v1147 = vand.u32 %v1146, 4294901760
        %1148 = vmatpush1.msra.mxu0 %v1147
        %1149 = vmatprep.subr.mxu0 0.0
        %v1150 = vand.u32 %v464, 4294901760
        %v1151 = vsub.f32 %v464, %v1150
        %v1152 = vand.u32 %v1151, 4294901760
        %v1153 = vsub.f32 %v1151, %v1152
        %v1154 = vand.u32 %v1153, 4294901760
        %1155 = vmatpush1.msra.mxu0 %v1154
        %1156 = vmatprep.subr.mxu0 0.0
        %v1157 = vand.u32 %v465, 4294901760
        %v1158 = vsub.f32 %v465, %v1157
        %v1159 = vand.u32 %v1158, 4294901760
        %v1160 = vsub.f32 %v1158, %v1159
        %v1161 = vand.u32 %v1160, 4294901760
        %1162 = vmatpush1.msra.mxu0 %v1161
        %1163 = vmatprep.subr.mxu0 0.0
        %1164 = vmatpush1.msra.mxu0 0.0
        %1165 = vmatprep.subr.mxu0 0.0
        %1166 = vmatpush1.msra.mxu0 0.0
        %1167 = vmatprep.subr.mxu0 0.0
        %1168 = vmatpush1.msra.mxu0 0.0
        %1169 = vmatprep.subr.mxu0 0.0
        %1170 = vmatpush1.msra.mxu0 0.0
        %1171 = vmatprep.subr.mxu0 0.0
        %1172 = vmatpush1.msra.mxu0 0.0
        %1173 = vmatprep.subr.mxu0 0.0
        %1174 = vmatpush1.msra.mxu0 0.0
        %1175 = vmatprep.subr.mxu0 0.0
        %1176 = vmatpush1.msra.mxu0 0.0
        %1177 = vmatprep.subr.mxu0 0.0
        %1178 = vmatpush1.msra.mxu0 0.0
        %1179 = vmatprep.subr.mxu0 0.0
        %1180 = vmatpush1.msra.mxu0 0.0
        %1181 = vmatprep.subr.mxu0 0.0
        %1182 = vmatpush1.msra.mxu0 0.0
        %1183 = vmatprep.subr.mxu0 0.0
        %1184 = vmatpush1.msra.mxu0 0.0
        %1185 = vmatprep.subr.mxu0 0.0
        %1186 = vmatpush1.msra.mxu0 0.0
        %1187 = vmatprep.subr.mxu0 0.0
        %1188 = vmatpush1.msra.mxu0 0.0
        %1189 = vmatprep.subr.mxu0 0.0
        %1190 = vmatpush1.msra.mxu0 0.0
        %1191 = vmatprep.subr.mxu0 0.0
        %1192 = vmatpush1.msra.mxu0 0.0
        %1193 = vmatprep.subr.mxu0 0.0
        %1194 = vmatpush1.msra.mxu0 0.0
        %1195 = vmatprep.mubr.f32.mxu0 0.0
        %v1196 = vand.u32 %v958, 4294901760
        %1197 = vmatmul.mubr.f32.gmra.mrb[0].mxu0 %v1196
        %v1198 = vpop.f32.mrb[0].mxu0
        %v1199 = vadd.f32 %v1048, %v1198
        %v1200 = vpop.f32.mrb[0].mxu0
        %1201 = vdwg.mxu0
        %1202 = vmatprep.subr.mxu0 0.0
        %v1203 = vand.u32 %v450, 4294901760
        %v1204 = vsub.f32 %v450, %v1203
        %1205 = vmatpush1.msra.mxu0 %v1204
        %1206 = vmatprep.subr.mxu0 0.0
        %v1207 = vand.u32 %v451, 4294901760
        %v1208 = vsub.f32 %v451, %v1207
        %1209 = vmatpush1.msra.mxu0 %v1208
        %1210 = vmatprep.subr.mxu0 0.0
        %v1211 = vand.u32 %v452, 4294901760
        %v1212 = vsub.f32 %v452, %v1211
        %1213 = vmatpush1.msra.mxu0 %v1212
        %1214 = vmatprep.subr.mxu0 0.0
        %v1215 = vand.u32 %v453, 4294901760
        %v1216 = vsub.f32 %v453, %v1215
        %1217 = vmatpush1.msra.mxu0 %v1216
        %1218 = vmatprep.subr.mxu0 0.0
        %v1219 = vand.u32 %v454, 4294901760
        %v1220 = vsub.f32 %v454, %v1219
        %1221 = vmatpush1.msra.mxu0 %v1220
        %1222 = vmatprep.subr.mxu0 0.0
        %v1223 = vand.u32 %v455, 4294901760
        %v1224 = vsub.f32 %v455, %v1223
        %1225 = vmatpush1.msra.mxu0 %v1224
        %1226 = vmatprep.subr.mxu0 0.0
        %v1227 = vand.u32 %v456, 4294901760
        %v1228 = vsub.f32 %v456, %v1227
        %1229 = vmatpush1.msra.mxu0 %v1228
        %1230 = vmatprep.subr.mxu0 0.0
        %v1231 = vand.u32 %v457, 4294901760
        %v1232 = vsub.f32 %v457, %v1231
        %1233 = vmatpush1.msra.mxu0 %v1232
        %1234 = vmatprep.subr.mxu0 0.0
        %v1235 = vand.u32 %v458, 4294901760
        %v1236 = vsub.f32 %v458, %v1235
        %1237 = vmatpush1.msra.mxu0 %v1236
        %1238 = vmatprep.subr.mxu0 0.0
        %v1239 = vand.u32 %v459, 4294901760
        %v1240 = vsub.f32 %v459, %v1239
        %1241 = vmatpush1.msra.mxu0 %v1240
        %1242 = vmatprep.subr.mxu0 0.0
        %v1243 = vand.u32 %v460, 4294901760
        %v1244 = vsub.f32 %v460, %v1243
        %1245 = vmatpush1.msra.mxu0 %v1244
        %1246 = vmatprep.subr.mxu0 0.0
        %v1247 = vand.u32 %v461, 4294901760
        %v1248 = vsub.f32 %v461, %v1247
        %1249 = vmatpush1.msra.mxu0 %v1248
        %1250 = vmatprep.subr.mxu0 0.0
        %v1251 = vand.u32 %v462, 4294901760
        %v1252 = vsub.f32 %v462, %v1251
        %1253 = vmatpush1.msra.mxu0 %v1252
        %1254 = vmatprep.subr.mxu0 0.0
        %v1255 = vand.u32 %v463, 4294901760
        %v1256 = vsub.f32 %v463, %v1255
        %1257 = vmatpush1.msra.mxu0 %v1256
        %1258 = vmatprep.subr.mxu0 0.0
        %v1259 = vand.u32 %v464, 4294901760
        %v1260 = vsub.f32 %v464, %v1259
        %1261 = vmatpush1.msra.mxu0 %v1260
        %1262 = vmatprep.subr.mxu0 0.0
        %v1263 = vand.u32 %v465, 4294901760
        %v1264 = vsub.f32 %v465, %v1263
        %1265 = vmatpush1.msra.mxu0 %v1264
        %1266 = vmatprep.subr.mxu0 0.0
        %1267 = vmatpush1.msra.mxu0 0.0
        %1268 = vmatprep.subr.mxu0 0.0
        %1269 = vmatpush1.msra.mxu0 0.0
        %1270 = vmatprep.subr.mxu0 0.0
        %1271 = vmatpush1.msra.mxu0 0.0
        %1272 = vmatprep.subr.mxu0 0.0
        %1273 = vmatpush1.msra.mxu0 0.0
        %1274 = vmatprep.subr.mxu0 0.0
        %1275 = vmatpush1.msra.mxu0 0.0
        %1276 = vmatprep.subr.mxu0 0.0
        %1277 = vmatpush1.msra.mxu0 0.0
        %1278 = vmatprep.subr.mxu0 0.0
        %1279 = vmatpush1.msra.mxu0 0.0
        %1280 = vmatprep.subr.mxu0 0.0
        %1281 = vmatpush1.msra.mxu0 0.0
        %1282 = vmatprep.subr.mxu0 0.0
        %1283 = vmatpush1.msra.mxu0 0.0
        %1284 = vmatprep.subr.mxu0 0.0
        %1285 = vmatpush1.msra.mxu0 0.0
        %1286 = vmatprep.subr.mxu0 0.0
        %1287 = vmatpush1.msra.mxu0 0.0
        %1288 = vmatprep.subr.mxu0 0.0
        %1289 = vmatpush1.msra.mxu0 0.0
        %1290 = vmatprep.subr.mxu0 0.0
        %1291 = vmatpush1.msra.mxu0 0.0
        %1292 = vmatprep.subr.mxu0 0.0
        %1293 = vmatpush1.msra.mxu0 0.0
        %1294 = vmatprep.subr.mxu0 0.0
        %1295 = vmatpush1.msra.mxu0 0.0
        %1296 = vmatprep.subr.mxu0 0.0
        %1297 = vmatpush1.msra.mxu0 0.0
        %1298 = vmatprep.mubr.f32.mxu0 0.0
        %v1299 = vand.u32 %v958, 4294901760
        %v1300 = vsub.f32 %v958, %v1299
        %1301 = vmatmul.mubr.f32.gmra.mrb[0].mxu0 %v1300
        %v1302 = vpop.f32.mrb[0].mxu0
        %v1303 = vadd.f32 %v1199, %v1302
        %v1304 = vpop.f32.mrb[0].mxu0
        %1305 = vdwg.mxu0
        %1306 = vmatprep.subr.mxu0 0.0
        %v1307 = vand.u32 %v450, 4294901760
        %1308 = vmatpush1.msra.mxu0 %v1307
        %1309 = vmatprep.subr.mxu0 0.0
        %v1310 = vand.u32 %v451, 4294901760
        %1311 = vmatpush1.msra.mxu0 %v1310
        %1312 = vmatprep.subr.mxu0 0.0
        %v1313 = vand.u32 %v452, 4294901760
        %1314 = vmatpush1.msra.mxu0 %v1313
        %1315 = vmatprep.subr.mxu0 0.0
        %v1316 = vand.u32 %v453, 4294901760
        %1317 = vmatpush1.msra.mxu0 %v1316
        %1318 = vmatprep.subr.mxu0 0.0
        %v1319 = vand.u32 %v454, 4294901760
        %1320 = vmatpush1.msra.mxu0 %v1319
        %1321 = vmatprep.subr.mxu0 0.0
        %v1322 = vand.u32 %v455, 4294901760
        %1323 = vmatpush1.msra.mxu0 %v1322
        %1324 = vmatprep.subr.mxu0 0.0
        %v1325 = vand.u32 %v456, 4294901760
        %1326 = vmatpush1.msra.mxu0 %v1325
        %1327 = vmatprep.subr.mxu0 0.0
        %v1328 = vand.u32 %v457, 4294901760
        %1329 = vmatpush1.msra.mxu0 %v1328
        %1330 = vmatprep.subr.mxu0 0.0
        %v1331 = vand.u32 %v458, 4294901760
        %1332 = vmatpush1.msra.mxu0 %v1331
        %1333 = vmatprep.subr.mxu0 0.0
        %v1334 = vand.u32 %v459, 4294901760
        %1335 = vmatpush1.msra.mxu0 %v1334
        %1336 = vmatprep.subr.mxu0 0.0
        %v1337 = vand.u32 %v460, 4294901760
        %1338 = vmatpush1.msra.mxu0 %v1337
        %1339 = vmatprep.subr.mxu0 0.0
        %v1340 = vand.u32 %v461, 4294901760
        %1341 = vmatpush1.msra.mxu0 %v1340
        %1342 = vmatprep.subr.mxu0 0.0
        %v1343 = vand.u32 %v462, 4294901760
        %1344 = vmatpush1.msra.mxu0 %v1343
        %1345 = vmatprep.subr.mxu0 0.0
        %v1346 = vand.u32 %v463, 4294901760
        %1347 = vmatpush1.msra.mxu0 %v1346
        %1348 = vmatprep.subr.mxu0 0.0
        %v1349 = vand.u32 %v464, 4294901760
        %1350 = vmatpush1.msra.mxu0 %v1349
        %1351 = vmatprep.subr.mxu0 0.0
        %v1352 = vand.u32 %v465, 4294901760
        %1353 = vmatpush1.msra.mxu0 %v1352
        %1354 = vmatprep.subr.mxu0 0.0
        %1355 = vmatpush1.msra.mxu0 0.0
        %1356 = vmatprep.subr.mxu0 0.0
        %1357 = vmatpush1.msra.mxu0 0.0
        %1358 = vmatprep.subr.mxu0 0.0
        %1359 = vmatpush1.msra.mxu0 0.0
        %1360 = vmatprep.subr.mxu0 0.0
        %1361 = vmatpush1.msra.mxu0 0.0
        %1362 = vmatprep.subr.mxu0 0.0
        %1363 = vmatpush1.msra.mxu0 0.0
        %1364 = vmatprep.subr.mxu0 0.0
        %1365 = vmatpush1.msra.mxu0 0.0
        %1366 = vmatprep.subr.mxu0 0.0
        %1367 = vmatpush1.msra.mxu0 0.0
        %1368 = vmatprep.subr.mxu0 0.0
        %1369 = vmatpush1.msra.mxu0 0.0
        %1370 = vmatprep.subr.mxu0 0.0
        %1371 = vmatpush1.msra.mxu0 0.0
        %1372 = vmatprep.subr.mxu0 0.0
        %1373 = vmatpush1.msra.mxu0 0.0
        %1374 = vmatprep.subr.mxu0 0.0
        %1375 = vmatpush1.msra.mxu0 0.0
        %1376 = vmatprep.subr.mxu0 0.0
        %1377 = vmatpush1.msra.mxu0 0.0
        %1378 = vmatprep.subr.mxu0 0.0
        %1379 = vmatpush1.msra.mxu0 0.0
        %1380 = vmatprep.subr.mxu0 0.0
        %1381 = vmatpush1.msra.mxu0 0.0
        %1382 = vmatprep.subr.mxu0 0.0
        %1383 = vmatpush1.msra.mxu0 0.0
        %1384 = vmatprep.subr.mxu0 0.0
        %1385 = vmatpush1.msra.mxu0 0.0
        %1386 = vmatprep.mubr.f32.mxu0 0.0
        %v1387 = vand.u32 %v958, 4294901760
        %v1388 = vsub.f32 %v958, %v1387
        %v1389 = vand.u32 %v1388, 4294901760
        %1390 = vmatmul.mubr.f32.gmra.mrb[0].mxu0 %v1389
        %v1391 = vpop.f32.mrb[0].mxu0
        %v1392 = vadd.f32 %v1303, %v1391
        %v1393 = vpop.f32.mrb[0].mxu0
        %1394 = vdwg.mxu0
        %1395 = vmatprep.subr.mxu0 0.0
        %v1396 = vand.u32 %v450, 4294901760
        %v1397 = vsub.f32 %v450, %v1396
        %v1398 = vand.u32 %v1397, 4294901760
        %1399 = vmatpush1.msra.mxu0 %v1398
        %1400 = vmatprep.subr.mxu0 0.0
        %v1401 = vand.u32 %v451, 4294901760
        %v1402 = vsub.f32 %v451, %v1401
        %v1403 = vand.u32 %v1402, 4294901760
        %1404 = vmatpush1.msra.mxu0 %v1403
        %1405 = vmatprep.subr.mxu0 0.0
        %v1406 = vand.u32 %v452, 4294901760
        %v1407 = vsub.f32 %v452, %v1406
        %v1408 = vand.u32 %v1407, 4294901760
        %1409 = vmatpush1.msra.mxu0 %v1408
        %1410 = vmatprep.subr.mxu0 0.0
        %v1411 = vand.u32 %v453, 4294901760
        %v1412 = vsub.f32 %v453, %v1411
        %v1413 = vand.u32 %v1412, 4294901760
        %1414 = vmatpush1.msra.mxu0 %v1413
        %1415 = vmatprep.subr.mxu0 0.0
        %v1416 = vand.u32 %v454, 4294901760
        %v1417 = vsub.f32 %v454, %v1416
        %v1418 = vand.u32 %v1417, 4294901760
        %1419 = vmatpush1.msra.mxu0 %v1418
        %1420 = vmatprep.subr.mxu0 0.0
        %v1421 = vand.u32 %v455, 4294901760
        %v1422 = vsub.f32 %v455, %v1421
        %v1423 = vand.u32 %v1422, 4294901760
        %1424 = vmatpush1.msra.mxu0 %v1423
        %1425 = vmatprep.subr.mxu0 0.0
        %v1426 = vand.u32 %v456, 4294901760
        %v1427 = vsub.f32 %v456, %v1426
        %v1428 = vand.u32 %v1427, 4294901760
        %1429 = vmatpush1.msra.mxu0 %v1428
        %1430 = vmatprep.subr.mxu0 0.0
        %v1431 = vand.u32 %v457, 4294901760
        %v1432 = vsub.f32 %v457, %v1431
        %v1433 = vand.u32 %v1432, 4294901760
        %1434 = vmatpush1.msra.mxu0 %v1433
        %1435 = vmatprep.subr.mxu0 0.0
        %v1436 = vand.u32 %v458, 4294901760
        %v1437 = vsub.f32 %v458, %v1436
        %v1438 = vand.u32 %v1437, 4294901760
        %1439 = vmatpush1.msra.mxu0 %v1438
        %1440 = vmatprep.subr.mxu0 0.0
        %v1441 = vand.u32 %v459, 4294901760
        %v1442 = vsub.f32 %v459, %v1441
        %v1443 = vand.u32 %v1442, 4294901760
        %1444 = vmatpush1.msra.mxu0 %v1443
        %1445 = vmatprep.subr.mxu0 0.0
        %v1446 = vand.u32 %v460, 4294901760
        %v1447 = vsub.f32 %v460, %v1446
        %v1448 = vand.u32 %v1447, 4294901760
        %1449 = vmatpush1.msra.mxu0 %v1448
        %1450 = vmatprep.subr.mxu0 0.0
        %v1451 = vand.u32 %v461, 4294901760
        %v1452 = vsub.f32 %v461, %v1451
        %v1453 = vand.u32 %v1452, 4294901760
        %1454 = vmatpush1.msra.mxu0 %v1453
        %1455 = vmatprep.subr.mxu0 0.0
        %v1456 = vand.u32 %v462, 4294901760
        %v1457 = vsub.f32 %v462, %v1456
        %v1458 = vand.u32 %v1457, 4294901760
        %1459 = vmatpush1.msra.mxu0 %v1458
        %1460 = vmatprep.subr.mxu0 0.0
        %v1461 = vand.u32 %v463, 4294901760
        %v1462 = vsub.f32 %v463, %v1461
        %v1463 = vand.u32 %v1462, 4294901760
        %1464 = vmatpush1.msra.mxu0 %v1463
        %1465 = vmatprep.subr.mxu0 0.0
        %v1466 = vand.u32 %v464, 4294901760
        %v1467 = vsub.f32 %v464, %v1466
        %v1468 = vand.u32 %v1467, 4294901760
        %1469 = vmatpush1.msra.mxu0 %v1468
        %1470 = vmatprep.subr.mxu0 0.0
        %v1471 = vand.u32 %v465, 4294901760
        %v1472 = vsub.f32 %v465, %v1471
        %v1473 = vand.u32 %v1472, 4294901760
        %1474 = vmatpush1.msra.mxu0 %v1473
        %1475 = vmatprep.subr.mxu0 0.0
        %1476 = vmatpush1.msra.mxu0 0.0
        %1477 = vmatprep.subr.mxu0 0.0
        %1478 = vmatpush1.msra.mxu0 0.0
        %1479 = vmatprep.subr.mxu0 0.0
        %1480 = vmatpush1.msra.mxu0 0.0
        %1481 = vmatprep.subr.mxu0 0.0
        %1482 = vmatpush1.msra.mxu0 0.0
        %1483 = vmatprep.subr.mxu0 0.0
        %1484 = vmatpush1.msra.mxu0 0.0
        %1485 = vmatprep.subr.mxu0 0.0
        %1486 = vmatpush1.msra.mxu0 0.0
        %1487 = vmatprep.subr.mxu0 0.0
        %1488 = vmatpush1.msra.mxu0 0.0
        %1489 = vmatprep.subr.mxu0 0.0
        %1490 = vmatpush1.msra.mxu0 0.0
        %1491 = vmatprep.subr.mxu0 0.0
        %1492 = vmatpush1.msra.mxu0 0.0
        %1493 = vmatprep.subr.mxu0 0.0
        %1494 = vmatpush1.msra.mxu0 0.0
        %1495 = vmatprep.subr.mxu0 0.0
        %1496 = vmatpush1.msra.mxu0 0.0
        %1497 = vmatprep.subr.mxu0 0.0
        %1498 = vmatpush1.msra.mxu0 0.0
        %1499 = vmatprep.subr.mxu0 0.0
        %1500 = vmatpush1.msra.mxu0 0.0
        %1501 = vmatprep.subr.mxu0 0.0
        %1502 = vmatpush1.msra.mxu0 0.0
        %1503 = vmatprep.subr.mxu0 0.0
        %1504 = vmatpush1.msra.mxu0 0.0
        %1505 = vmatprep.subr.mxu0 0.0
        %1506 = vmatpush1.msra.mxu0 0.0
        %1507 = vmatprep.mubr.f32.mxu0 0.0
        %v1508 = vand.u32 %v958, 4294901760
        %1509 = vmatmul.mubr.f32.gmra.mrb[0].mxu0 %v1508
        %v1510 = vpop.f32.mrb[0].mxu0
        %v1511 = vadd.f32 %v1392, %v1510
        %v1512 = vpop.f32.mrb[0].mxu0
        %1513 = vdwg.mxu0
        %1514 = vmatprep.subr.mxu0 0.0
        %v1515 = vand.u32 %v450, 4294901760
        %1516 = vmatpush1.msra.mxu0 %v1515
        %1517 = vmatprep.subr.mxu0 0.0
        %v1518 = vand.u32 %v451, 4294901760
        %1519 = vmatpush1.msra.mxu0 %v1518
        %1520 = vmatprep.subr.mxu0 0.0
        %v1521 = vand.u32 %v452, 4294901760
        %1522 = vmatpush1.msra.mxu0 %v1521
        %1523 = vmatprep.subr.mxu0 0.0
        %v1524 = vand.u32 %v453, 4294901760
        %1525 = vmatpush1.msra.mxu0 %v1524
        %1526 = vmatprep.subr.mxu0 0.0
        %v1527 = vand.u32 %v454, 4294901760
        %1528 = vmatpush1.msra.mxu0 %v1527
        %1529 = vmatprep.subr.mxu0 0.0
        %v1530 = vand.u32 %v455, 4294901760
        %1531 = vmatpush1.msra.mxu0 %v1530
        %1532 = vmatprep.subr.mxu0 0.0
        %v1533 = vand.u32 %v456, 4294901760
        %1534 = vmatpush1.msra.mxu0 %v1533
        %1535 = vmatprep.subr.mxu0 0.0
        %v1536 = vand.u32 %v457, 4294901760
        %1537 = vmatpush1.msra.mxu0 %v1536
        %1538 = vmatprep.subr.mxu0 0.0
        %v1539 = vand.u32 %v458, 4294901760
        %1540 = vmatpush1.msra.mxu0 %v1539
        %1541 = vmatprep.subr.mxu0 0.0
        %v1542 = vand.u32 %v459, 4294901760
        %1543 = vmatpush1.msra.mxu0 %v1542
        %1544 = vmatprep.subr.mxu0 0.0
        %v1545 = vand.u32 %v460, 4294901760
        %1546 = vmatpush1.msra.mxu0 %v1545
        %1547 = vmatprep.subr.mxu0 0.0
        %v1548 = vand.u32 %v461, 4294901760
        %1549 = vmatpush1.msra.mxu0 %v1548
        %1550 = vmatprep.subr.mxu0 0.0
        %v1551 = vand.u32 %v462, 4294901760
        %1552 = vmatpush1.msra.mxu0 %v1551
        %1553 = vmatprep.subr.mxu0 0.0
        %v1554 = vand.u32 %v463, 4294901760
        %1555 = vmatpush1.msra.mxu0 %v1554
        %1556 = vmatprep.subr.mxu0 0.0
        %v1557 = vand.u32 %v464, 4294901760
        %1558 = vmatpush1.msra.mxu0 %v1557
        %1559 = vmatprep.subr.mxu0 0.0
        %v1560 = vand.u32 %v465, 4294901760
        %1561 = vmatpush1.msra.mxu0 %v1560
        %1562 = vmatprep.subr.mxu0 0.0
        %1563 = vmatpush1.msra.mxu0 0.0
        %1564 = vmatprep.subr.mxu0 0.0
        %1565 = vmatpush1.msra.mxu0 0.0
        %1566 = vmatprep.subr.mxu0 0.0
        %1567 = vmatpush1.msra.mxu0 0.0
        %1568 = vmatprep.subr.mxu0 0.0
        %1569 = vmatpush1.msra.mxu0 0.0
        %1570 = vmatprep.subr.mxu0 0.0
        %1571 = vmatpush1.msra.mxu0 0.0
        %1572 = vmatprep.subr.mxu0 0.0
        %1573 = vmatpush1.msra.mxu0 0.0
        %1574 = vmatprep.subr.mxu0 0.0
        %1575 = vmatpush1.msra.mxu0 0.0
        %1576 = vmatprep.subr.mxu0 0.0
        %1577 = vmatpush1.msra.mxu0 0.0
        %1578 = vmatprep.subr.mxu0 0.0
        %1579 = vmatpush1.msra.mxu0 0.0
        %1580 = vmatprep.subr.mxu0 0.0
        %1581 = vmatpush1.msra.mxu0 0.0
        %1582 = vmatprep.subr.mxu0 0.0
        %1583 = vmatpush1.msra.mxu0 0.0
        %1584 = vmatprep.subr.mxu0 0.0
        %1585 = vmatpush1.msra.mxu0 0.0
        %1586 = vmatprep.subr.mxu0 0.0
        %1587 = vmatpush1.msra.mxu0 0.0
        %1588 = vmatprep.subr.mxu0 0.0
        %1589 = vmatpush1.msra.mxu0 0.0
        %1590 = vmatprep.subr.mxu0 0.0
        %1591 = vmatpush1.msra.mxu0 0.0
        %1592 = vmatprep.subr.mxu0 0.0
        %1593 = vmatpush1.msra.mxu0 0.0
        %1594 = vmatprep.mubr.f32.mxu0 0.0
        %v1595 = vand.u32 %v958, 4294901760
        %1596 = vmatmul.mubr.f32.gmra.mrb[0].mxu0 %v1595
        %v1597 = vpop.f32.mrb[0].mxu0
        %v1598 = vadd.f32 %v1511, %v1597
        %v1599 = vpop.f32.mrb[0].mxu0
        %1600 = vdwg.mxu0
        %1601 = vmatprep.subr.mxu0 0.0
        %v1602 = vand.u32 %v450, 4294901760
        %1603 = vmatpush1.msra.mxu0 %v1602
        %1604 = vmatprep.subr.mxu0 0.0
        %v1605 = vand.u32 %v451, 4294901760
        %1606 = vmatpush1.msra.mxu0 %v1605
        %1607 = vmatprep.subr.mxu0 0.0
        %v1608 = vand.u32 %v452, 4294901760
        %1609 = vmatpush1.msra.mxu0 %v1608
        %1610 = vmatprep.subr.mxu0 0.0
        %v1611 = vand.u32 %v453, 4294901760
        %1612 = vmatpush1.msra.mxu0 %v1611
        %1613 = vmatprep.subr.mxu0 0.0
        %v1614 = vand.u32 %v454, 4294901760
        %1615 = vmatpush1.msra.mxu0 %v1614
        %1616 = vmatprep.subr.mxu0 0.0
        %v1617 = vand.u32 %v455, 4294901760
        %1618 = vmatpush1.msra.mxu0 %v1617
        %1619 = vmatprep.subr.mxu0 0.0
        %v1620 = vand.u32 %v456, 4294901760
        %1621 = vmatpush1.msra.mxu0 %v1620
        %1622 = vmatprep.subr.mxu0 0.0
        %v1623 = vand.u32 %v457, 4294901760
        %1624 = vmatpush1.msra.mxu0 %v1623
        %1625 = vmatprep.subr.mxu0 0.0
        %v1626 = vand.u32 %v458, 4294901760
        %1627 = vmatpush1.msra.mxu0 %v1626
        %1628 = vmatprep.subr.mxu0 0.0
        %v1629 = vand.u32 %v459, 4294901760
        %1630 = vmatpush1.msra.mxu0 %v1629
        %1631 = vmatprep.subr.mxu0 0.0
        %v1632 = vand.u32 %v460, 4294901760
        %1633 = vmatpush1.msra.mxu0 %v1632
        %1634 = vmatprep.subr.mxu0 0.0
        %v1635 = vand.u32 %v461, 4294901760
        %1636 = vmatpush1.msra.mxu0 %v1635
        %1637 = vmatprep.subr.mxu0 0.0
        %v1638 = vand.u32 %v462, 4294901760
        %1639 = vmatpush1.msra.mxu0 %v1638
        %1640 = vmatprep.subr.mxu0 0.0
        %v1641 = vand.u32 %v463, 4294901760
        %1642 = vmatpush1.msra.mxu0 %v1641
        %1643 = vmatprep.subr.mxu0 0.0
        %v1644 = vand.u32 %v464, 4294901760
        %1645 = vmatpush1.msra.mxu0 %v1644
        %1646 = vmatprep.subr.mxu0 0.0
        %v1647 = vand.u32 %v465, 4294901760
        %1648 = vmatpush1.msra.mxu0 %v1647
        %1649 = vmatprep.subr.mxu0 0.0
        %1650 = vmatpush1.msra.mxu0 0.0
        %1651 = vmatprep.subr.mxu0 0.0
        %1652 = vmatpush1.msra.mxu0 0.0
        %1653 = vmatprep.subr.mxu0 0.0
        %1654 = vmatpush1.msra.mxu0 0.0
        %1655 = vmatprep.subr.mxu0 0.0
        %1656 = vmatpush1.msra.mxu0 0.0
        %1657 = vmatprep.subr.mxu0 0.0
        %1658 = vmatpush1.msra.mxu0 0.0
        %1659 = vmatprep.subr.mxu0 0.0
        %1660 = vmatpush1.msra.mxu0 0.0
        %1661 = vmatprep.subr.mxu0 0.0
        %1662 = vmatpush1.msra.mxu0 0.0
        %1663 = vmatprep.subr.mxu0 0.0
        %1664 = vmatpush1.msra.mxu0 0.0
        %1665 = vmatprep.subr.mxu0 0.0
        %1666 = vmatpush1.msra.mxu0 0.0
        %1667 = vmatprep.subr.mxu0 0.0
        %1668 = vmatpush1.msra.mxu0 0.0
        %1669 = vmatprep.subr.mxu0 0.0
        %1670 = vmatpush1.msra.mxu0 0.0
        %1671 = vmatprep.subr.mxu0 0.0
        %1672 = vmatpush1.msra.mxu0 0.0
        %1673 = vmatprep.subr.mxu0 0.0
        %1674 = vmatpush1.msra.mxu0 0.0
        %1675 = vmatprep.subr.mxu0 0.0
        %1676 = vmatpush1.msra.mxu0 0.0
        %1677 = vmatprep.subr.mxu0 0.0
        %1678 = vmatpush1.msra.mxu0 0.0
        %1679 = vmatprep.subr.mxu0 0.0
        %1680 = vmatpush1.msra.mxu0 0.0
        %1681 = vmatprep.mubr.f32.mxu0 0.0
        %v1682 = vand.u32 %v959, 4294901760
        %v1683 = vsub.f32 %v959, %v1682
        %v1684 = vand.u32 %v1683, 4294901760
        %v1685 = vsub.f32 %v1683, %v1684
        %v1686 = vand.u32 %v1685, 4294901760
        %1687 = vmatmul.mubr.f32.gmra.mrb[0].mxu0 %v1686
        %v1688 = vpop.f32.mrb[0].mxu0
        %v1689 = vadd.f32 0.0, %v1688
        %v1690 = vpop.f32.mrb[0].mxu0
        %1691 = vdwg.mxu0
        %1692 = vmatprep.subr.mxu0 0.0
        %v1693 = vand.u32 %v450, 4294901760
        %v1694 = vsub.f32 %v450, %v1693
        %v1695 = vand.u32 %v1694, 4294901760
        %v1696 = vsub.f32 %v1694, %v1695
        %v1697 = vand.u32 %v1696, 4294901760
        %1698 = vmatpush1.msra.mxu0 %v1697
        %1699 = vmatprep.subr.mxu0 0.0
        %v1700 = vand.u32 %v451, 4294901760
        %v1701 = vsub.f32 %v451, %v1700
        %v1702 = vand.u32 %v1701, 4294901760
        %v1703 = vsub.f32 %v1701, %v1702
        %v1704 = vand.u32 %v1703, 4294901760
        %1705 = vmatpush1.msra.mxu0 %v1704
        %1706 = vmatprep.subr.mxu0 0.0
        %v1707 = vand.u32 %v452, 4294901760
        %v1708 = vsub.f32 %v452, %v1707
        %v1709 = vand.u32 %v1708, 4294901760
        %v1710 = vsub.f32 %v1708, %v1709
        %v1711 = vand.u32 %v1710, 4294901760
        %1712 = vmatpush1.msra.mxu0 %v1711
        %1713 = vmatprep.subr.mxu0 0.0
        %v1714 = vand.u32 %v453, 4294901760
        %v1715 = vsub.f32 %v453, %v1714
        %v1716 = vand.u32 %v1715, 4294901760
        %v1717 = vsub.f32 %v1715, %v1716
        %v1718 = vand.u32 %v1717, 4294901760
        %1719 = vmatpush1.msra.mxu0 %v1718
        %1720 = vmatprep.subr.mxu0 0.0
        %v1721 = vand.u32 %v454, 4294901760
        %v1722 = vsub.f32 %v454, %v1721
        %v1723 = vand.u32 %v1722, 4294901760
        %v1724 = vsub.f32 %v1722, %v1723
        %v1725 = vand.u32 %v1724, 4294901760
        %1726 = vmatpush1.msra.mxu0 %v1725
        %1727 = vmatprep.subr.mxu0 0.0
        %v1728 = vand.u32 %v455, 4294901760
        %v1729 = vsub.f32 %v455, %v1728
        %v1730 = vand.u32 %v1729, 4294901760
        %v1731 = vsub.f32 %v1729, %v1730
        %v1732 = vand.u32 %v1731, 4294901760
        %1733 = vmatpush1.msra.mxu0 %v1732
        %1734 = vmatprep.subr.mxu0 0.0
        %v1735 = vand.u32 %v456, 4294901760
        %v1736 = vsub.f32 %v456, %v1735
        %v1737 = vand.u32 %v1736, 4294901760
        %v1738 = vsub.f32 %v1736, %v1737
        %v1739 = vand.u32 %v1738, 4294901760
        %1740 = vmatpush1.msra.mxu0 %v1739
        %1741 = vmatprep.subr.mxu0 0.0
        %v1742 = vand.u32 %v457, 4294901760
        %v1743 = vsub.f32 %v457, %v1742
        %v1744 = vand.u32 %v1743, 4294901760
        %v1745 = vsub.f32 %v1743, %v1744
        %v1746 = vand.u32 %v1745, 4294901760
        %1747 = vmatpush1.msra.mxu0 %v1746
        %1748 = vmatprep.subr.mxu0 0.0
        %v1749 = vand.u32 %v458, 4294901760
        %v1750 = vsub.f32 %v458, %v1749
        %v1751 = vand.u32 %v1750, 4294901760
        %v1752 = vsub.f32 %v1750, %v1751
        %v1753 = vand.u32 %v1752, 4294901760
        %1754 = vmatpush1.msra.mxu0 %v1753
        %1755 = vmatprep.subr.mxu0 0.0
        %v1756 = vand.u32 %v459, 4294901760
        %v1757 = vsub.f32 %v459, %v1756
        %v1758 = vand.u32 %v1757, 4294901760
        %v1759 = vsub.f32 %v1757, %v1758
        %v1760 = vand.u32 %v1759, 4294901760
        %1761 = vmatpush1.msra.mxu0 %v1760
        %1762 = vmatprep.subr.mxu0 0.0
        %v1763 = vand.u32 %v460, 4294901760
        %v1764 = vsub.f32 %v460, %v1763
        %v1765 = vand.u32 %v1764, 4294901760
        %v1766 = vsub.f32 %v1764, %v1765
        %v1767 = vand.u32 %v1766, 4294901760
        %1768 = vmatpush1.msra.mxu0 %v1767
        %1769 = vmatprep.subr.mxu0 0.0
        %v1770 = vand.u32 %v461, 4294901760
        %v1771 = vsub.f32 %v461, %v1770
        %v1772 = vand.u32 %v1771, 4294901760
        %v1773 = vsub.f32 %v1771, %v1772
        %v1774 = vand.u32 %v1773, 4294901760
        %1775 = vmatpush1.msra.mxu0 %v1774
        %1776 = vmatprep.subr.mxu0 0.0
        %v1777 = vand.u32 %v462, 4294901760
        %v1778 = vsub.f32 %v462, %v1777
        %v1779 = vand.u32 %v1778, 4294901760
        %v1780 = vsub.f32 %v1778, %v1779
        %v1781 = vand.u32 %v1780, 4294901760
        %1782 = vmatpush1.msra.mxu0 %v1781
        %1783 = vmatprep.subr.mxu0 0.0
        %v1784 = vand.u32 %v463, 4294901760
        %v1785 = vsub.f32 %v463, %v1784
        %v1786 = vand.u32 %v1785, 4294901760
        %v1787 = vsub.f32 %v1785, %v1786
        %v1788 = vand.u32 %v1787, 4294901760
        %1789 = vmatpush1.msra.mxu0 %v1788
        %1790 = vmatprep.subr.mxu0 0.0
        %v1791 = vand.u32 %v464, 4294901760
        %v1792 = vsub.f32 %v464, %v1791
        %v1793 = vand.u32 %v1792, 4294901760
        %v1794 = vsub.f32 %v1792, %v1793
        %v1795 = vand.u32 %v1794, 4294901760
        %1796 = vmatpush1.msra.mxu0 %v1795
        %1797 = vmatprep.subr.mxu0 0.0
        %v1798 = vand.u32 %v465, 4294901760
        %v1799 = vsub.f32 %v465, %v1798
        %v1800 = vand.u32 %v1799, 4294901760
        %v1801 = vsub.f32 %v1799, %v1800
        %v1802 = vand.u32 %v1801, 4294901760
        %1803 = vmatpush1.msra.mxu0 %v1802
        %1804 = vmatprep.subr.mxu0 0.0
        %1805 = vmatpush1.msra.mxu0 0.0
        %1806 = vmatprep.subr.mxu0 0.0
        %1807 = vmatpush1.msra.mxu0 0.0
        %1808 = vmatprep.subr.mxu0 0.0
        %1809 = vmatpush1.msra.mxu0 0.0
        %1810 = vmatprep.subr.mxu0 0.0
        %1811 = vmatpush1.msra.mxu0 0.0
        %1812 = vmatprep.subr.mxu0 0.0
        %1813 = vmatpush1.msra.mxu0 0.0
        %1814 = vmatprep.subr.mxu0 0.0
        %1815 = vmatpush1.msra.mxu0 0.0
        %1816 = vmatprep.subr.mxu0 0.0
        %1817 = vmatpush1.msra.mxu0 0.0
        %1818 = vmatprep.subr.mxu0 0.0
        %1819 = vmatpush1.msra.mxu0 0.0
        %1820 = vmatprep.subr.mxu0 0.0
        %1821 = vmatpush1.msra.mxu0 0.0
        %1822 = vmatprep.subr.mxu0 0.0
        %1823 = vmatpush1.msra.mxu0 0.0
        %1824 = vmatprep.subr.mxu0 0.0
        %1825 = vmatpush1.msra.mxu0 0.0
        %1826 = vmatprep.subr.mxu0 0.0
        %1827 = vmatpush1.msra.mxu0 0.0
        %1828 = vmatprep.subr.mxu0 0.0
        %1829 = vmatpush1.msra.mxu0 0.0
        %1830 = vmatprep.subr.mxu0 0.0
        %1831 = vmatpush1.msra.mxu0 0.0
        %1832 = vmatprep.subr.mxu0 0.0
        %1833 = vmatpush1.msra.mxu0 0.0
        %1834 = vmatprep.subr.mxu0 0.0
        %1835 = vmatpush1.msra.mxu0 0.0
        %1836 = vmatprep.mubr.f32.mxu0 0.0
        %v1837 = vand.u32 %v959, 4294901760
        %1838 = vmatmul.mubr.f32.gmra.mrb[0].mxu0 %v1837
        %v1839 = vpop.f32.mrb[0].mxu0
        %v1840 = vadd.f32 %v1689, %v1839
        %v1841 = vpop.f32.mrb[0].mxu0
        %1842 = vdwg.mxu0
        %1843 = vmatprep.subr.mxu0 0.0
        %v1844 = vand.u32 %v450, 4294901760
        %v1845 = vsub.f32 %v450, %v1844
        %1846 = vmatpush1.msra.mxu0 %v1845
        %1847 = vmatprep.subr.mxu0 0.0
        %v1848 = vand.u32 %v451, 4294901760
        %v1849 = vsub.f32 %v451, %v1848
        %1850 = vmatpush1.msra.mxu0 %v1849
        %1851 = vmatprep.subr.mxu0 0.0
        %v1852 = vand.u32 %v452, 4294901760
        %v1853 = vsub.f32 %v452, %v1852
        %1854 = vmatpush1.msra.mxu0 %v1853
        %1855 = vmatprep.subr.mxu0 0.0
        %v1856 = vand.u32 %v453, 4294901760
        %v1857 = vsub.f32 %v453, %v1856
        %1858 = vmatpush1.msra.mxu0 %v1857
        %1859 = vmatprep.subr.mxu0 0.0
        %v1860 = vand.u32 %v454, 4294901760
        %v1861 = vsub.f32 %v454, %v1860
        %1862 = vmatpush1.msra.mxu0 %v1861
        %1863 = vmatprep.subr.mxu0 0.0
        %v1864 = vand.u32 %v455, 4294901760
        %v1865 = vsub.f32 %v455, %v1864
        %1866 = vmatpush1.msra.mxu0 %v1865
        %1867 = vmatprep.subr.mxu0 0.0
        %v1868 = vand.u32 %v456, 4294901760
        %v1869 = vsub.f32 %v456, %v1868
        %1870 = vmatpush1.msra.mxu0 %v1869
        %1871 = vmatprep.subr.mxu0 0.0
        %v1872 = vand.u32 %v457, 4294901760
        %v1873 = vsub.f32 %v457, %v1872
        %1874 = vmatpush1.msra.mxu0 %v1873
        %1875 = vmatprep.subr.mxu0 0.0
        %v1876 = vand.u32 %v458, 4294901760
        %v1877 = vsub.f32 %v458, %v1876
        %1878 = vmatpush1.msra.mxu0 %v1877
        %1879 = vmatprep.subr.mxu0 0.0
        %v1880 = vand.u32 %v459, 4294901760
        %v1881 = vsub.f32 %v459, %v1880
        %1882 = vmatpush1.msra.mxu0 %v1881
        %1883 = vmatprep.subr.mxu0 0.0
        %v1884 = vand.u32 %v460, 4294901760
        %v1885 = vsub.f32 %v460, %v1884
        %1886 = vmatpush1.msra.mxu0 %v1885
        %1887 = vmatprep.subr.mxu0 0.0
        %v1888 = vand.u32 %v461, 4294901760
        %v1889 = vsub.f32 %v461, %v1888
        %1890 = vmatpush1.msra.mxu0 %v1889
        %1891 = vmatprep.subr.mxu0 0.0
        %v1892 = vand.u32 %v462, 4294901760
        %v1893 = vsub.f32 %v462, %v1892
        %1894 = vmatpush1.msra.mxu0 %v1893
        %1895 = vmatprep.subr.mxu0 0.0
        %v1896 = vand.u32 %v463, 4294901760
        %v1897 = vsub.f32 %v463, %v1896
        %1898 = vmatpush1.msra.mxu0 %v1897
        %1899 = vmatprep.subr.mxu0 0.0
        %v1900 = vand.u32 %v464, 4294901760
        %v1901 = vsub.f32 %v464, %v1900
        %1902 = vmatpush1.msra.mxu0 %v1901
        %1903 = vmatprep.subr.mxu0 0.0
        %v1904 = vand.u32 %v465, 4294901760
        %v1905 = vsub.f32 %v465, %v1904
        %1906 = vmatpush1.msra.mxu0 %v1905
        %1907 = vmatprep.subr.mxu0 0.0
        %1908 = vmatpush1.msra.mxu0 0.0
        %1909 = vmatprep.subr.mxu0 0.0
        %1910 = vmatpush1.msra.mxu0 0.0
        %1911 = vmatprep.subr.mxu0 0.0
        %1912 = vmatpush1.msra.mxu0 0.0
        %1913 = vmatprep.subr.mxu0 0.0
        %1914 = vmatpush1.msra.mxu0 0.0
        %1915 = vmatprep.subr.mxu0 0.0
        %1916 = vmatpush1.msra.mxu0 0.0
        %1917 = vmatprep.subr.mxu0 0.0
        %1918 = vmatpush1.msra.mxu0 0.0
        %1919 = vmatprep.subr.mxu0 0.0
        %1920 = vmatpush1.msra.mxu0 0.0
        %1921 = vmatprep.subr.mxu0 0.0
        %1922 = vmatpush1.msra.mxu0 0.0
        %1923 = vmatprep.subr.mxu0 0.0
        %1924 = vmatpush1.msra.mxu0 0.0
        %1925 = vmatprep.subr.mxu0 0.0
        %1926 = vmatpush1.msra.mxu0 0.0
        %1927 = vmatprep.subr.mxu0 0.0
        %1928 = vmatpush1.msra.mxu0 0.0
        %1929 = vmatprep.subr.mxu0 0.0
        %1930 = vmatpush1.msra.mxu0 0.0
        %1931 = vmatprep.subr.mxu0 0.0
        %1932 = vmatpush1.msra.mxu0 0.0
        %1933 = vmatprep.subr.mxu0 0.0
        %1934 = vmatpush1.msra.mxu0 0.0
        %1935 = vmatprep.subr.mxu0 0.0
        %1936 = vmatpush1.msra.mxu0 0.0
        %1937 = vmatprep.subr.mxu0 0.0
        %1938 = vmatpush1.msra.mxu0 0.0
        %1939 = vmatprep.mubr.f32.mxu0 0.0
        %v1940 = vand.u32 %v959, 4294901760
        %v1941 = vsub.f32 %v959, %v1940
        %1942 = vmatmul.mubr.f32.gmra.mrb[0].mxu0 %v1941
        %v1943 = vpop.f32.mrb[0].mxu0
        %v1944 = vadd.f32 %v1840, %v1943
        %v1945 = vpop.f32.mrb[0].mxu0
        %1946 = vdwg.mxu0
        %1947 = vmatprep.subr.mxu0 0.0
        %v1948 = vand.u32 %v450, 4294901760
        %1949 = vmatpush1.msra.mxu0 %v1948
        %1950 = vmatprep.subr.mxu0 0.0
        %v1951 = vand.u32 %v451, 4294901760
        %1952 = vmatpush1.msra.mxu0 %v1951
        %1953 = vmatprep.subr.mxu0 0.0
        %v1954 = vand.u32 %v452, 4294901760
        %1955 = vmatpush1.msra.mxu0 %v1954
        %1956 = vmatprep.subr.mxu0 0.0
        %v1957 = vand.u32 %v453, 4294901760
        %1958 = vmatpush1.msra.mxu0 %v1957
        %1959 = vmatprep.subr.mxu0 0.0
        %v1960 = vand.u32 %v454, 4294901760
        %1961 = vmatpush1.msra.mxu0 %v1960
        %1962 = vmatprep.subr.mxu0 0.0
        %v1963 = vand.u32 %v455, 4294901760
        %1964 = vmatpush1.msra.mxu0 %v1963
        %1965 = vmatprep.subr.mxu0 0.0
        %v1966 = vand.u32 %v456, 4294901760
        %1967 = vmatpush1.msra.mxu0 %v1966
        %1968 = vmatprep.subr.mxu0 0.0
        %v1969 = vand.u32 %v457, 4294901760
        %1970 = vmatpush1.msra.mxu0 %v1969
        %1971 = vmatprep.subr.mxu0 0.0
        %v1972 = vand.u32 %v458, 4294901760
        %1973 = vmatpush1.msra.mxu0 %v1972
        %1974 = vmatprep.subr.mxu0 0.0
        %v1975 = vand.u32 %v459, 4294901760
        %1976 = vmatpush1.msra.mxu0 %v1975
        %1977 = vmatprep.subr.mxu0 0.0
        %v1978 = vand.u32 %v460, 4294901760
        %1979 = vmatpush1.msra.mxu0 %v1978
        %1980 = vmatprep.subr.mxu0 0.0
        %v1981 = vand.u32 %v461, 4294901760
        %1982 = vmatpush1.msra.mxu0 %v1981
        %1983 = vmatprep.subr.mxu0 0.0
        %v1984 = vand.u32 %v462, 4294901760
        %1985 = vmatpush1.msra.mxu0 %v1984
        %1986 = vmatprep.subr.mxu0 0.0
        %v1987 = vand.u32 %v463, 4294901760
        %1988 = vmatpush1.msra.mxu0 %v1987
        %1989 = vmatprep.subr.mxu0 0.0
        %v1990 = vand.u32 %v464, 4294901760
        %1991 = vmatpush1.msra.mxu0 %v1990
        %1992 = vmatprep.subr.mxu0 0.0
        %v1993 = vand.u32 %v465, 4294901760
        %1994 = vmatpush1.msra.mxu0 %v1993
        %1995 = vmatprep.subr.mxu0 0.0
        %1996 = vmatpush1.msra.mxu0 0.0
        %1997 = vmatprep.subr.mxu0 0.0
        %1998 = vmatpush1.msra.mxu0 0.0
        %1999 = vmatprep.subr.mxu0 0.0
        %2000 = vmatpush1.msra.mxu0 0.0
        %2001 = vmatprep.subr.mxu0 0.0
        %2002 = vmatpush1.msra.mxu0 0.0
        %2003 = vmatprep.subr.mxu0 0.0
        %2004 = vmatpush1.msra.mxu0 0.0
        %2005 = vmatprep.subr.mxu0 0.0
        %2006 = vmatpush1.msra.mxu0 0.0
        %2007 = vmatprep.subr.mxu0 0.0
        %2008 = vmatpush1.msra.mxu0 0.0
        %2009 = vmatprep.subr.mxu0 0.0
        %2010 = vmatpush1.msra.mxu0 0.0
        %2011 = vmatprep.subr.mxu0 0.0
        %2012 = vmatpush1.msra.mxu0 0.0
        %2013 = vmatprep.subr.mxu0 0.0
        %2014 = vmatpush1.msra.mxu0 0.0
        %2015 = vmatprep.subr.mxu0 0.0
        %2016 = vmatpush1.msra.mxu0 0.0
        %2017 = vmatprep.subr.mxu0 0.0
        %2018 = vmatpush1.msra.mxu0 0.0
        %2019 = vmatprep.subr.mxu0 0.0
        %2020 = vmatpush1.msra.mxu0 0.0
        %2021 = vmatprep.subr.mxu0 0.0
        %2022 = vmatpush1.msra.mxu0 0.0
        %2023 = vmatprep.subr.mxu0 0.0
        %2024 = vmatpush1.msra.mxu0 0.0
        %2025 = vmatprep.subr.mxu0 0.0
        %2026 = vmatpush1.msra.mxu0 0.0
        %2027 = vmatprep.mubr.f32.mxu0 0.0
        %v2028 = vand.u32 %v959, 4294901760
        %v2029 = vsub.f32 %v959, %v2028
        %v2030 = vand.u32 %v2029, 4294901760
        %2031 = vmatmul.mubr.f32.gmra.mrb[0].mxu0 %v2030
        %v2032 = vpop.f32.mrb[0].mxu0
        %v2033 = vadd.f32 %v1944, %v2032
        %v2034 = vpop.f32.mrb[0].mxu0
        %2035 = vdwg.mxu0
        %2036 = vmatprep.subr.mxu0 0.0
        %v2037 = vand.u32 %v450, 4294901760
        %v2038 = vsub.f32 %v450, %v2037
        %v2039 = vand.u32 %v2038, 4294901760
        %2040 = vmatpush1.msra.mxu0 %v2039
        %2041 = vmatprep.subr.mxu0 0.0
        %v2042 = vand.u32 %v451, 4294901760
        %v2043 = vsub.f32 %v451, %v2042
        %v2044 = vand.u32 %v2043, 4294901760
        %2045 = vmatpush1.msra.mxu0 %v2044
        %2046 = vmatprep.subr.mxu0 0.0
        %v2047 = vand.u32 %v452, 4294901760
        %v2048 = vsub.f32 %v452, %v2047
        %v2049 = vand.u32 %v2048, 4294901760
        %2050 = vmatpush1.msra.mxu0 %v2049
        %2051 = vmatprep.subr.mxu0 0.0
        %v2052 = vand.u32 %v453, 4294901760
        %v2053 = vsub.f32 %v453, %v2052
        %v2054 = vand.u32 %v2053, 4294901760
        %2055 = vmatpush1.msra.mxu0 %v2054
        %2056 = vmatprep.subr.mxu0 0.0
        %v2057 = vand.u32 %v454, 4294901760
        %v2058 = vsub.f32 %v454, %v2057
        %v2059 = vand.u32 %v2058, 4294901760
        %2060 = vmatpush1.msra.mxu0 %v2059
        %2061 = vmatprep.subr.mxu0 0.0
        %v2062 = vand.u32 %v455, 4294901760
        %v2063 = vsub.f32 %v455, %v2062
        %v2064 = vand.u32 %v2063, 4294901760
        %2065 = vmatpush1.msra.mxu0 %v2064
        %2066 = vmatprep.subr.mxu0 0.0
        %v2067 = vand.u32 %v456, 4294901760
        %v2068 = vsub.f32 %v456, %v2067
        %v2069 = vand.u32 %v2068, 4294901760
        %2070 = vmatpush1.msra.mxu0 %v2069
        %2071 = vmatprep.subr.mxu0 0.0
        %v2072 = vand.u32 %v457, 4294901760
        %v2073 = vsub.f32 %v457, %v2072
        %v2074 = vand.u32 %v2073, 4294901760
        %2075 = vmatpush1.msra.mxu0 %v2074
        %2076 = vmatprep.subr.mxu0 0.0
        %v2077 = vand.u32 %v458, 4294901760
        %v2078 = vsub.f32 %v458, %v2077
        %v2079 = vand.u32 %v2078, 4294901760
        %2080 = vmatpush1.msra.mxu0 %v2079
        %2081 = vmatprep.subr.mxu0 0.0
        %v2082 = vand.u32 %v459, 4294901760
        %v2083 = vsub.f32 %v459, %v2082
        %v2084 = vand.u32 %v2083, 4294901760
        %2085 = vmatpush1.msra.mxu0 %v2084
        %2086 = vmatprep.subr.mxu0 0.0
        %v2087 = vand.u32 %v460, 4294901760
        %v2088 = vsub.f32 %v460, %v2087
        %v2089 = vand.u32 %v2088, 4294901760
        %2090 = vmatpush1.msra.mxu0 %v2089
        %2091 = vmatprep.subr.mxu0 0.0
        %v2092 = vand.u32 %v461, 4294901760
        %v2093 = vsub.f32 %v461, %v2092
        %v2094 = vand.u32 %v2093, 4294901760
        %2095 = vmatpush1.msra.mxu0 %v2094
        %2096 = vmatprep.subr.mxu0 0.0
        %v2097 = vand.u32 %v462, 4294901760
        %v2098 = vsub.f32 %v462, %v2097
        %v2099 = vand.u32 %v2098, 4294901760
        %2100 = vmatpush1.msra.mxu0 %v2099
        %2101 = vmatprep.subr.mxu0 0.0
        %v2102 = vand.u32 %v463, 4294901760
        %v2103 = vsub.f32 %v463, %v2102
        %v2104 = vand.u32 %v2103, 4294901760
        %2105 = vmatpush1.msra.mxu0 %v2104
        %2106 = vmatprep.subr.mxu0 0.0
        %v2107 = vand.u32 %v464, 4294901760
        %v2108 = vsub.f32 %v464, %v2107
        %v2109 = vand.u32 %v2108, 4294901760
        %2110 = vmatpush1.msra.mxu0 %v2109
        %2111 = vmatprep.subr.mxu0 0.0
        %v2112 = vand.u32 %v465, 4294901760
        %v2113 = vsub.f32 %v465, %v2112
        %v2114 = vand.u32 %v2113, 4294901760
        %2115 = vmatpush1.msra.mxu0 %v2114
        %2116 = vmatprep.subr.mxu0 0.0
        %2117 = vmatpush1.msra.mxu0 0.0
        %2118 = vmatprep.subr.mxu0 0.0
        %2119 = vmatpush1.msra.mxu0 0.0
        %2120 = vmatprep.subr.mxu0 0.0
        %2121 = vmatpush1.msra.mxu0 0.0
        %2122 = vmatprep.subr.mxu0 0.0
        %2123 = vmatpush1.msra.mxu0 0.0
        %2124 = vmatprep.subr.mxu0 0.0
        %2125 = vmatpush1.msra.mxu0 0.0
        %2126 = vmatprep.subr.mxu0 0.0
        %2127 = vmatpush1.msra.mxu0 0.0
        %2128 = vmatprep.subr.mxu0 0.0
        %2129 = vmatpush1.msra.mxu0 0.0
        %2130 = vmatprep.subr.mxu0 0.0
        %2131 = vmatpush1.msra.mxu0 0.0
        %2132 = vmatprep.subr.mxu0 0.0
        %2133 = vmatpush1.msra.mxu0 0.0
        %2134 = vmatprep.subr.mxu0 0.0
        %2135 = vmatpush1.msra.mxu0 0.0
        %2136 = vmatprep.subr.mxu0 0.0
        %2137 = vmatpush1.msra.mxu0 0.0
        %2138 = vmatprep.subr.mxu0 0.0
        %2139 = vmatpush1.msra.mxu0 0.0
        %2140 = vmatprep.subr.mxu0 0.0
        %2141 = vmatpush1.msra.mxu0 0.0
        %2142 = vmatprep.subr.mxu0 0.0
        %2143 = vmatpush1.msra.mxu0 0.0
        %2144 = vmatprep.subr.mxu0 0.0
        %2145 = vmatpush1.msra.mxu0 0.0
        %2146 = vmatprep.subr.mxu0 0.0
        %2147 = vmatpush1.msra.mxu0 0.0
        %2148 = vmatprep.mubr.f32.mxu0 0.0
        %v2149 = vand.u32 %v959, 4294901760
        %2150 = vmatmul.mubr.f32.gmra.mrb[0].mxu0 %v2149
        %v2151 = vpop.f32.mrb[0].mxu0
        %v2152 = vadd.f32 %v2033, %v2151
        %v2153 = vpop.f32.mrb[0].mxu0
        %2154 = vdwg.mxu0
        %2155 = vmatprep.subr.mxu0 0.0
        %v2156 = vand.u32 %v450, 4294901760
        %2157 = vmatpush1.msra.mxu0 %v2156
        %2158 = vmatprep.subr.mxu0 0.0
        %v2159 = vand.u32 %v451, 4294901760
        %2160 = vmatpush1.msra.mxu0 %v2159
        %2161 = vmatprep.subr.mxu0 0.0
        %v2162 = vand.u32 %v452, 4294901760
        %2163 = vmatpush1.msra.mxu0 %v2162
        %2164 = vmatprep.subr.mxu0 0.0
        %v2165 = vand.u32 %v453, 4294901760
        %2166 = vmatpush1.msra.mxu0 %v2165
        %2167 = vmatprep.subr.mxu0 0.0
        %v2168 = vand.u32 %v454, 4294901760
        %2169 = vmatpush1.msra.mxu0 %v2168
        %2170 = vmatprep.subr.mxu0 0.0
        %v2171 = vand.u32 %v455, 4294901760
        %2172 = vmatpush1.msra.mxu0 %v2171
        %2173 = vmatprep.subr.mxu0 0.0
        %v2174 = vand.u32 %v456, 4294901760
        %2175 = vmatpush1.msra.mxu0 %v2174
        %2176 = vmatprep.subr.mxu0 0.0
        %v2177 = vand.u32 %v457, 4294901760
        %2178 = vmatpush1.msra.mxu0 %v2177
        %2179 = vmatprep.subr.mxu0 0.0
        %v2180 = vand.u32 %v458, 4294901760
        %2181 = vmatpush1.msra.mxu0 %v2180
        %2182 = vmatprep.subr.mxu0 0.0
        %v2183 = vand.u32 %v459, 4294901760
        %2184 = vmatpush1.msra.mxu0 %v2183
        %2185 = vmatprep.subr.mxu0 0.0
        %v2186 = vand.u32 %v460, 4294901760
        %2187 = vmatpush1.msra.mxu0 %v2186
        %2188 = vmatprep.subr.mxu0 0.0
        %v2189 = vand.u32 %v461, 4294901760
        %2190 = vmatpush1.msra.mxu0 %v2189
        %2191 = vmatprep.subr.mxu0 0.0
        %v2192 = vand.u32 %v462, 4294901760
        %2193 = vmatpush1.msra.mxu0 %v2192
        %2194 = vmatprep.subr.mxu0 0.0
        %v2195 = vand.u32 %v463, 4294901760
        %2196 = vmatpush1.msra.mxu0 %v2195
        %2197 = vmatprep.subr.mxu0 0.0
        %v2198 = vand.u32 %v464, 4294901760
        %2199 = vmatpush1.msra.mxu0 %v2198
        %2200 = vmatprep.subr.mxu0 0.0
        %v2201 = vand.u32 %v465, 4294901760
        %2202 = vmatpush1.msra.mxu0 %v2201
        %2203 = vmatprep.subr.mxu0 0.0
        %2204 = vmatpush1.msra.mxu0 0.0
        %2205 = vmatprep.subr.mxu0 0.0
        %2206 = vmatpush1.msra.mxu0 0.0
        %2207 = vmatprep.subr.mxu0 0.0
        %2208 = vmatpush1.msra.mxu0 0.0
        %2209 = vmatprep.subr.mxu0 0.0
        %2210 = vmatpush1.msra.mxu0 0.0
        %2211 = vmatprep.subr.mxu0 0.0
        %2212 = vmatpush1.msra.mxu0 0.0
        %2213 = vmatprep.subr.mxu0 0.0
        %2214 = vmatpush1.msra.mxu0 0.0
        %2215 = vmatprep.subr.mxu0 0.0
        %2216 = vmatpush1.msra.mxu0 0.0
        %2217 = vmatprep.subr.mxu0 0.0
        %2218 = vmatpush1.msra.mxu0 0.0
        %2219 = vmatprep.subr.mxu0 0.0
        %2220 = vmatpush1.msra.mxu0 0.0
        %2221 = vmatprep.subr.mxu0 0.0
        %2222 = vmatpush1.msra.mxu0 0.0
        %2223 = vmatprep.subr.mxu0 0.0
        %2224 = vmatpush1.msra.mxu0 0.0
        %2225 = vmatprep.subr.mxu0 0.0
        %2226 = vmatpush1.msra.mxu0 0.0
        %2227 = vmatprep.subr.mxu0 0.0
        %2228 = vmatpush1.msra.mxu0 0.0
        %2229 = vmatprep.subr.mxu0 0.0
        %2230 = vmatpush1.msra.mxu0 0.0
        %2231 = vmatprep.subr.mxu0 0.0
        %2232 = vmatpush1.msra.mxu0 0.0
        %2233 = vmatprep.subr.mxu0 0.0
        %2234 = vmatpush1.msra.mxu0 0.0
        %2235 = vmatprep.mubr.f32.mxu0 0.0
        %v2236 = vand.u32 %v959, 4294901760
        %2237 = vmatmul.mubr.f32.gmra.mrb[0].mxu0 %v2236
        %v2238 = vpop.f32.mrb[0].mxu0
        %v2239 = vadd.f32 %v2152, %v2238
        %v2240 = vpop.f32.mrb[0].mxu0
        %2241 = vdwg.mxu0
        %v2242 = vmax.f32 %v1598, 1e-37
        %v2243 = vlog2.pop %v2242
        %v2244 = vmul.f32 %v2243, 0.6931472
        %v2245 = vadd.f32 %v2244, %v955
        %v2246 = vsub.f32 %v2245, %v2239
        %v2247 = vld [vmem:[#allocation2] sm:$0xff]
        %v2248 = vsel %vm362, %v2246, 0.0
        %v2249 = vadd.f32 %v2247, %v2248
        %2250 = vst.msk [vmem:[#allocation2] sm:$0xff] %vm484, %v2249
        %v2251 = vld [vmem:[%s303] sm:$0xff]
        %2252 = vmax.xlane.f32.xlu0 %v2251
        %v2253 = vpop.xlane.xlu0 %2252
        %v2254 = vsub.f32 %v2251, %v2253
        %v2255 = vmul.f32 %v2254, 1.442695
        %v2256 = vpow.pop %v2255
        %v2257 = vsel %vm947, %v2251, 0.0
        %2258 = vmatprep.subr.mxu0 0.0
        %v2259 = vand.u32 %v450, 4294901760
        %2260 = vmatpush1.msra.mxu0 %v2259
        %2261 = vmatprep.subr.mxu0 0.0
        %v2262 = vand.u32 %v451, 4294901760
        %2263 = vmatpush1.msra.mxu0 %v2262
        %2264 = vmatprep.subr.mxu0 0.0
        %v2265 = vand.u32 %v452, 4294901760
        %2266 = vmatpush1.msra.mxu0 %v2265
        %2267 = vmatprep.subr.mxu0 0.0
        %v2268 = vand.u32 %v453, 4294901760
        %2269 = vmatpush1.msra.mxu0 %v2268
        %2270 = vmatprep.subr.mxu0 0.0
        %v2271 = vand.u32 %v454, 4294901760
        %2272 = vmatpush1.msra.mxu0 %v2271
        %2273 = vmatprep.subr.mxu0 0.0
        %v2274 = vand.u32 %v455, 4294901760
        %2275 = vmatpush1.msra.mxu0 %v2274
        %2276 = vmatprep.subr.mxu0 0.0
        %v2277 = vand.u32 %v456, 4294901760
        %2278 = vmatpush1.msra.mxu0 %v2277
        %2279 = vmatprep.subr.mxu0 0.0
        %v2280 = vand.u32 %v457, 4294901760
        %2281 = vmatpush1.msra.mxu0 %v2280
        %2282 = vmatprep.subr.mxu0 0.0
        %v2283 = vand.u32 %v458, 4294901760
        %2284 = vmatpush1.msra.mxu0 %v2283
        %2285 = vmatprep.subr.mxu0 0.0
        %v2286 = vand.u32 %v459, 4294901760
        %2287 = vmatpush1.msra.mxu0 %v2286
        %2288 = vmatprep.subr.mxu0 0.0
        %v2289 = vand.u32 %v460, 4294901760
        %2290 = vmatpush1.msra.mxu0 %v2289
        %2291 = vmatprep.subr.mxu0 0.0
        %v2292 = vand.u32 %v461, 4294901760
        %2293 = vmatpush1.msra.mxu0 %v2292
        %2294 = vmatprep.subr.mxu0 0.0
        %v2295 = vand.u32 %v462, 4294901760
        %2296 = vmatpush1.msra.mxu0 %v2295
        %2297 = vmatprep.subr.mxu0 0.0
        %v2298 = vand.u32 %v463, 4294901760
        %2299 = vmatpush1.msra.mxu0 %v2298
        %2300 = vmatprep.subr.mxu0 0.0
        %v2301 = vand.u32 %v464, 4294901760
        %2302 = vmatpush1.msra.mxu0 %v2301
        %2303 = vmatprep.subr.mxu0 0.0
        %v2304 = vand.u32 %v465, 4294901760
        %2305 = vmatpush1.msra.mxu0 %v2304
        %2306 = vmatprep.subr.mxu0 0.0
        %2307 = vmatpush1.msra.mxu0 0.0
        %2308 = vmatprep.subr.mxu0 0.0
        %2309 = vmatpush1.msra.mxu0 0.0
        %2310 = vmatprep.subr.mxu0 0.0
        %2311 = vmatpush1.msra.mxu0 0.0
        %2312 = vmatprep.subr.mxu0 0.0
        %2313 = vmatpush1.msra.mxu0 0.0
        %2314 = vmatprep.subr.mxu0 0.0
        %2315 = vmatpush1.msra.mxu0 0.0
        %2316 = vmatprep.subr.mxu0 0.0
        %2317 = vmatpush1.msra.mxu0 0.0
        %2318 = vmatprep.subr.mxu0 0.0
        %2319 = vmatpush1.msra.mxu0 0.0
        %2320 = vmatprep.subr.mxu0 0.0
        %2321 = vmatpush1.msra.mxu0 0.0
        %2322 = vmatprep.subr.mxu0 0.0
        %2323 = vmatpush1.msra.mxu0 0.0
        %2324 = vmatprep.subr.mxu0 0.0
        %2325 = vmatpush1.msra.mxu0 0.0
        %2326 = vmatprep.subr.mxu0 0.0
        %2327 = vmatpush1.msra.mxu0 0.0
        %2328 = vmatprep.subr.mxu0 0.0
        %2329 = vmatpush1.msra.mxu0 0.0
        %2330 = vmatprep.subr.mxu0 0.0
        %2331 = vmatpush1.msra.mxu0 0.0
        %2332 = vmatprep.subr.mxu0 0.0
        %2333 = vmatpush1.msra.mxu0 0.0
        %2334 = vmatprep.subr.mxu0 0.0
        %2335 = vmatpush1.msra.mxu0 0.0
        %2336 = vmatprep.subr.mxu0 0.0
        %2337 = vmatpush1.msra.mxu0 0.0
        %2338 = vmatprep.mubr.f32.mxu0 0.0
        %v2339 = vand.u32 %v2256, 4294901760
        %v2340 = vsub.f32 %v2256, %v2339
        %v2341 = vand.u32 %v2340, 4294901760
        %v2342 = vsub.f32 %v2340, %v2341
        %v2343 = vand.u32 %v2342, 4294901760
        %2344 = vmatmul.mubr.f32.gmra.mrb[0].mxu0 %v2343
        %v2345 = vpop.f32.mrb[0].mxu0
        %v2346 = vadd.f32 0.0, %v2345
        %v2347 = vpop.f32.mrb[0].mxu0
        %2348 = vdwg.mxu0
        %2349 = vmatprep.subr.mxu0 0.0
        %v2350 = vand.u32 %v450, 4294901760
        %v2351 = vsub.f32 %v450, %v2350
        %v2352 = vand.u32 %v2351, 4294901760
        %v2353 = vsub.f32 %v2351, %v2352
        %v2354 = vand.u32 %v2353, 4294901760
        %2355 = vmatpush1.msra.mxu0 %v2354
        %2356 = vmatprep.subr.mxu0 0.0
        %v2357 = vand.u32 %v451, 4294901760
        %v2358 = vsub.f32 %v451, %v2357
        %v2359 = vand.u32 %v2358, 4294901760
        %v2360 = vsub.f32 %v2358, %v2359
        %v2361 = vand.u32 %v2360, 4294901760
        %2362 = vmatpush1.msra.mxu0 %v2361
        %2363 = vmatprep.subr.mxu0 0.0
        %v2364 = vand.u32 %v452, 4294901760
        %v2365 = vsub.f32 %v452, %v2364
        %v2366 = vand.u32 %v2365, 4294901760
        %v2367 = vsub.f32 %v2365, %v2366
        %v2368 = vand.u32 %v2367, 4294901760
        %2369 = vmatpush1.msra.mxu0 %v2368
        %2370 = vmatprep.subr.mxu0 0.0
        %v2371 = vand.u32 %v453, 4294901760
        %v2372 = vsub.f32 %v453, %v2371
        %v2373 = vand.u32 %v2372, 4294901760
        %v2374 = vsub.f32 %v2372, %v2373
        %v2375 = vand.u32 %v2374, 4294901760
        %2376 = vmatpush1.msra.mxu0 %v2375
        %2377 = vmatprep.subr.mxu0 0.0
        %v2378 = vand.u32 %v454, 4294901760
        %v2379 = vsub.f32 %v454, %v2378
        %v2380 = vand.u32 %v2379, 4294901760
        %v2381 = vsub.f32 %v2379, %v2380
        %v2382 = vand.u32 %v2381, 4294901760
        %2383 = vmatpush1.msra.mxu0 %v2382
        %2384 = vmatprep.subr.mxu0 0.0
        %v2385 = vand.u32 %v455, 4294901760
        %v2386 = vsub.f32 %v455, %v2385
        %v2387 = vand.u32 %v2386, 4294901760
        %v2388 = vsub.f32 %v2386, %v2387
        %v2389 = vand.u32 %v2388, 4294901760
        %2390 = vmatpush1.msra.mxu0 %v2389
        %2391 = vmatprep.subr.mxu0 0.0
        %v2392 = vand.u32 %v456, 4294901760
        %v2393 = vsub.f32 %v456, %v2392
        %v2394 = vand.u32 %v2393, 4294901760
        %v2395 = vsub.f32 %v2393, %v2394
        %v2396 = vand.u32 %v2395, 4294901760
        %2397 = vmatpush1.msra.mxu0 %v2396
        %2398 = vmatprep.subr.mxu0 0.0
        %v2399 = vand.u32 %v457, 4294901760
        %v2400 = vsub.f32 %v457, %v2399
        %v2401 = vand.u32 %v2400, 4294901760
        %v2402 = vsub.f32 %v2400, %v2401
        %v2403 = vand.u32 %v2402, 4294901760
        %2404 = vmatpush1.msra.mxu0 %v2403
        %2405 = vmatprep.subr.mxu0 0.0
        %v2406 = vand.u32 %v458, 4294901760
        %v2407 = vsub.f32 %v458, %v2406
        %v2408 = vand.u32 %v2407, 4294901760
        %v2409 = vsub.f32 %v2407, %v2408
        %v2410 = vand.u32 %v2409, 4294901760
        %2411 = vmatpush1.msra.mxu0 %v2410
        %2412 = vmatprep.subr.mxu0 0.0
        %v2413 = vand.u32 %v459, 4294901760
        %v2414 = vsub.f32 %v459, %v2413
        %v2415 = vand.u32 %v2414, 4294901760
        %v2416 = vsub.f32 %v2414, %v2415
        %v2417 = vand.u32 %v2416, 4294901760
        %2418 = vmatpush1.msra.mxu0 %v2417
        %2419 = vmatprep.subr.mxu0 0.0
        %v2420 = vand.u32 %v460, 4294901760
        %v2421 = vsub.f32 %v460, %v2420
        %v2422 = vand.u32 %v2421, 4294901760
        %v2423 = vsub.f32 %v2421, %v2422
        %v2424 = vand.u32 %v2423, 4294901760
        %2425 = vmatpush1.msra.mxu0 %v2424
        %2426 = vmatprep.subr.mxu0 0.0
        %v2427 = vand.u32 %v461, 4294901760
        %v2428 = vsub.f32 %v461, %v2427
        %v2429 = vand.u32 %v2428, 4294901760
        %v2430 = vsub.f32 %v2428, %v2429
        %v2431 = vand.u32 %v2430, 4294901760
        %2432 = vmatpush1.msra.mxu0 %v2431
        %2433 = vmatprep.subr.mxu0 0.0
        %v2434 = vand.u32 %v462, 4294901760
        %v2435 = vsub.f32 %v462, %v2434
        %v2436 = vand.u32 %v2435, 4294901760
        %v2437 = vsub.f32 %v2435, %v2436
        %v2438 = vand.u32 %v2437, 4294901760
        %2439 = vmatpush1.msra.mxu0 %v2438
        %2440 = vmatprep.subr.mxu0 0.0
        %v2441 = vand.u32 %v463, 4294901760
        %v2442 = vsub.f32 %v463, %v2441
        %v2443 = vand.u32 %v2442, 4294901760
        %v2444 = vsub.f32 %v2442, %v2443
        %v2445 = vand.u32 %v2444, 4294901760
        %2446 = vmatpush1.msra.mxu0 %v2445
        %2447 = vmatprep.subr.mxu0 0.0
        %v2448 = vand.u32 %v464, 4294901760
        %v2449 = vsub.f32 %v464, %v2448
        %v2450 = vand.u32 %v2449, 4294901760
        %v2451 = vsub.f32 %v2449, %v2450
        %v2452 = vand.u32 %v2451, 4294901760
        %2453 = vmatpush1.msra.mxu0 %v2452
        %2454 = vmatprep.subr.mxu0 0.0
        %v2455 = vand.u32 %v465, 4294901760
        %v2456 = vsub.f32 %v465, %v2455
        %v2457 = vand.u32 %v2456, 4294901760
        %v2458 = vsub.f32 %v2456, %v2457
        %v2459 = vand.u32 %v2458, 4294901760
        %2460 = vmatpush1.msra.mxu0 %v2459
        %2461 = vmatprep.subr.mxu0 0.0
        %2462 = vmatpush1.msra.mxu0 0.0
        %2463 = vmatprep.subr.mxu0 0.0
        %2464 = vmatpush1.msra.mxu0 0.0
        %2465 = vmatprep.subr.mxu0 0.0
        %2466 = vmatpush1.msra.mxu0 0.0
        %2467 = vmatprep.subr.mxu0 0.0
        %2468 = vmatpush1.msra.mxu0 0.0
        %2469 = vmatprep.subr.mxu0 0.0
        %2470 = vmatpush1.msra.mxu0 0.0
        %2471 = vmatprep.subr.mxu0 0.0
        %2472 = vmatpush1.msra.mxu0 0.0
        %2473 = vmatprep.subr.mxu0 0.0
        %2474 = vmatpush1.msra.mxu0 0.0
        %2475 = vmatprep.subr.mxu0 0.0
        %2476 = vmatpush1.msra.mxu0 0.0
        %2477 = vmatprep.subr.mxu0 0.0
        %2478 = vmatpush1.msra.mxu0 0.0
        %2479 = vmatprep.subr.mxu0 0.0
        %2480 = vmatpush1.msra.mxu0 0.0
        %2481 = vmatprep.subr.mxu0 0.0
        %2482 = vmatpush1.msra.mxu0 0.0
        %2483 = vmatprep.subr.mxu0 0.0
        %2484 = vmatpush1.msra.mxu0 0.0
        %2485 = vmatprep.subr.mxu0 0.0
        %2486 = vmatpush1.msra.mxu0 0.0
        %2487 = vmatprep.subr.mxu0 0.0
        %2488 = vmatpush1.msra.mxu0 0.0
        %2489 = vmatprep.subr.mxu0 0.0
        %2490 = vmatpush1.msra.mxu0 0.0
        %2491 = vmatprep.subr.mxu0 0.0
        %2492 = vmatpush1.msra.mxu0 0.0
        %2493 = vmatprep.mubr.f32.mxu0 0.0
        %v2494 = vand.u32 %v2256, 4294901760
        %2495 = vmatmul.mubr.f32.gmra.mrb[0].mxu0 %v2494
        %v2496 = vpop.f32.mrb[0].mxu0
        %v2497 = vadd.f32 %v2346, %v2496
        %v2498 = vpop.f32.mrb[0].mxu0
        %2499 = vdwg.mxu0
        %2500 = vmatprep.subr.mxu0 0.0
        %v2501 = vand.u32 %v450, 4294901760
        %v2502 = vsub.f32 %v450, %v2501
        %2503 = vmatpush1.msra.mxu0 %v2502
        %2504 = vmatprep.subr.mxu0 0.0
        %v2505 = vand.u32 %v451, 4294901760
        %v2506 = vsub.f32 %v451, %v2505
        %2507 = vmatpush1.msra.mxu0 %v2506
        %2508 = vmatprep.subr.mxu0 0.0
        %v2509 = vand.u32 %v452, 4294901760
        %v2510 = vsub.f32 %v452, %v2509
        %2511 = vmatpush1.msra.mxu0 %v2510
        %2512 = vmatprep.subr.mxu0 0.0
        %v2513 = vand.u32 %v453, 4294901760
        %v2514 = vsub.f32 %v453, %v2513
        %2515 = vmatpush1.msra.mxu0 %v2514
        %2516 = vmatprep.subr.mxu0 0.0
        %v2517 = vand.u32 %v454, 4294901760
        %v2518 = vsub.f32 %v454, %v2517
        %2519 = vmatpush1.msra.mxu0 %v2518
        %2520 = vmatprep.subr.mxu0 0.0
        %v2521 = vand.u32 %v455, 4294901760
        %v2522 = vsub.f32 %v455, %v2521
        %2523 = vmatpush1.msra.mxu0 %v2522
        %2524 = vmatprep.subr.mxu0 0.0
        %v2525 = vand.u32 %v456, 4294901760
        %v2526 = vsub.f32 %v456, %v2525
        %2527 = vmatpush1.msra.mxu0 %v2526
        %2528 = vmatprep.subr.mxu0 0.0
        %v2529 = vand.u32 %v457, 4294901760
        %v2530 = vsub.f32 %v457, %v2529
        %2531 = vmatpush1.msra.mxu0 %v2530
        %2532 = vmatprep.subr.mxu0 0.0
        %v2533 = vand.u32 %v458, 4294901760
        %v2534 = vsub.f32 %v458, %v2533
        %2535 = vmatpush1.msra.mxu0 %v2534
        %2536 = vmatprep.subr.mxu0 0.0
        %v2537 = vand.u32 %v459, 4294901760
        %v2538 = vsub.f32 %v459, %v2537
        %2539 = vmatpush1.msra.mxu0 %v2538
        %2540 = vmatprep.subr.mxu0 0.0
        %v2541 = vand.u32 %v460, 4294901760
        %v2542 = vsub.f32 %v460, %v2541
        %2543 = vmatpush1.msra.mxu0 %v2542
        %2544 = vmatprep.subr.mxu0 0.0
        %v2545 = vand.u32 %v461, 4294901760
        %v2546 = vsub.f32 %v461, %v2545
        %2547 = vmatpush1.msra.mxu0 %v2546
        %2548 = vmatprep.subr.mxu0 0.0
        %v2549 = vand.u32 %v462, 4294901760
        %v2550 = vsub.f32 %v462, %v2549
        %2551 = vmatpush1.msra.mxu0 %v2550
        %2552 = vmatprep.subr.mxu0 0.0
        %v2553 = vand.u32 %v463, 4294901760
        %v2554 = vsub.f32 %v463, %v2553
        %2555 = vmatpush1.msra.mxu0 %v2554
        %2556 = vmatprep.subr.mxu0 0.0
        %v2557 = vand.u32 %v464, 4294901760
        %v2558 = vsub.f32 %v464, %v2557
        %2559 = vmatpush1.msra.mxu0 %v2558
        %2560 = vmatprep.subr.mxu0 0.0
        %v2561 = vand.u32 %v465, 4294901760
        %v2562 = vsub.f32 %v465, %v2561
        %2563 = vmatpush1.msra.mxu0 %v2562
        %2564 = vmatprep.subr.mxu0 0.0
        %2565 = vmatpush1.msra.mxu0 0.0
        %2566 = vmatprep.subr.mxu0 0.0
        %2567 = vmatpush1.msra.mxu0 0.0
        %2568 = vmatprep.subr.mxu0 0.0
        %2569 = vmatpush1.msra.mxu0 0.0
        %2570 = vmatprep.subr.mxu0 0.0
        %2571 = vmatpush1.msra.mxu0 0.0
        %2572 = vmatprep.subr.mxu0 0.0
        %2573 = vmatpush1.msra.mxu0 0.0
        %2574 = vmatprep.subr.mxu0 0.0
        %2575 = vmatpush1.msra.mxu0 0.0
        %2576 = vmatprep.subr.mxu0 0.0
        %2577 = vmatpush1.msra.mxu0 0.0
        %2578 = vmatprep.subr.mxu0 0.0
        %2579 = vmatpush1.msra.mxu0 0.0
        %2580 = vmatprep.subr.mxu0 0.0
        %2581 = vmatpush1.msra.mxu0 0.0
        %2582 = vmatprep.subr.mxu0 0.0
        %2583 = vmatpush1.msra.mxu0 0.0
        %2584 = vmatprep.subr.mxu0 0.0
        %2585 = vmatpush1.msra.mxu0 0.0
        %2586 = vmatprep.subr.mxu0 0.0
        %2587 = vmatpush1.msra.mxu0 0.0
        %2588 = vmatprep.subr.mxu0 0.0
        %2589 = vmatpush1.msra.mxu0 0.0
        %2590 = vmatprep.subr.mxu0 0.0
        %2591 = vmatpush1.msra.mxu0 0.0
        %2592 = vmatprep.subr.mxu0 0.0
        %2593 = vmatpush1.msra.mxu0 0.0
        %2594 = vmatprep.subr.mxu0 0.0
        %2595 = vmatpush1.msra.mxu0 0.0
        %2596 = vmatprep.mubr.f32.mxu0 0.0
        %v2597 = vand.u32 %v2256, 4294901760
        %v2598 = vsub.f32 %v2256, %v2597
        %2599 = vmatmul.mubr.f32.gmra.mrb[0].mxu0 %v2598
        %v2600 = vpop.f32.mrb[0].mxu0
        %v2601 = vadd.f32 %v2497, %v2600
        %v2602 = vpop.f32.mrb[0].mxu0
        %2603 = vdwg.mxu0
        %2604 = vmatprep.subr.mxu0 0.0
        %v2605 = vand.u32 %v450, 4294901760
        %2606 = vmatpush1.msra.mxu0 %v2605
        %2607 = vmatprep.subr.mxu0 0.0
        %v2608 = vand.u32 %v451, 4294901760
        %2609 = vmatpush1.msra.mxu0 %v2608
        %2610 = vmatprep.subr.mxu0 0.0
        %v2611 = vand.u32 %v452, 4294901760
        %2612 = vmatpush1.msra.mxu0 %v2611
        %2613 = vmatprep.subr.mxu0 0.0
        %v2614 = vand.u32 %v453, 4294901760
        %2615 = vmatpush1.msra.mxu0 %v2614
        %2616 = vmatprep.subr.mxu0 0.0
        %v2617 = vand.u32 %v454, 4294901760
        %2618 = vmatpush1.msra.mxu0 %v2617
        %2619 = vmatprep.subr.mxu0 0.0
        %v2620 = vand.u32 %v455, 4294901760
        %2621 = vmatpush1.msra.mxu0 %v2620
        %2622 = vmatprep.subr.mxu0 0.0
        %v2623 = vand.u32 %v456, 4294901760
        %2624 = vmatpush1.msra.mxu0 %v2623
        %2625 = vmatprep.subr.mxu0 0.0
        %v2626 = vand.u32 %v457, 4294901760
        %2627 = vmatpush1.msra.mxu0 %v2626
        %2628 = vmatprep.subr.mxu0 0.0
        %v2629 = vand.u32 %v458, 4294901760
        %2630 = vmatpush1.msra.mxu0 %v2629
        %2631 = vmatprep.subr.mxu0 0.0
        %v2632 = vand.u32 %v459, 4294901760
        %2633 = vmatpush1.msra.mxu0 %v2632
        %2634 = vmatprep.subr.mxu0 0.0
        %v2635 = vand.u32 %v460, 4294901760
        %2636 = vmatpush1.msra.mxu0 %v2635
        %2637 = vmatprep.subr.mxu0 0.0
        %v2638 = vand.u32 %v461, 4294901760
        %2639 = vmatpush1.msra.mxu0 %v2638
        %2640 = vmatprep.subr.mxu0 0.0
        %v2641 = vand.u32 %v462, 4294901760
        %2642 = vmatpush1.msra.mxu0 %v2641
        %2643 = vmatprep.subr.mxu0 0.0
        %v2644 = vand.u32 %v463, 4294901760
        %2645 = vmatpush1.msra.mxu0 %v2644
        %2646 = vmatprep.subr.mxu0 0.0
        %v2647 = vand.u32 %v464, 4294901760
        %2648 = vmatpush1.msra.mxu0 %v2647
        %2649 = vmatprep.subr.mxu0 0.0
        %v2650 = vand.u32 %v465, 4294901760
        %2651 = vmatpush1.msra.mxu0 %v2650
        %2652 = vmatprep.subr.mxu0 0.0
        %2653 = vmatpush1.msra.mxu0 0.0
        %2654 = vmatprep.subr.mxu0 0.0
        %2655 = vmatpush1.msra.mxu0 0.0
        %2656 = vmatprep.subr.mxu0 0.0
        %2657 = vmatpush1.msra.mxu0 0.0
        %2658 = vmatprep.subr.mxu0 0.0
        %2659 = vmatpush1.msra.mxu0 0.0
        %2660 = vmatprep.subr.mxu0 0.0
        %2661 = vmatpush1.msra.mxu0 0.0
        %2662 = vmatprep.subr.mxu0 0.0
        %2663 = vmatpush1.msra.mxu0 0.0
        %2664 = vmatprep.subr.mxu0 0.0
        %2665 = vmatpush1.msra.mxu0 0.0
        %2666 = vmatprep.subr.mxu0 0.0
        %2667 = vmatpush1.msra.mxu0 0.0
        %2668 = vmatprep.subr.mxu0 0.0
        %2669 = vmatpush1.msra.mxu0 0.0
        %2670 = vmatprep.subr.mxu0 0.0
        %2671 = vmatpush1.msra.mxu0 0.0
        %2672 = vmatprep.subr.mxu0 0.0
        %2673 = vmatpush1.msra.mxu0 0.0
        %2674 = vmatprep.subr.mxu0 0.0
        %2675 = vmatpush1.msra.mxu0 0.0
        %2676 = vmatprep.subr.mxu0 0.0
        %2677 = vmatpush1.msra.mxu0 0.0
        %2678 = vmatprep.subr.mxu0 0.0
        %2679 = vmatpush1.msra.mxu0 0.0
        %2680 = vmatprep.subr.mxu0 0.0
        %2681 = vmatpush1.msra.mxu0 0.0
        %2682 = vmatprep.subr.mxu0 0.0
        %2683 = vmatpush1.msra.mxu0 0.0
        %2684 = vmatprep.mubr.f32.mxu0 0.0
        %v2685 = vand.u32 %v2256, 4294901760
        %v2686 = vsub.f32 %v2256, %v2685
        %v2687 = vand.u32 %v2686, 4294901760
        %2688 = vmatmul.mubr.f32.gmra.mrb[0].mxu0 %v2687
        %v2689 = vpop.f32.mrb[0].mxu0
        %v2690 = vadd.f32 %v2601, %v2689
        %v2691 = vpop.f32.mrb[0].mxu0
        %2692 = vdwg.mxu0
        %2693 = vmatprep.subr.mxu0 0.0
        %v2694 = vand.u32 %v450, 4294901760
        %v2695 = vsub.f32 %v450, %v2694
        %v2696 = vand.u32 %v2695, 4294901760
        %2697 = vmatpush1.msra.mxu0 %v2696
        %2698 = vmatprep.subr.mxu0 0.0
        %v2699 = vand.u32 %v451, 4294901760
        %v2700 = vsub.f32 %v451, %v2699
        %v2701 = vand.u32 %v2700, 4294901760
        %2702 = vmatpush1.msra.mxu0 %v2701
        %2703 = vmatprep.subr.mxu0 0.0
        %v2704 = vand.u32 %v452, 4294901760
        %v2705 = vsub.f32 %v452, %v2704
        %v2706 = vand.u32 %v2705, 4294901760
        %2707 = vmatpush1.msra.mxu0 %v2706
        %2708 = vmatprep.subr.mxu0 0.0
        %v2709 = vand.u32 %v453, 4294901760
        %v2710 = vsub.f32 %v453, %v2709
        %v2711 = vand.u32 %v2710, 4294901760
        %2712 = vmatpush1.msra.mxu0 %v2711
        %2713 = vmatprep.subr.mxu0 0.0
        %v2714 = vand.u32 %v454, 4294901760
        %v2715 = vsub.f32 %v454, %v2714
        %v2716 = vand.u32 %v2715, 4294901760
        %2717 = vmatpush1.msra.mxu0 %v2716
        %2718 = vmatprep.subr.mxu0 0.0
        %v2719 = vand.u32 %v455, 4294901760
        %v2720 = vsub.f32 %v455, %v2719
        %v2721 = vand.u32 %v2720, 4294901760
        %2722 = vmatpush1.msra.mxu0 %v2721
        %2723 = vmatprep.subr.mxu0 0.0
        %v2724 = vand.u32 %v456, 4294901760
        %v2725 = vsub.f32 %v456, %v2724
        %v2726 = vand.u32 %v2725, 4294901760
        %2727 = vmatpush1.msra.mxu0 %v2726
        %2728 = vmatprep.subr.mxu0 0.0
        %v2729 = vand.u32 %v457, 4294901760
        %v2730 = vsub.f32 %v457, %v2729
        %v2731 = vand.u32 %v2730, 4294901760
        %2732 = vmatpush1.msra.mxu0 %v2731
        %2733 = vmatprep.subr.mxu0 0.0
        %v2734 = vand.u32 %v458, 4294901760
        %v2735 = vsub.f32 %v458, %v2734
        %v2736 = vand.u32 %v2735, 4294901760
        %2737 = vmatpush1.msra.mxu0 %v2736
        %2738 = vmatprep.subr.mxu0 0.0
        %v2739 = vand.u32 %v459, 4294901760
        %v2740 = vsub.f32 %v459, %v2739
        %v2741 = vand.u32 %v2740, 4294901760
        %2742 = vmatpush1.msra.mxu0 %v2741
        %2743 = vmatprep.subr.mxu0 0.0
        %v2744 = vand.u32 %v460, 4294901760
        %v2745 = vsub.f32 %v460, %v2744
        %v2746 = vand.u32 %v2745, 4294901760
        %2747 = vmatpush1.msra.mxu0 %v2746
        %2748 = vmatprep.subr.mxu0 0.0
        %v2749 = vand.u32 %v461, 4294901760
        %v2750 = vsub.f32 %v461, %v2749
        %v2751 = vand.u32 %v2750, 4294901760
        %2752 = vmatpush1.msra.mxu0 %v2751
        %2753 = vmatprep.subr.mxu0 0.0
        %v2754 = vand.u32 %v462, 4294901760
        %v2755 = vsub.f32 %v462, %v2754
        %v2756 = vand.u32 %v2755, 4294901760
        %2757 = vmatpush1.msra.mxu0 %v2756
        %2758 = vmatprep.subr.mxu0 0.0
        %v2759 = vand.u32 %v463, 4294901760
        %v2760 = vsub.f32 %v463, %v2759
        %v2761 = vand.u32 %v2760, 4294901760
        %2762 = vmatpush1.msra.mxu0 %v2761
        %2763 = vmatprep.subr.mxu0 0.0
        %v2764 = vand.u32 %v464, 4294901760
        %v2765 = vsub.f32 %v464, %v2764
        %v2766 = vand.u32 %v2765, 4294901760
        %2767 = vmatpush1.msra.mxu0 %v2766
        %2768 = vmatprep.subr.mxu0 0.0
        %v2769 = vand.u32 %v465, 4294901760
        %v2770 = vsub.f32 %v465, %v2769
        %v2771 = vand.u32 %v2770, 4294901760
        %2772 = vmatpush1.msra.mxu0 %v2771
        %2773 = vmatprep.subr.mxu0 0.0
        %2774 = vmatpush1.msra.mxu0 0.0
        %2775 = vmatprep.subr.mxu0 0.0
        %2776 = vmatpush1.msra.mxu0 0.0
        %2777 = vmatprep.subr.mxu0 0.0
        %2778 = vmatpush1.msra.mxu0 0.0
        %2779 = vmatprep.subr.mxu0 0.0
        %2780 = vmatpush1.msra.mxu0 0.0
        %2781 = vmatprep.subr.mxu0 0.0
        %2782 = vmatpush1.msra.mxu0 0.0
        %2783 = vmatprep.subr.mxu0 0.0
        %2784 = vmatpush1.msra.mxu0 0.0
        %2785 = vmatprep.subr.mxu0 0.0
        %2786 = vmatpush1.msra.mxu0 0.0
        %2787 = vmatprep.subr.mxu0 0.0
        %2788 = vmatpush1.msra.mxu0 0.0
        %2789 = vmatprep.subr.mxu0 0.0
        %2790 = vmatpush1.msra.mxu0 0.0
        %2791 = vmatprep.subr.mxu0 0.0
        %2792 = vmatpush1.msra.mxu0 0.0
        %2793 = vmatprep.subr.mxu0 0.0
        %2794 = vmatpush1.msra.mxu0 0.0
        %2795 = vmatprep.subr.mxu0 0.0
        %2796 = vmatpush1.msra.mxu0 0.0
        %2797 = vmatprep.subr.mxu0 0.0
        %2798 = vmatpush1.msra.mxu0 0.0
        %2799 = vmatprep.subr.mxu0 0.0
        %2800 = vmatpush1.msra.mxu0 0.0
        %2801 = vmatprep.subr.mxu0 0.0
        %2802 = vmatpush1.msra.mxu0 0.0
        %2803 = vmatprep.subr.mxu0 0.0
        %2804 = vmatpush1.msra.mxu0 0.0
        %2805 = vmatprep.mubr.f32.mxu0 0.0
        %v2806 = vand.u32 %v2256, 4294901760
        %2807 = vmatmul.mubr.f32.gmra.mrb[0].mxu0 %v2806
        %v2808 = vpop.f32.mrb[0].mxu0
        %v2809 = vadd.f32 %v2690, %v2808
        %v2810 = vpop.f32.mrb[0].mxu0
        %2811 = vdwg.mxu0
        %2812 = vmatprep.subr.mxu0 0.0
        %v2813 = vand.u32 %v450, 4294901760
        %2814 = vmatpush1.msra.mxu0 %v2813
        %2815 = vmatprep.subr.mxu0 0.0
        %v2816 = vand.u32 %v451, 4294901760
        %2817 = vmatpush1.msra.mxu0 %v2816
        %2818 = vmatprep.subr.mxu0 0.0
        %v2819 = vand.u32 %v452, 4294901760
        %2820 = vmatpush1.msra.mxu0 %v2819
        %2821 = vmatprep.subr.mxu0 0.0
        %v2822 = vand.u32 %v453, 4294901760
        %2823 = vmatpush1.msra.mxu0 %v2822
        %2824 = vmatprep.subr.mxu0 0.0
        %v2825 = vand.u32 %v454, 4294901760
        %2826 = vmatpush1.msra.mxu0 %v2825
        %2827 = vmatprep.subr.mxu0 0.0
        %v2828 = vand.u32 %v455, 4294901760
        %2829 = vmatpush1.msra.mxu0 %v2828
        %2830 = vmatprep.subr.mxu0 0.0
        %v2831 = vand.u32 %v456, 4294901760
        %2832 = vmatpush1.msra.mxu0 %v2831
        %2833 = vmatprep.subr.mxu0 0.0
        %v2834 = vand.u32 %v457, 4294901760
        %2835 = vmatpush1.msra.mxu0 %v2834
        %2836 = vmatprep.subr.mxu0 0.0
        %v2837 = vand.u32 %v458, 4294901760
        %2838 = vmatpush1.msra.mxu0 %v2837
        %2839 = vmatprep.subr.mxu0 0.0
        %v2840 = vand.u32 %v459, 4294901760
        %2841 = vmatpush1.msra.mxu0 %v2840
        %2842 = vmatprep.subr.mxu0 0.0
        %v2843 = vand.u32 %v460, 4294901760
        %2844 = vmatpush1.msra.mxu0 %v2843
        %2845 = vmatprep.subr.mxu0 0.0
        %v2846 = vand.u32 %v461, 4294901760
        %2847 = vmatpush1.msra.mxu0 %v2846
        %2848 = vmatprep.subr.mxu0 0.0
        %v2849 = vand.u32 %v462, 4294901760
        %2850 = vmatpush1.msra.mxu0 %v2849
        %2851 = vmatprep.subr.mxu0 0.0
        %v2852 = vand.u32 %v463, 4294901760
        %2853 = vmatpush1.msra.mxu0 %v2852
        %2854 = vmatprep.subr.mxu0 0.0
        %v2855 = vand.u32 %v464, 4294901760
        %2856 = vmatpush1.msra.mxu0 %v2855
        %2857 = vmatprep.subr.mxu0 0.0
        %v2858 = vand.u32 %v465, 4294901760
        %2859 = vmatpush1.msra.mxu0 %v2858
        %2860 = vmatprep.subr.mxu0 0.0
        %2861 = vmatpush1.msra.mxu0 0.0
        %2862 = vmatprep.subr.mxu0 0.0
        %2863 = vmatpush1.msra.mxu0 0.0
        %2864 = vmatprep.subr.mxu0 0.0
        %2865 = vmatpush1.msra.mxu0 0.0
        %2866 = vmatprep.subr.mxu0 0.0
        %2867 = vmatpush1.msra.mxu0 0.0
        %2868 = vmatprep.subr.mxu0 0.0
        %2869 = vmatpush1.msra.mxu0 0.0
        %2870 = vmatprep.subr.mxu0 0.0
        %2871 = vmatpush1.msra.mxu0 0.0
        %2872 = vmatprep.subr.mxu0 0.0
        %2873 = vmatpush1.msra.mxu0 0.0
        %2874 = vmatprep.subr.mxu0 0.0
        %2875 = vmatpush1.msra.mxu0 0.0
        %2876 = vmatprep.subr.mxu0 0.0
        %2877 = vmatpush1.msra.mxu0 0.0
        %2878 = vmatprep.subr.mxu0 0.0
        %2879 = vmatpush1.msra.mxu0 0.0
        %2880 = vmatprep.subr.mxu0 0.0
        %2881 = vmatpush1.msra.mxu0 0.0
        %2882 = vmatprep.subr.mxu0 0.0
        %2883 = vmatpush1.msra.mxu0 0.0
        %2884 = vmatprep.subr.mxu0 0.0
        %2885 = vmatpush1.msra.mxu0 0.0
        %2886 = vmatprep.subr.mxu0 0.0
        %2887 = vmatpush1.msra.mxu0 0.0
        %2888 = vmatprep.subr.mxu0 0.0
        %2889 = vmatpush1.msra.mxu0 0.0
        %2890 = vmatprep.subr.mxu0 0.0
        %2891 = vmatpush1.msra.mxu0 0.0
        %2892 = vmatprep.mubr.f32.mxu0 0.0
        %v2893 = vand.u32 %v2256, 4294901760
        %2894 = vmatmul.mubr.f32.gmra.mrb[0].mxu0 %v2893
        %v2895 = vpop.f32.mrb[0].mxu0
        %v2896 = vadd.f32 %v2809, %v2895
        %v2897 = vpop.f32.mrb[0].mxu0
        %2898 = vdwg.mxu0
        %2899 = vmatprep.subr.mxu0 0.0
        %v2900 = vand.u32 %v450, 4294901760
        %2901 = vmatpush1.msra.mxu0 %v2900
        %2902 = vmatprep.subr.mxu0 0.0
        %v2903 = vand.u32 %v451, 4294901760
        %2904 = vmatpush1.msra.mxu0 %v2903
        %2905 = vmatprep.subr.mxu0 0.0
        %v2906 = vand.u32 %v452, 4294901760
        %2907 = vmatpush1.msra.mxu0 %v2906
        %2908 = vmatprep.subr.mxu0 0.0
        %v2909 = vand.u32 %v453, 4294901760
        %2910 = vmatpush1.msra.mxu0 %v2909
        %2911 = vmatprep.subr.mxu0 0.0
        %v2912 = vand.u32 %v454, 4294901760
        %2913 = vmatpush1.msra.mxu0 %v2912
        %2914 = vmatprep.subr.mxu0 0.0
        %v2915 = vand.u32 %v455, 4294901760
        %2916 = vmatpush1.msra.mxu0 %v2915
        %2917 = vmatprep.subr.mxu0 0.0
        %v2918 = vand.u32 %v456, 4294901760
        %2919 = vmatpush1.msra.mxu0 %v2918
        %2920 = vmatprep.subr.mxu0 0.0
        %v2921 = vand.u32 %v457, 4294901760
        %2922 = vmatpush1.msra.mxu0 %v2921
        %2923 = vmatprep.subr.mxu0 0.0
        %v2924 = vand.u32 %v458, 4294901760
        %2925 = vmatpush1.msra.mxu0 %v2924
        %2926 = vmatprep.subr.mxu0 0.0
        %v2927 = vand.u32 %v459, 4294901760
        %2928 = vmatpush1.msra.mxu0 %v2927
        %2929 = vmatprep.subr.mxu0 0.0
        %v2930 = vand.u32 %v460, 4294901760
        %2931 = vmatpush1.msra.mxu0 %v2930
        %2932 = vmatprep.subr.mxu0 0.0
        %v2933 = vand.u32 %v461, 4294901760
        %2934 = vmatpush1.msra.mxu0 %v2933
        %2935 = vmatprep.subr.mxu0 0.0
        %v2936 = vand.u32 %v462, 4294901760
        %2937 = vmatpush1.msra.mxu0 %v2936
        %2938 = vmatprep.subr.mxu0 0.0
        %v2939 = vand.u32 %v463, 4294901760
        %2940 = vmatpush1.msra.mxu0 %v2939
        %2941 = vmatprep.subr.mxu0 0.0
        %v2942 = vand.u32 %v464, 4294901760
        %2943 = vmatpush1.msra.mxu0 %v2942
        %2944 = vmatprep.subr.mxu0 0.0
        %v2945 = vand.u32 %v465, 4294901760
        %2946 = vmatpush1.msra.mxu0 %v2945
        %2947 = vmatprep.subr.mxu0 0.0
        %2948 = vmatpush1.msra.mxu0 0.0
        %2949 = vmatprep.subr.mxu0 0.0
        %2950 = vmatpush1.msra.mxu0 0.0
        %2951 = vmatprep.subr.mxu0 0.0
        %2952 = vmatpush1.msra.mxu0 0.0
        %2953 = vmatprep.subr.mxu0 0.0
        %2954 = vmatpush1.msra.mxu0 0.0
        %2955 = vmatprep.subr.mxu0 0.0
        %2956 = vmatpush1.msra.mxu0 0.0
        %2957 = vmatprep.subr.mxu0 0.0
        %2958 = vmatpush1.msra.mxu0 0.0
        %2959 = vmatprep.subr.mxu0 0.0
        %2960 = vmatpush1.msra.mxu0 0.0
        %2961 = vmatprep.subr.mxu0 0.0
        %2962 = vmatpush1.msra.mxu0 0.0
        %2963 = vmatprep.subr.mxu0 0.0
        %2964 = vmatpush1.msra.mxu0 0.0
        %2965 = vmatprep.subr.mxu0 0.0
        %2966 = vmatpush1.msra.mxu0 0.0
        %2967 = vmatprep.subr.mxu0 0.0
        %2968 = vmatpush1.msra.mxu0 0.0
        %2969 = vmatprep.subr.mxu0 0.0
        %2970 = vmatpush1.msra.mxu0 0.0
        %2971 = vmatprep.subr.mxu0 0.0
        %2972 = vmatpush1.msra.mxu0 0.0
        %2973 = vmatprep.subr.mxu0 0.0
        %2974 = vmatpush1.msra.mxu0 0.0
        %2975 = vmatprep.subr.mxu0 0.0
        %2976 = vmatpush1.msra.mxu0 0.0
        %2977 = vmatprep.subr.mxu0 0.0
        %2978 = vmatpush1.msra.mxu0 0.0
        %2979 = vmatprep.mubr.f32.mxu0 0.0
        %v2980 = vand.u32 %v2257, 4294901760
        %v2981 = vsub.f32 %v2257, %v2980
        %v2982 = vand.u32 %v2981, 4294901760
        %v2983 = vsub.f32 %v2981, %v2982
        %v2984 = vand.u32 %v2983, 4294901760
        %2985 = vmatmul.mubr.f32.gmra.mrb[0].mxu0 %v2984
        %v2986 = vpop.f32.mrb[0].mxu0
        %v2987 = vadd.f32 0.0, %v2986
        %v2988 = vpop.f32.mrb[0].mxu0
        %2989 = vdwg.mxu0
        %2990 = vmatprep.subr.mxu0 0.0
        %v2991 = vand.u32 %v450, 4294901760
        %v2992 = vsub.f32 %v450, %v2991
        %v2993 = vand.u32 %v2992, 4294901760
        %v2994 = vsub.f32 %v2992, %v2993
        %v2995 = vand.u32 %v2994, 4294901760
        %2996 = vmatpush1.msra.mxu0 %v2995
        %2997 = vmatprep.subr.mxu0 0.0
        %v2998 = vand.u32 %v451, 4294901760
        %v2999 = vsub.f32 %v451, %v2998
        %v3000 = vand.u32 %v2999, 4294901760
        %v3001 = vsub.f32 %v2999, %v3000
        %v3002 = vand.u32 %v3001, 4294901760
        %3003 = vmatpush1.msra.mxu0 %v3002
        %3004 = vmatprep.subr.mxu0 0.0
        %v3005 = vand.u32 %v452, 4294901760
        %v3006 = vsub.f32 %v452, %v3005
        %v3007 = vand.u32 %v3006, 4294901760
        %v3008 = vsub.f32 %v3006, %v3007
        %v3009 = vand.u32 %v3008, 4294901760
        %3010 = vmatpush1.msra.mxu0 %v3009
        %3011 = vmatprep.subr.mxu0 0.0
        %v3012 = vand.u32 %v453, 4294901760
        %v3013 = vsub.f32 %v453, %v3012
        %v3014 = vand.u32 %v3013, 4294901760
        %v3015 = vsub.f32 %v3013, %v3014
        %v3016 = vand.u32 %v3015, 4294901760
        %3017 = vmatpush1.msra.mxu0 %v3016
        %3018 = vmatprep.subr.mxu0 0.0
        %v3019 = vand.u32 %v454, 4294901760
        %v3020 = vsub.f32 %v454, %v3019
        %v3021 = vand.u32 %v3020, 4294901760
        %v3022 = vsub.f32 %v3020, %v3021
        %v3023 = vand.u32 %v3022, 4294901760
        %3024 = vmatpush1.msra.mxu0 %v3023
        %3025 = vmatprep.subr.mxu0 0.0
        %v3026 = vand.u32 %v455, 4294901760
        %v3027 = vsub.f32 %v455, %v3026
        %v3028 = vand.u32 %v3027, 4294901760
        %v3029 = vsub.f32 %v3027, %v3028
        %v3030 = vand.u32 %v3029, 4294901760
        %3031 = vmatpush1.msra.mxu0 %v3030
        %3032 = vmatprep.subr.mxu0 0.0
        %v3033 = vand.u32 %v456, 4294901760
        %v3034 = vsub.f32 %v456, %v3033
        %v3035 = vand.u32 %v3034, 4294901760
        %v3036 = vsub.f32 %v3034, %v3035
        %v3037 = vand.u32 %v3036, 4294901760
        %3038 = vmatpush1.msra.mxu0 %v3037
        %3039 = vmatprep.subr.mxu0 0.0
        %v3040 = vand.u32 %v457, 4294901760
        %v3041 = vsub.f32 %v457, %v3040
        %v3042 = vand.u32 %v3041, 4294901760
        %v3043 = vsub.f32 %v3041, %v3042
        %v3044 = vand.u32 %v3043, 4294901760
        %3045 = vmatpush1.msra.mxu0 %v3044
        %3046 = vmatprep.subr.mxu0 0.0
        %v3047 = vand.u32 %v458, 4294901760
        %v3048 = vsub.f32 %v458, %v3047
        %v3049 = vand.u32 %v3048, 4294901760
        %v3050 = vsub.f32 %v3048, %v3049
        %v3051 = vand.u32 %v3050, 4294901760
        %3052 = vmatpush1.msra.mxu0 %v3051
        %3053 = vmatprep.subr.mxu0 0.0
        %v3054 = vand.u32 %v459, 4294901760
        %v3055 = vsub.f32 %v459, %v3054
        %v3056 = vand.u32 %v3055, 4294901760
        %v3057 = vsub.f32 %v3055, %v3056
        %v3058 = vand.u32 %v3057, 4294901760
        %3059 = vmatpush1.msra.mxu0 %v3058
        %3060 = vmatprep.subr.mxu0 0.0
        %v3061 = vand.u32 %v460, 4294901760
        %v3062 = vsub.f32 %v460, %v3061
        %v3063 = vand.u32 %v3062, 4294901760
        %v3064 = vsub.f32 %v3062, %v3063
        %v3065 = vand.u32 %v3064, 4294901760
        %3066 = vmatpush1.msra.mxu0 %v3065
        %3067 = vmatprep.subr.mxu0 0.0
        %v3068 = vand.u32 %v461, 4294901760
        %v3069 = vsub.f32 %v461, %v3068
        %v3070 = vand.u32 %v3069, 4294901760
        %v3071 = vsub.f32 %v3069, %v3070
        %v3072 = vand.u32 %v3071, 4294901760
        %3073 = vmatpush1.msra.mxu0 %v3072
        %3074 = vmatprep.subr.mxu0 0.0
        %v3075 = vand.u32 %v462, 4294901760
        %v3076 = vsub.f32 %v462, %v3075
        %v3077 = vand.u32 %v3076, 4294901760
        %v3078 = vsub.f32 %v3076, %v3077
        %v3079 = vand.u32 %v3078, 4294901760
        %3080 = vmatpush1.msra.mxu0 %v3079
        %3081 = vmatprep.subr.mxu0 0.0
        %v3082 = vand.u32 %v463, 4294901760
        %v3083 = vsub.f32 %v463, %v3082
        %v3084 = vand.u32 %v3083, 4294901760
        %v3085 = vsub.f32 %v3083, %v3084
        %v3086 = vand.u32 %v3085, 4294901760
        %3087 = vmatpush1.msra.mxu0 %v3086
        %3088 = vmatprep.subr.mxu0 0.0
        %v3089 = vand.u32 %v464, 4294901760
        %v3090 = vsub.f32 %v464, %v3089
        %v3091 = vand.u32 %v3090, 4294901760
        %v3092 = vsub.f32 %v3090, %v3091
        %v3093 = vand.u32 %v3092, 4294901760
        %3094 = vmatpush1.msra.mxu0 %v3093
        %3095 = vmatprep.subr.mxu0 0.0
        %v3096 = vand.u32 %v465, 4294901760
        %v3097 = vsub.f32 %v465, %v3096
        %v3098 = vand.u32 %v3097, 4294901760
        %v3099 = vsub.f32 %v3097, %v3098
        %v3100 = vand.u32 %v3099, 4294901760
        %3101 = vmatpush1.msra.mxu0 %v3100
        %3102 = vmatprep.subr.mxu0 0.0
        %3103 = vmatpush1.msra.mxu0 0.0
        %3104 = vmatprep.subr.mxu0 0.0
        %3105 = vmatpush1.msra.mxu0 0.0
        %3106 = vmatprep.subr.mxu0 0.0
        %3107 = vmatpush1.msra.mxu0 0.0
        %3108 = vmatprep.subr.mxu0 0.0
        %3109 = vmatpush1.msra.mxu0 0.0
        %3110 = vmatprep.subr.mxu0 0.0
        %3111 = vmatpush1.msra.mxu0 0.0
        %3112 = vmatprep.subr.mxu0 0.0
        %3113 = vmatpush1.msra.mxu0 0.0
        %3114 = vmatprep.subr.mxu0 0.0
        %3115 = vmatpush1.msra.mxu0 0.0
        %3116 = vmatprep.subr.mxu0 0.0
        %3117 = vmatpush1.msra.mxu0 0.0
        %3118 = vmatprep.subr.mxu0 0.0
        %3119 = vmatpush1.msra.mxu0 0.0
        %3120 = vmatprep.subr.mxu0 0.0
        %3121 = vmatpush1.msra.mxu0 0.0
        %3122 = vmatprep.subr.mxu0 0.0
        %3123 = vmatpush1.msra.mxu0 0.0
        %3124 = vmatprep.subr.mxu0 0.0
        %3125 = vmatpush1.msra.mxu0 0.0
        %3126 = vmatprep.subr.mxu0 0.0
        %3127 = vmatpush1.msra.mxu0 0.0
        %3128 = vmatprep.subr.mxu0 0.0
        %3129 = vmatpush1.msra.mxu0 0.0
        %3130 = vmatprep.subr.mxu0 0.0
        %3131 = vmatpush1.msra.mxu0 0.0
        %3132 = vmatprep.subr.mxu0 0.0
        %3133 = vmatpush1.msra.mxu0 0.0
        %3134 = vmatprep.mubr.f32.mxu0 0.0
        %v3135 = vand.u32 %v2257, 4294901760
        %3136 = vmatmul.mubr.f32.gmra.mrb[0].mxu0 %v3135
        %v3137 = vpop.f32.mrb[0].mxu0
        %v3138 = vadd.f32 %v2987, %v3137
        %v3139 = vpop.f32.mrb[0].mxu0
        %3140 = vdwg.mxu0
        %3141 = vmatprep.subr.mxu0 0.0
        %v3142 = vand.u32 %v450, 4294901760
        %v3143 = vsub.f32 %v450, %v3142
        %3144 = vmatpush1.msra.mxu0 %v3143
        %3145 = vmatprep.subr.mxu0 0.0
        %v3146 = vand.u32 %v451, 4294901760
        %v3147 = vsub.f32 %v451, %v3146
        %3148 = vmatpush1.msra.mxu0 %v3147
        %3149 = vmatprep.subr.mxu0 0.0
        %v3150 = vand.u32 %v452, 4294901760
        %v3151 = vsub.f32 %v452, %v3150
        %3152 = vmatpush1.msra.mxu0 %v3151
        %3153 = vmatprep.subr.mxu0 0.0
        %v3154 = vand.u32 %v453, 4294901760
        %v3155 = vsub.f32 %v453, %v3154
        %3156 = vmatpush1.msra.mxu0 %v3155
        %3157 = vmatprep.subr.mxu0 0.0
        %v3158 = vand.u32 %v454, 4294901760
        %v3159 = vsub.f32 %v454, %v3158
        %3160 = vmatpush1.msra.mxu0 %v3159
        %3161 = vmatprep.subr.mxu0 0.0
        %v3162 = vand.u32 %v455, 4294901760
        %v3163 = vsub.f32 %v455, %v3162
        %3164 = vmatpush1.msra.mxu0 %v3163
        %3165 = vmatprep.subr.mxu0 0.0
        %v3166 = vand.u32 %v456, 4294901760
        %v3167 = vsub.f32 %v456, %v3166
        %3168 = vmatpush1.msra.mxu0 %v3167
        %3169 = vmatprep.subr.mxu0 0.0
        %v3170 = vand.u32 %v457, 4294901760
        %v3171 = vsub.f32 %v457, %v3170
        %3172 = vmatpush1.msra.mxu0 %v3171
        %3173 = vmatprep.subr.mxu0 0.0
        %v3174 = vand.u32 %v458, 4294901760
        %v3175 = vsub.f32 %v458, %v3174
        %3176 = vmatpush1.msra.mxu0 %v3175
        %3177 = vmatprep.subr.mxu0 0.0
        %v3178 = vand.u32 %v459, 4294901760
        %v3179 = vsub.f32 %v459, %v3178
        %3180 = vmatpush1.msra.mxu0 %v3179
        %3181 = vmatprep.subr.mxu0 0.0
        %v3182 = vand.u32 %v460, 4294901760
        %v3183 = vsub.f32 %v460, %v3182
        %3184 = vmatpush1.msra.mxu0 %v3183
        %3185 = vmatprep.subr.mxu0 0.0
        %v3186 = vand.u32 %v461, 4294901760
        %v3187 = vsub.f32 %v461, %v3186
        %3188 = vmatpush1.msra.mxu0 %v3187
        %3189 = vmatprep.subr.mxu0 0.0
        %v3190 = vand.u32 %v462, 4294901760
        %v3191 = vsub.f32 %v462, %v3190
        %3192 = vmatpush1.msra.mxu0 %v3191
        %3193 = vmatprep.subr.mxu0 0.0
        %v3194 = vand.u32 %v463, 4294901760
        %v3195 = vsub.f32 %v463, %v3194
        %3196 = vmatpush1.msra.mxu0 %v3195
        %3197 = vmatprep.subr.mxu0 0.0
        %v3198 = vand.u32 %v464, 4294901760
        %v3199 = vsub.f32 %v464, %v3198
        %3200 = vmatpush1.msra.mxu0 %v3199
        %3201 = vmatprep.subr.mxu0 0.0
        %v3202 = vand.u32 %v465, 4294901760
        %v3203 = vsub.f32 %v465, %v3202
        %3204 = vmatpush1.msra.mxu0 %v3203
        %3205 = vmatprep.subr.mxu0 0.0
        %3206 = vmatpush1.msra.mxu0 0.0
        %3207 = vmatprep.subr.mxu0 0.0
        %3208 = vmatpush1.msra.mxu0 0.0
        %3209 = vmatprep.subr.mxu0 0.0
        %3210 = vmatpush1.msra.mxu0 0.0
        %3211 = vmatprep.subr.mxu0 0.0
        %3212 = vmatpush1.msra.mxu0 0.0
        %3213 = vmatprep.subr.mxu0 0.0
        %3214 = vmatpush1.msra.mxu0 0.0
        %3215 = vmatprep.subr.mxu0 0.0
        %3216 = vmatpush1.msra.mxu0 0.0
        %3217 = vmatprep.subr.mxu0 0.0
        %3218 = vmatpush1.msra.mxu0 0.0
        %3219 = vmatprep.subr.mxu0 0.0
        %3220 = vmatpush1.msra.mxu0 0.0
        %3221 = vmatprep.subr.mxu0 0.0
        %3222 = vmatpush1.msra.mxu0 0.0
        %3223 = vmatprep.subr.mxu0 0.0
        %3224 = vmatpush1.msra.mxu0 0.0
        %3225 = vmatprep.subr.mxu0 0.0
        %3226 = vmatpush1.msra.mxu0 0.0
        %3227 = vmatprep.subr.mxu0 0.0
        %3228 = vmatpush1.msra.mxu0 0.0
        %3229 = vmatprep.subr.mxu0 0.0
        %3230 = vmatpush1.msra.mxu0 0.0
        %3231 = vmatprep.subr.mxu0 0.0
        %3232 = vmatpush1.msra.mxu0 0.0
        %3233 = vmatprep.subr.mxu0 0.0
        %3234 = vmatpush1.msra.mxu0 0.0
        %3235 = vmatprep.subr.mxu0 0.0
        %3236 = vmatpush1.msra.mxu0 0.0
        %3237 = vmatprep.mubr.f32.mxu0 0.0
        %v3238 = vand.u32 %v2257, 4294901760
        %v3239 = vsub.f32 %v2257, %v3238
        %3240 = vmatmul.mubr.f32.gmra.mrb[0].mxu0 %v3239
        %v3241 = vpop.f32.mrb[0].mxu0
        %v3242 = vadd.f32 %v3138, %v3241
        %v3243 = vpop.f32.mrb[0].mxu0
        %3244 = vdwg.mxu0
        %3245 = vmatprep.subr.mxu0 0.0
        %v3246 = vand.u32 %v450, 4294901760
        %3247 = vmatpush1.msra.mxu0 %v3246
        %3248 = vmatprep.subr.mxu0 0.0
        %v3249 = vand.u32 %v451, 4294901760
        %3250 = vmatpush1.msra.mxu0 %v3249
        %3251 = vmatprep.subr.mxu0 0.0
        %v3252 = vand.u32 %v452, 4294901760
        %3253 = vmatpush1.msra.mxu0 %v3252
        %3254 = vmatprep.subr.mxu0 0.0
        %v3255 = vand.u32 %v453, 4294901760
        %3256 = vmatpush1.msra.mxu0 %v3255
        %3257 = vmatprep.subr.mxu0 0.0
        %v3258 = vand.u32 %v454, 4294901760
        %3259 = vmatpush1.msra.mxu0 %v3258
        %3260 = vmatprep.subr.mxu0 0.0
        %v3261 = vand.u32 %v455, 4294901760
        %3262 = vmatpush1.msra.mxu0 %v3261
        %3263 = vmatprep.subr.mxu0 0.0
        %v3264 = vand.u32 %v456, 4294901760
        %3265 = vmatpush1.msra.mxu0 %v3264
        %3266 = vmatprep.subr.mxu0 0.0
        %v3267 = vand.u32 %v457, 4294901760
        %3268 = vmatpush1.msra.mxu0 %v3267
        %3269 = vmatprep.subr.mxu0 0.0
        %v3270 = vand.u32 %v458, 4294901760
        %3271 = vmatpush1.msra.mxu0 %v3270
        %3272 = vmatprep.subr.mxu0 0.0
        %v3273 = vand.u32 %v459, 4294901760
        %3274 = vmatpush1.msra.mxu0 %v3273
        %3275 = vmatprep.subr.mxu0 0.0
        %v3276 = vand.u32 %v460, 4294901760
        %3277 = vmatpush1.msra.mxu0 %v3276
        %3278 = vmatprep.subr.mxu0 0.0
        %v3279 = vand.u32 %v461, 4294901760
        %3280 = vmatpush1.msra.mxu0 %v3279
        %3281 = vmatprep.subr.mxu0 0.0
        %v3282 = vand.u32 %v462, 4294901760
        %3283 = vmatpush1.msra.mxu0 %v3282
        %3284 = vmatprep.subr.mxu0 0.0
        %v3285 = vand.u32 %v463, 4294901760
        %3286 = vmatpush1.msra.mxu0 %v3285
        %3287 = vmatprep.subr.mxu0 0.0
        %v3288 = vand.u32 %v464, 4294901760
        %3289 = vmatpush1.msra.mxu0 %v3288
        %3290 = vmatprep.subr.mxu0 0.0
        %v3291 = vand.u32 %v465, 4294901760
        %3292 = vmatpush1.msra.mxu0 %v3291
        %3293 = vmatprep.subr.mxu0 0.0
        %3294 = vmatpush1.msra.mxu0 0.0
        %3295 = vmatprep.subr.mxu0 0.0
        %3296 = vmatpush1.msra.mxu0 0.0
        %3297 = vmatprep.subr.mxu0 0.0
        %3298 = vmatpush1.msra.mxu0 0.0
        %3299 = vmatprep.subr.mxu0 0.0
        %3300 = vmatpush1.msra.mxu0 0.0
        %3301 = vmatprep.subr.mxu0 0.0
        %3302 = vmatpush1.msra.mxu0 0.0
        %3303 = vmatprep.subr.mxu0 0.0
        %3304 = vmatpush1.msra.mxu0 0.0
        %3305 = vmatprep.subr.mxu0 0.0
        %3306 = vmatpush1.msra.mxu0 0.0
        %3307 = vmatprep.subr.mxu0 0.0
        %3308 = vmatpush1.msra.mxu0 0.0
        %3309 = vmatprep.subr.mxu0 0.0
        %3310 = vmatpush1.msra.mxu0 0.0
        %3311 = vmatprep.subr.mxu0 0.0
        %3312 = vmatpush1.msra.mxu0 0.0
        %3313 = vmatprep.subr.mxu0 0.0
        %3314 = vmatpush1.msra.mxu0 0.0
        %3315 = vmatprep.subr.mxu0 0.0
        %3316 = vmatpush1.msra.mxu0 0.0
        %3317 = vmatprep.subr.mxu0 0.0
        %3318 = vmatpush1.msra.mxu0 0.0
        %3319 = vmatprep.subr.mxu0 0.0
        %3320 = vmatpush1.msra.mxu0 0.0
        %3321 = vmatprep.subr.mxu0 0.0
        %3322 = vmatpush1.msra.mxu0 0.0
        %3323 = vmatprep.subr.mxu0 0.0
        %3324 = vmatpush1.msra.mxu0 0.0
        %3325 = vmatprep.mubr.f32.mxu0 0.0
        %v3326 = vand.u32 %v2257, 4294901760
        %v3327 = vsub.f32 %v2257, %v3326
        %v3328 = vand.u32 %v3327, 4294901760
        %3329 = vmatmul.mubr.f32.gmra.mrb[0].mxu0 %v3328
        %v3330 = vpop.f32.mrb[0].mxu0
        %v3331 = vadd.f32 %v3242, %v3330
        %v3332 = vpop.f32.mrb[0].mxu0
        %3333 = vdwg.mxu0
        %3334 = vmatprep.subr.mxu0 0.0
        %v3335 = vand.u32 %v450, 4294901760
        %v3336 = vsub.f32 %v450, %v3335
        %v3337 = vand.u32 %v3336, 4294901760
        %3338 = vmatpush1.msra.mxu0 %v3337
        %3339 = vmatprep.subr.mxu0 0.0
        %v3340 = vand.u32 %v451, 4294901760
        %v3341 = vsub.f32 %v451, %v3340
        %v3342 = vand.u32 %v3341, 4294901760
        %3343 = vmatpush1.msra.mxu0 %v3342
        %3344 = vmatprep.subr.mxu0 0.0
        %v3345 = vand.u32 %v452, 4294901760
        %v3346 = vsub.f32 %v452, %v3345
        %v3347 = vand.u32 %v3346, 4294901760
        %3348 = vmatpush1.msra.mxu0 %v3347
        %3349 = vmatprep.subr.mxu0 0.0
        %v3350 = vand.u32 %v453, 4294901760
        %v3351 = vsub.f32 %v453, %v3350
        %v3352 = vand.u32 %v3351, 4294901760
        %3353 = vmatpush1.msra.mxu0 %v3352
        %3354 = vmatprep.subr.mxu0 0.0
        %v3355 = vand.u32 %v454, 4294901760
        %v3356 = vsub.f32 %v454, %v3355
        %v3357 = vand.u32 %v3356, 4294901760
        %3358 = vmatpush1.msra.mxu0 %v3357
        %3359 = vmatprep.subr.mxu0 0.0
        %v3360 = vand.u32 %v455, 4294901760
        %v3361 = vsub.f32 %v455, %v3360
        %v3362 = vand.u32 %v3361, 4294901760
        %3363 = vmatpush1.msra.mxu0 %v3362
        %3364 = vmatprep.subr.mxu0 0.0
        %v3365 = vand.u32 %v456, 4294901760
        %v3366 = vsub.f32 %v456, %v3365
        %v3367 = vand.u32 %v3366, 4294901760
        %3368 = vmatpush1.msra.mxu0 %v3367
        %3369 = vmatprep.subr.mxu0 0.0
        %v3370 = vand.u32 %v457, 4294901760
        %v3371 = vsub.f32 %v457, %v3370
        %v3372 = vand.u32 %v3371, 4294901760
        %3373 = vmatpush1.msra.mxu0 %v3372
        %3374 = vmatprep.subr.mxu0 0.0
        %v3375 = vand.u32 %v458, 4294901760
        %v3376 = vsub.f32 %v458, %v3375
        %v3377 = vand.u32 %v3376, 4294901760
        %3378 = vmatpush1.msra.mxu0 %v3377
        %3379 = vmatprep.subr.mxu0 0.0
        %v3380 = vand.u32 %v459, 4294901760
        %v3381 = vsub.f32 %v459, %v3380
        %v3382 = vand.u32 %v3381, 4294901760
        %3383 = vmatpush1.msra.mxu0 %v3382
        %3384 = vmatprep.subr.mxu0 0.0
        %v3385 = vand.u32 %v460, 4294901760
        %v3386 = vsub.f32 %v460, %v3385
        %v3387 = vand.u32 %v3386, 4294901760
        %3388 = vmatpush1.msra.mxu0 %v3387
        %3389 = vmatprep.subr.mxu0 0.0
        %v3390 = vand.u32 %v461, 4294901760
        %v3391 = vsub.f32 %v461, %v3390
        %v3392 = vand.u32 %v3391, 4294901760
        %3393 = vmatpush1.msra.mxu0 %v3392
        %3394 = vmatprep.subr.mxu0 0.0
        %v3395 = vand.u32 %v462, 4294901760
        %v3396 = vsub.f32 %v462, %v3395
        %v3397 = vand.u32 %v3396, 4294901760
        %3398 = vmatpush1.msra.mxu0 %v3397
        %3399 = vmatprep.subr.mxu0 0.0
        %v3400 = vand.u32 %v463, 4294901760
        %v3401 = vsub.f32 %v463, %v3400
        %v3402 = vand.u32 %v3401, 4294901760
        %3403 = vmatpush1.msra.mxu0 %v3402
        %3404 = vmatprep.subr.mxu0 0.0
        %v3405 = vand.u32 %v464, 4294901760
        %v3406 = vsub.f32 %v464, %v3405
        %v3407 = vand.u32 %v3406, 4294901760
        %3408 = vmatpush1.msra.mxu0 %v3407
        %3409 = vmatprep.subr.mxu0 0.0
        %v3410 = vand.u32 %v465, 4294901760
        %v3411 = vsub.f32 %v465, %v3410
        %v3412 = vand.u32 %v3411, 4294901760
        %3413 = vmatpush1.msra.mxu0 %v3412
        %3414 = vmatprep.subr.mxu0 0.0
        %3415 = vmatpush1.msra.mxu0 0.0
        %3416 = vmatprep.subr.mxu0 0.0
        %3417 = vmatpush1.msra.mxu0 0.0
        %3418 = vmatprep.subr.mxu0 0.0
        %3419 = vmatpush1.msra.mxu0 0.0
        %3420 = vmatprep.subr.mxu0 0.0
        %3421 = vmatpush1.msra.mxu0 0.0
        %3422 = vmatprep.subr.mxu0 0.0
        %3423 = vmatpush1.msra.mxu0 0.0
        %3424 = vmatprep.subr.mxu0 0.0
        %3425 = vmatpush1.msra.mxu0 0.0
        %3426 = vmatprep.subr.mxu0 0.0
        %3427 = vmatpush1.msra.mxu0 0.0
        %3428 = vmatprep.subr.mxu0 0.0
        %3429 = vmatpush1.msra.mxu0 0.0
        %3430 = vmatprep.subr.mxu0 0.0
        %3431 = vmatpush1.msra.mxu0 0.0
        %3432 = vmatprep.subr.mxu0 0.0
        %3433 = vmatpush1.msra.mxu0 0.0
        %3434 = vmatprep.subr.mxu0 0.0
        %3435 = vmatpush1.msra.mxu0 0.0
        %3436 = vmatprep.subr.mxu0 0.0
        %3437 = vmatpush1.msra.mxu0 0.0
        %3438 = vmatprep.subr.mxu0 0.0
        %3439 = vmatpush1.msra.mxu0 0.0
        %3440 = vmatprep.subr.mxu0 0.0
        %3441 = vmatpush1.msra.mxu0 0.0
        %3442 = vmatprep.subr.mxu0 0.0
        %3443 = vmatpush1.msra.mxu0 0.0
        %3444 = vmatprep.subr.mxu0 0.0
        %3445 = vmatpush1.msra.mxu0 0.0
        %3446 = vmatprep.mubr.f32.mxu0 0.0
        %v3447 = vand.u32 %v2257, 4294901760
        %3448 = vmatmul.mubr.f32.gmra.mrb[0].mxu0 %v3447
        %v3449 = vpop.f32.mrb[0].mxu0
        %v3450 = vadd.f32 %v3331, %v3449
        %v3451 = vpop.f32.mrb[0].mxu0
        %3452 = vdwg.mxu0
        %3453 = vmatprep.subr.mxu0 0.0
        %v3454 = vand.u32 %v450, 4294901760
        %3455 = vmatpush1.msra.mxu0 %v3454
        %3456 = vmatprep.subr.mxu0 0.0
        %v3457 = vand.u32 %v451, 4294901760
        %3458 = vmatpush1.msra.mxu0 %v3457
        %3459 = vmatprep.subr.mxu0 0.0
        %v3460 = vand.u32 %v452, 4294901760
        %3461 = vmatpush1.msra.mxu0 %v3460
        %3462 = vmatprep.subr.mxu0 0.0
        %v3463 = vand.u32 %v453, 4294901760
        %3464 = vmatpush1.msra.mxu0 %v3463
        %3465 = vmatprep.subr.mxu0 0.0
        %v3466 = vand.u32 %v454, 4294901760
        %3467 = vmatpush1.msra.mxu0 %v3466
        %3468 = vmatprep.subr.mxu0 0.0
        %v3469 = vand.u32 %v455, 4294901760
        %3470 = vmatpush1.msra.mxu0 %v3469
        %3471 = vmatprep.subr.mxu0 0.0
        %v3472 = vand.u32 %v456, 4294901760
        %3473 = vmatpush1.msra.mxu0 %v3472
        %3474 = vmatprep.subr.mxu0 0.0
        %v3475 = vand.u32 %v457, 4294901760
        %3476 = vmatpush1.msra.mxu0 %v3475
        %3477 = vmatprep.subr.mxu0 0.0
        %v3478 = vand.u32 %v458, 4294901760
        %3479 = vmatpush1.msra.mxu0 %v3478
        %3480 = vmatprep.subr.mxu0 0.0
        %v3481 = vand.u32 %v459, 4294901760
        %3482 = vmatpush1.msra.mxu0 %v3481
        %3483 = vmatprep.subr.mxu0 0.0
        %v3484 = vand.u32 %v460, 4294901760
        %3485 = vmatpush1.msra.mxu0 %v3484
        %3486 = vmatprep.subr.mxu0 0.0
        %v3487 = vand.u32 %v461, 4294901760
        %3488 = vmatpush1.msra.mxu0 %v3487
        %3489 = vmatprep.subr.mxu0 0.0
        %v3490 = vand.u32 %v462, 4294901760
        %3491 = vmatpush1.msra.mxu0 %v3490
        %3492 = vmatprep.subr.mxu0 0.0
        %v3493 = vand.u32 %v463, 4294901760
        %3494 = vmatpush1.msra.mxu0 %v3493
        %3495 = vmatprep.subr.mxu0 0.0
        %v3496 = vand.u32 %v464, 4294901760
        %3497 = vmatpush1.msra.mxu0 %v3496
        %3498 = vmatprep.subr.mxu0 0.0
        %v3499 = vand.u32 %v465, 4294901760
        %3500 = vmatpush1.msra.mxu0 %v3499
        %3501 = vmatprep.subr.mxu0 0.0
        %3502 = vmatpush1.msra.mxu0 0.0
        %3503 = vmatprep.subr.mxu0 0.0
        %3504 = vmatpush1.msra.mxu0 0.0
        %3505 = vmatprep.subr.mxu0 0.0
        %3506 = vmatpush1.msra.mxu0 0.0
        %3507 = vmatprep.subr.mxu0 0.0
        %3508 = vmatpush1.msra.mxu0 0.0
        %3509 = vmatprep.subr.mxu0 0.0
        %3510 = vmatpush1.msra.mxu0 0.0
        %3511 = vmatprep.subr.mxu0 0.0
        %3512 = vmatpush1.msra.mxu0 0.0
        %3513 = vmatprep.subr.mxu0 0.0
        %3514 = vmatpush1.msra.mxu0 0.0
        %3515 = vmatprep.subr.mxu0 0.0
        %3516 = vmatpush1.msra.mxu0 0.0
        %3517 = vmatprep.subr.mxu0 0.0
        %3518 = vmatpush1.msra.mxu0 0.0
        %3519 = vmatprep.subr.mxu0 0.0
        %3520 = vmatpush1.msra.mxu0 0.0
        %3521 = vmatprep.subr.mxu0 0.0
        %3522 = vmatpush1.msra.mxu0 0.0
        %3523 = vmatprep.subr.mxu0 0.0
        %3524 = vmatpush1.msra.mxu0 0.0
        %3525 = vmatprep.subr.mxu0 0.0
        %3526 = vmatpush1.msra.mxu0 0.0
        %3527 = vmatprep.subr.mxu0 0.0
        %3528 = vmatpush1.msra.mxu0 0.0
        %3529 = vmatprep.subr.mxu0 0.0
        %3530 = vmatpush1.msra.mxu0 0.0
        %3531 = vmatprep.subr.mxu0 0.0
        %3532 = vmatpush1.msra.mxu0 0.0
        %3533 = vmatprep.mubr.f32.mxu0 0.0
        %v3534 = vand.u32 %v2257, 4294901760
        %3535 = vmatmul.mubr.f32.gmra.mrb[0].mxu0 %v3534
        %v3536 = vpop.f32.mrb[0].mxu0
        %v3537 = vadd.f32 %v3450, %v3536
        %v3538 = vpop.f32.mrb[0].mxu0
        %3539 = vdwg.mxu0
        %v3540 = vmax.f32 %v2896, 1e-37
        %v3541 = vlog2.pop %v3540
        %v3542 = vmul.f32 %v3541, 0.6931472
        %v3543 = vadd.f32 %v3542, %v2253
        %v3544 = vsub.f32 %v3543, %v3537
        %v3545 = vld [vmem:[#allocation3] sm:$0xff]
        %v3546 = vsel %vm362, %v3544, 0.0
        %v3547 = vadd.f32 %v3545, %v3546
        %3548 = vst.msk [vmem:[#allocation3] sm:$0xff] %vm484, %v3547
        // Predicated region
        $region49: #{tpu_custom_call.1} parent=31 // pred_check
          %p3549 = pneg %p353
        $region50: #{tpu_custom_call.1} parent=31 // pred_check_branch
          %3551 = sbr.rel (%p3549) target = $region52
        $region51: #{tpu_custom_call.1} parent=31 // pred_region
          %v3552 = vld [vmem:[#allocation4] sm:$0xff]
          %v3553 = vsel %vm484, %v3552, 0.0
          %3554 = vadd.xlane.f32.xlu0 %v3553
          %v3555 = vpop.xlane.xlu0 %3554
          %v3556 = vrot.slane %v3555, 4
          %v3557 = vadd.f32 %v3555, %v3556
          %v3558 = vrot.slane %v3557, 2
          %v3559 = vadd.f32 %v3557, %v3558
          %v3560 = vrot.slane %v3559, 1
          %v3561 = vadd.f32 %v3559, %v3560
          %s3562 = vtos %v3561
          %v3563 = vstv %s3562
          %3564 = vst [vmem:[%s349] sm:$0xff] %v3563
          %v3565 = vld [vmem:[#allocation2] sm:$0xff]
          %v3566 = vsel %vm484, %v3565, 0.0
          %3567 = vadd.xlane.f32.xlu0 %v3566
          %v3568 = vpop.xlane.xlu0 %3567
          %v3569 = vrot.slane %v3568, 4
          %v3570 = vadd.f32 %v3568, %v3569
          %v3571 = vrot.slane %v3570, 2
          %v3572 = vadd.f32 %v3570, %v3571
          %v3573 = vrot.slane %v3572, 1
          %v3574 = vadd.f32 %v3572, %v3573
          %s3575 = vtos %v3574
          %v3576 = vstv %s3575
          %3577 = vst [vmem:[%s335] sm:$0xff] %v3576
          %v3578 = vld [vmem:[#allocation3] sm:$0xff]
          %v3579 = vsel %vm484, %v3578, 0.0
          %3580 = vadd.xlane.f32.xlu0 %v3579
          %v3581 = vpop.xlane.xlu0 %3580
          %v3582 = vrot.slane %v3581, 4
          %v3583 = vadd.f32 %v3581, %v3582
          %v3584 = vrot.slane %v3583, 2
          %v3585 = vadd.f32 %v3583, %v3584
          %v3586 = vrot.slane %v3585, 1
          %v3587 = vadd.f32 %v3585, %v3586
          %s3588 = vtos %v3587
          %v3589 = vstv %s3588
          %3590 = vst [vmem:[%s342] sm:$0xff] %v3589
        $region52: #{tpu_custom_call.1} parent=31 // pred_fallthru
          _
        %s3591 = sand.u32 %s133, 1
        %s3592 = scalar_lea.sflag [#allocation7], %s3591
        %s3593 = sand.u32 %s133, 1
        %s3594 = smul.addr %s3593, 8
        %s3595 = scalar_lea.vmem [#allocation11], %s3594
        %s3596 = sand.u32 %s29, 1
        %s3597 = scalar_lea.sflag [#allocation13], %s3596
        %s3598 = sand.u32 %s159, 1
        %s3599 = smul.addr %s3598, 8
        %s3600 = scalar_lea.vmem [#allocation12], %s3599
        %s3601 = sand.u32 %s29, 1
        %s3602 = scalar_lea.sflag [#allocation13], %s3601
        %s3603 = sand.u32 %s185, 1
        %s3604 = smul.addr %s3603, 8
        %s3605 = scalar_lea.vmem [#allocation14], %s3604
        // Predicated region
        $region53: #{tpu_custom_call.1} parent=31 // pred_check
          %p3606 = pneg %p143
        $region54: #{tpu_custom_call.1} parent=31 // pred_check_branch
          %3608 = sbr.rel (%p3606) target = $region56
        $region55: #{tpu_custom_call.1} parent=31 // pred_region
          %s3610 = ssub.s32 128, 128
          %3611 = vsyncadd %s3592, %s3610
          %s3612 = smul.addr %s33, 128
          %s3613 = scalar_lea.hbm %s3, %s3612
          %s3615 = sshll.u32 %s3595, 4
          %s3616 = int_to_ptr.vmem [resolvable:$true] %s3615
          %3618 = dma.vmem_to_hbm [thread:$0]  %s3616, 128, %s3613, %s3592
        $region56: #{tpu_custom_call.1} parent=31 // pred_fallthru
          _
        // Predicated region
        $region57: #{tpu_custom_call.1} parent=31 // pred_check
          %p3619 = pneg %p169
        $region58: #{tpu_custom_call.1} parent=31 // pred_check_branch
          %3621 = sbr.rel (%p3619) target = $region60
        $region59: #{tpu_custom_call.1} parent=31 // pred_region
          %s3623 = ssub.s32 128, 128
          %3624 = vsyncadd %s3597, %s3623
          %s3625 = smul.addr %s33, 128
          %s3626 = scalar_lea.hbm %s4, %s3625
          %s3628 = sshll.u32 %s3600, 4
          %s3629 = int_to_ptr.vmem [resolvable:$true] %s3628
          %3631 = dma.vmem_to_hbm [thread:$0]  %s3629, 128, %s3626, %s3597
        $region60: #{tpu_custom_call.1} parent=31 // pred_fallthru
          _
        // Predicated region
        $region61: #{tpu_custom_call.1} parent=31 // pred_check
          %p3632 = pneg %p195
        $region62: #{tpu_custom_call.1} parent=31 // pred_check_branch
          %3634 = sbr.rel (%p3632) target = $region64
        $region63: #{tpu_custom_call.1} parent=31 // pred_region
          %s3636 = ssub.s32 128, 128
          %3637 = vsyncadd %s3602, %s3636
          %s3638 = smul.addr %s33, 128
          %s3639 = scalar_lea.hbm %s5, %s3638
          %s3641 = sshll.u32 %s3605, 4
          %s3642 = int_to_ptr.vmem [resolvable:$true] %s3641
          %3644 = dma.vmem_to_hbm [thread:$0]  %s3642, 128, %s3639, %s3602
        $region64: #{tpu_custom_call.1} parent=31 // pred_fallthru
          _
      $region32: #{tpu_custom_call.1} parent=5 // pred_fallthru
        _
      %p3645 = scmp.le.s32.totalorder 2, %s24
      // Predicated region
      $region65: #{tpu_custom_call.1} parent=5 // pred_check
        %p3646 = pneg %p3645
      $region66: #{tpu_custom_call.1} parent=5 // pred_check_branch
        %3648 = sbr.rel (%p3646) target = $region68
      $region67: #{tpu_custom_call.1} parent=5 // pred_region
        %s3649 = ssub.s32 %s24, 2
        // Predicated region
        $region69: #{tpu_custom_call.1} parent=67 // pred_check
          %p3650 = pneg %p149
        $region70: #{tpu_custom_call.1} parent=67 // pred_check_branch
          %3652 = sbr.rel (%p3650) target = $region72
        $region71: #{tpu_custom_call.1} parent=67 // pred_region
          %s3653 = sand.u32 %s134, 1
          %s3654 = scalar_lea.sflag [#allocation7], %s3653
          %s3655 = sand.u32 %s134, 1
          %s3656 = smul.addr %s3655, 8
          %s3657 = scalar_lea.vmem [#allocation11], %s3656
          %3658 = dma.done %s3654, 128
        $region72: #{tpu_custom_call.1} parent=67 // pred_fallthru
          _
        // Predicated region
        $region73: #{tpu_custom_call.1} parent=67 // pred_check
          %p3659 = pneg %p175
        $region74: #{tpu_custom_call.1} parent=67 // pred_check_branch
          %3661 = sbr.rel (%p3659) target = $region76
        $region75: #{tpu_custom_call.1} parent=67 // pred_region
          %s3662 = sand.u32 %s30, 1
          %s3663 = scalar_lea.sflag [#allocation13], %s3662
          %s3664 = sand.u32 %s160, 1
          %s3665 = smul.addr %s3664, 8
          %s3666 = scalar_lea.vmem [#allocation12], %s3665
          %3667 = dma.done %s3663, 128
        $region76: #{tpu_custom_call.1} parent=67 // pred_fallthru
          _
        // Predicated region
        $region77: #{tpu_custom_call.1} parent=67 // pred_check
          %p3668 = pneg %p201
        $region78: #{tpu_custom_call.1} parent=67 // pred_check_branch
          %3670 = sbr.rel (%p3668) target = $region80
        $region79: #{tpu_custom_call.1} parent=67 // pred_region
          %s3671 = sand.u32 %s30, 1
          %s3672 = scalar_lea.sflag [#allocation13], %s3671
          %s3673 = sand.u32 %s186, 1
          %s3674 = smul.addr %s3673, 8
          %s3675 = scalar_lea.vmem [#allocation14], %s3674
          %3676 = dma.done %s3672, 128
        $region80: #{tpu_custom_call.1} parent=67 // pred_fallthru
          _
      $region68: #{tpu_custom_call.1} parent=5 // pred_fallthru
        _
    $region6: #{tpu_custom_call.1} parent=1 // loop_footer
      %s28 = sadd.s32 1, %s24
    $region7: #{tpu_custom_call.1} parent=1 // loop_footer_branch
      %23 = sbr.rel target = $region3
    $region8: #{tpu_custom_call.1} parent=1 // loop_exit
      _
    %3677 = vsyncpa [#allocation6], 1
    %s3678 = scalar_lea.sflag [#allocation6], 1
    %3679 = vsyncpa %s3678, 1
    %3680 = vsyncpa [#allocation9], 1
    %s3681 = scalar_lea.sflag [#allocation9], 1
    %3682 = vsyncpa %s3681, 1
    %3683 = vsyncpa [#allocation7], 1
    %s3684 = scalar_lea.sflag [#allocation7], 1
    %3685 = vsyncpa %s3684, 1
    %3686 = vsyncpa [#allocation13], 1
    %s3687 = scalar_lea.sflag [#allocation13], 1
    %3688 = vsyncpa %s3687, 1

</llo_original>
